<compile_context>
chip_gen: v6e
topology: v6e:2x2x1
jax: 0.10.0
libtpu: 0.0.40
codegen_flags: <defaults>
</compile_context>

<pallas_src>
import math
from functools import partial

import jax
import jax.numpy as jnp
from jax.experimental import pallas as pl
from jax.experimental.pallas import tpu as pltpu


# ----------------------------- Pallas kernels ------------------------------

def _mm_bias_prelu_kernel(a_ref, b_ref, bias_ref, alpha_ref, o_ref):
    """out = prelu(A @ B + bias, alpha); bias/alpha broadcast per-row or per-col."""
    acc = jnp.dot(a_ref[...], b_ref[...], preferred_element_type=jnp.float32)
    acc = acc + bias_ref[...]
    acc = jnp.where(acc >= 0, acc, acc * alpha_ref[...])
    o_ref[...] = acc.astype(o_ref.dtype)


def _mm_res_prelu_kernel(a_ref, b_ref, r_ref, alpha_ref, o_ref, *, double_sigmoid):
    """out = prelu(A @ B + residual, alpha)  [optionally sigmoid(sigmoid(.))]."""
    acc = jnp.dot(a_ref[...], b_ref[...], preferred_element_type=jnp.float32)
    acc = acc + r_ref[...].astype(jnp.float32)
    acc = jnp.where(acc >= 0, acc, acc * alpha_ref[...])
    if double_sigmoid:
        acc = jax.nn.sigmoid(jax.nn.sigmoid(acc))
    o_ref[...] = acc.astype(o_ref.dtype)


def _grouped_mm_prelu_kernel(w_ref, p_ref, a_ref, o_ref):
    """Per-group matmul: out[g,c,m] = prelu(sum_k w[g,c,k] * p[g,k,m])."""
    acc = jnp.einsum("gck,gkm->gcm", w_ref[...], p_ref[...],
                     preferred_element_type=jnp.float32)
    acc = jnp.where(acc >= 0, acc, acc * a_ref[...])
    o_ref[...] = acc.astype(o_ref.dtype)


def _enc_tail_kernel(x_ref, t1_ref, t2_ref, a_ref, b_ref, c_ref, d_ref, o_ref):
    v = jax.nn.sigmoid(x_ref[...])
    v = (v * a_ref[...] + t1_ref[...] * b_ref[...]
         + t2_ref[...] * c_ref[...] + d_ref[...])
    o_ref[...] = jax.nn.sigmoid(v).astype(o_ref.dtype)


# ----------------------------- Pallas wrappers ------------------------------

def mm_bias_prelu(a, b, bias, alpha, *, per_row=True, out_dtype=jnp.bfloat16,
                  cblock=512):
    """out(R, C) = prelu(a(R, K) @ b(K, C) + bias, alpha), lane-dense over C."""
    a = a.astype(jnp.bfloat16)
    b = b.astype(jnp.bfloat16)
    R, K = a.shape
    Kb, C = b.shape
    assert K == Kb
    cb = min(C, cblock)
    assert C % cb == 0
    bias = jnp.asarray(bias, jnp.float32)
    alpha = jnp.asarray(alpha, jnp.float32)
    if per_row:
        bias = bias.reshape(R, 1)
        alpha = alpha.reshape(R, 1)
        bspec = pl.BlockSpec((R, 1), lambda i: (0, 0))
        aspec = pl.BlockSpec((R, 1), lambda i: (0, 0))
    else:
        bias = jnp.broadcast_to(bias.reshape(1, -1), (1, C))
        alpha = jnp.broadcast_to(alpha.reshape(1, -1), (1, C))
        bspec = pl.BlockSpec((1, cb), lambda i: (0, i))
        aspec = pl.BlockSpec((1, cb), lambda i: (0, i))
    return pl.pallas_call(
        _mm_bias_prelu_kernel,
        out_shape=jax.ShapeDtypeStruct((R, C), out_dtype),
        grid=(C // cb,),
        in_specs=[pl.BlockSpec((R, K), lambda i: (0, 0)),
                  pl.BlockSpec((K, cb), lambda i: (0, i)),
                  bspec, aspec],
        out_specs=pl.BlockSpec((R, cb), lambda i: (0, i)),
        compiler_params=pltpu.CompilerParams(dimension_semantics=("parallel",)),
    )(a, b, bias, alpha)


def mm_res_prelu(a, b, res, alpha, *, double_sigmoid=False,
                 out_dtype=jnp.bfloat16, cblock=512):
    """out(R, C) = prelu(a @ b + res, alpha) with optional fused sigmoid(sigmoid)."""
    a = a.astype(jnp.bfloat16)
    b = b.astype(jnp.bfloat16)
    R, K = a.shape
    _, C = b.shape
    cb = min(C, cblock)
    assert C % cb == 0
    res = res.reshape(R, C).astype(jnp.bfloat16)
    alpha = jnp.asarray(alpha, jnp.float32).reshape(R, 1)
    return pl.pallas_call(
        partial(_mm_res_prelu_kernel, double_sigmoid=double_sigmoid),
        out_shape=jax.ShapeDtypeStruct((R, C), out_dtype),
        grid=(C // cb,),
        in_specs=[pl.BlockSpec((R, K), lambda i: (0, 0)),
                  pl.BlockSpec((K, cb), lambda i: (0, i)),
                  pl.BlockSpec((R, cb), lambda i: (0, i)),
                  pl.BlockSpec((R, 1), lambda i: (0, 0))],
        out_specs=pl.BlockSpec((R, cb), lambda i: (0, i)),
        compiler_params=pltpu.CompilerParams(dimension_semantics=("parallel",)),
    )(a, b, res, alpha)


def enc_tail(x, t1, t2, a, b, c, d):
    """sigmoid(x) -> *a + t1*b + t2*c + d -> sigmoid, fused in one VPU kernel."""
    bs, F = x.shape
    return pl.pallas_call(
        _enc_tail_kernel,
        out_shape=jax.ShapeDtypeStruct((bs, F), jnp.bfloat16),
    )(x.astype(jnp.float32), t1.astype(jnp.float32), t2.astype(jnp.float32),
      a, b, c, d)


# ------------------------------ conv glue (JAX) -----------------------------

def _im2col_km(x, KH, KW, stride, ph, pw):
    """x: (C, N, H, W) -> patches (C*KH*KW, N*Ho*Wo), rows ordered (c, kh, kw)."""
    C, N, H, W = x.shape
    xp = jnp.pad(x, ((0, 0), (0, 0), (ph, ph), (pw, pw)))
    Ho = (H + 2 * ph - KH) // stride + 1
    Wo = (W + 2 * pw - KW) // stride + 1
    cols = []
    for i in range(KH):
        for j in range(KW):
            cols.append(xp[:, :, i:i + (Ho - 1) * stride + 1:stride,
                              j:j + (Wo - 1) * stride + 1:stride])
    pat = jnp.stack(cols, axis=1)                       # (C, KH*KW, N, Ho, Wo)
    return pat.reshape(C * KH * KW, N * Ho * Wo), Ho, Wo


def conv2d(x, wf, KH, KW, *, stride=1, pad=(0, 0), bias=None, alpha=None,
           residual=None, double_sigmoid=False, out_dtype=jnp.bfloat16):
    """Conv2d (+BN eval-identity) + PReLU, or fused residual-add + PReLU.
    x: (C, N, H, W); wf: (Cout, C*KH*KW) pre-flattened bf16."""
    # TODO(synk): ConvBN / BatchNorm mode undefined in source; BN = eval identity.
    C, N, H, W = x.shape
    Cout = wf.shape[0]
    pat, Ho, Wo = _im2col_km(x.astype(jnp.bfloat16), KH, KW, stride, pad[0], pad[1])
    if residual is not None:
        y = mm_res_prelu(wf, pat, residual.reshape(Cout, -1), alpha,
                         double_sigmoid=double_sigmoid, out_dtype=out_dtype)
    else:
        if bias is None:
            bias = jnp.zeros((Cout, 1), jnp.float32)
        y = mm_bias_prelu(wf, pat, bias, alpha, per_row=True, out_dtype=out_dtype)
    return y.reshape(Cout, N, Ho, Wo)


def conv_transpose2d(x, wf, bias, alpha):
    """ConvTranspose2d(k=3, s=2, p=1, op=1) + PReLU == dilate(2)+pad(1,2)+conv."""
    C, N, H, W = x.shape
    xd = jnp.zeros((C, N, 2 * H - 1, 2 * W - 1), x.dtype).at[:, :, ::2, ::2].set(x)
    xd = jnp.pad(xd, ((0, 0), (0, 0), (1, 2), (1, 2)))
    return conv2d(xd, wf, 3, 3, stride=1, pad=(0, 0), bias=bias, alpha=alpha)


def grouped_conv7_prelu(x, wg, alpha_g):
    """Grouped 7x7 conv (Cin_g=Cout_g=2) + PReLU as a per-group batched matmul.
    x: (C, N, H, W); wg: (G, 2, 2*49) bf16; alpha_g: (G, 2, 1) f32."""
    C, N, H, W = x.shape
    G, Cg, Kg = wg.shape
    pat, Ho, Wo = _im2col_km(x.astype(jnp.bfloat16), 7, 7, 1, 3, 3)
    M = pat.shape[1]
    patg = pat.reshape(G, Kg, M)
    cb = min(M, 256)
    assert M % cb == 0
    gb = G // 2 if G % 2 == 0 else G          # 2-D grid -> both v7x TensorCores
    out = pl.pallas_call(
        _grouped_mm_prelu_kernel,
        out_shape=jax.ShapeDtypeStruct((G, Cg, M), jnp.bfloat16),
        grid=(G // gb, M // cb),
        in_specs=[pl.BlockSpec((gb, Cg, Kg), lambda g, i: (g, 0, 0)),
                  pl.BlockSpec((gb, Kg, cb), lambda g, i: (g, 0, i)),
                  pl.BlockSpec((gb, Cg, 1), lambda g, i: (g, 0, 0))],
        out_specs=pl.BlockSpec((gb, Cg, cb), lambda g, i: (g, 0, i)),
        compiler_params=pltpu.CompilerParams(
            dimension_semantics=("parallel", "parallel")),
    )(wg, patg, alpha_g)
    return out.reshape(G * Cg, N, Ho, Wo)


# ------------------------------ parameters ----------------------------------

def _xavier(key, shape, fan_in, fan_out):
    lim = math.sqrt(6.0 / (fan_in + fan_out))
    return jax.random.uniform(key, shape, jnp.float32, -lim, lim)


def init_params(key, reduction=16, expansion=20):
    n1 = int(math.log2(reduction))            # 4
    rs = 8192 // reduction                    # 512
    width = 8 * expansion                     # 160
    groups = 4 * expansion                    # 80
    ks = iter(jax.random.split(key, 160))
    nk = lambda: next(ks)
    bf = jnp.bfloat16
    p03 = lambda c: jnp.full((c, 1), 0.3, jnp.float32)

    def conv_wf(cout, cin, kh, kw):
        w = _xavier(nk(), (cout, cin, kh, kw), cin * kh * kw, cout * kh * kw)
        return w.reshape(cout, cin * kh * kw).astype(bf)       # pre-flattened

    def enc_block():
        return dict(w1=conv_wf(2, 2, 1, 9), a1=p03(2),
                    w2=conv_wf(2, 2, 9, 1), a2=p03(2))

    convn = []
    for n in range(n1):
        ci, co = 2 ** (n + 1), 2 ** (n + 2)
        convn.append(dict(w=conv_wf(co, ci, 3, 3),
                          b=jax.random.uniform(nk(), (co, 1), jnp.float32, -0.05, 0.05),
                          a=p03(co)))

    en = dict(conv5_w=conv_wf(2, 2, 5, 5), prelu0=p03(2),
              eb1=enc_block(), eb2=enc_block(), convn=convn,
              a=_xavier(nk(), (1, rs), 1, rs), b=_xavier(nk(), (1, rs), 1, rs),
              c=_xavier(nk(), (1, rs), 1, rs), d=_xavier(nk(), (1, rs), 1, rs))

    def dec_block():
        wg = _xavier(nk(), (width, 2, 7, 7), 2 * 49, width * 49)
        return dict(w1=conv_wf(width, 2, 1, 9), a1=p03(width),
                    w2=wg.reshape(groups, 2, 2 * 49).astype(bf),     # per-group
                    a2=jnp.full((groups, 2, 1), 0.3, jnp.float32),
                    w3=conv_wf(2, width, 9, 1), a3=p03(2))

    convtrans = []
    for n in range(n1):
        ci, co = 2 ** (n1 - n + 1), 2 ** (n1 - n)
        w_ct = _xavier(nk(), (ci, co, 3, 3), ci * 9, co * 9)
        # flip + transpose hoisted to init (ConvTranspose -> equivalent conv)
        wf = jnp.flip(w_ct, (2, 3)).transpose(1, 0, 2, 3).reshape(co, ci * 9).astype(bf)
        convtrans.append(dict(w=wf,
                              b=jax.random.uniform(nk(), (co, 1), jnp.float32, -0.05, 0.05),
                              a=p03(co)))

    in_fc1 = rs + 16 * 5 + rs * 2             # 1616
    de = dict(fc1_w=_xavier(nk(), (in_fc1, rs), in_fc1, rs).astype(bf),
              fc1_b=jax.random.uniform(nk(), (1, rs), jnp.float32, -0.02, 0.02),
              fc2_w=_xavier(nk(), (rs, rs), rs, rs).astype(bf),
              fc2_b=jax.random.uniform(nk(), (1, rs), jnp.float32, -0.02, 0.02),
              lrelu_a=jnp.full((1, rs), 0.3, jnp.float32),
              convtrans=convtrans,
              conv5_w=conv_wf(2, 2, 5, 5), prelu0=p03(2),
              db1=dec_block(), db2=dec_block())

    return dict(en=en, de=de), dict(n1=n1, rs=rs, width=width, groups=groups)


# ------------------------------ forward passes -------------------------------

def encoder_forward(p, Hin, iarf):
    # TODO(synk): CSI_reshape undefined in source; Hin assumed already (bs, 2, 64, 64).
    bs = Hin.shape[0]
    en = p["en"]
    x = jnp.transpose(Hin, (1, 0, 2, 3)).astype(jnp.bfloat16)      # (C, N, H, W)
    x = conv2d(x, en["conv5_w"], 5, 5, pad=(2, 2), alpha=en["prelu0"])
    for blk in (en["eb1"], en["eb2"]):                             # ACREncoderBlock x2
        idt = x
        r = conv2d(x, blk["w1"], 1, 9, pad=(0, 4), alpha=blk["a1"])
        x = conv2d(r, blk["w2"], 9, 1, pad=(4, 0),
                   residual=idt, alpha=blk["a2"])                  # fused add+PReLU
    for lay in en["convn"]:                                        # 4 strided convs
        x = conv2d(x, lay["w"], 3, 3, stride=2, pad=(1, 1),
                   bias=lay["b"], alpha=lay["a"])
    feat = jnp.transpose(x, (1, 0, 2, 3)).reshape(bs, -1)          # (bs, 512), NCHW order
    t1 = iarf[:, 0, :]
    t2 = iarf[:, 1, :]
    out = enc_tail(feat, t1, t2, en["a"], en["b"], en["c"], en["d"])
    # TODO(synk): torch casts to float16; bf16 used (no native fp16 path on TPU).
    out = out.reshape(bs, 1, -1)
    return out, out


def decoder_forward(p, Hencoded, iarf, sensor_feats, *, n1, wo, ho):
    bs = Hencoded.shape[0]
    de = p["de"]
    t1 = iarf[:, 0, :].astype(jnp.float32)
    t2 = iarf[:, 1, :].astype(jnp.float32)
    combined = jnp.concatenate(
        [Hencoded.reshape(bs, -1).astype(jnp.float32), t1, t2, sensor_feats], axis=1)
    out = mm_bias_prelu(combined, de["fc1_w"], de["fc1_b"], de["lrelu_a"],
                        per_row=False)                             # LeakyReLU(0.3)
    out = mm_bias_prelu(out, de["fc2_w"], de["fc2_b"], de["lrelu_a"],
                        per_row=False)
    x = out.reshape(-1, 2 ** (n1 + 1), wo, ho)                     # (nb, 32, 2, 2) NCHW
    x = jnp.transpose(x, (1, 0, 2, 3)).astype(jnp.bfloat16)        # (C, N, H, W)
    for lay in de["convtrans"]:                                    # 4x upsample
        x = conv_transpose2d(x, lay["w"], lay["b"], lay["a"])
    x = conv2d(x, de["conv5_w"], 5, 5, pad=(2, 2), alpha=de["prelu0"])
    blocks = (de["db1"], de["db2"])                                # ACRDecoderBlock x2
    for bi, blk in enumerate(blocks):
        idt = x
        r = conv2d(x, blk["w1"], 1, 9, pad=(0, 4), alpha=blk["a1"])
        r = grouped_conv7_prelu(r, blk["w2"], blk["a2"])
        last = bi == len(blocks) - 1
        # fused: residual add + PReLU (+ sigmoid(sigmoid()) on the last block)
        x = conv2d(r, blk["w3"], 9, 1, pad=(4, 0), residual=idt, alpha=blk["a3"],
                   double_sigmoid=last,
                   out_dtype=jnp.float32 if last else jnp.bfloat16)
    out = jnp.transpose(x, (1, 0, 2, 3)).reshape(bs, 2, 64, 64)
    # TODO(synk): CSI_back2original undefined in source; treated as identity.
    return out


class Task3ModelPallas:
    def __init__(self, key, reduction=16, expansion=20):
        self.params, cfg = init_params(key, reduction, expansion)
        self.n1 = cfg["n1"]
        self.reduced_size = cfg["rs"]
        self.wo = 64 // 2 ** (self.n1 + 1)
        self.ho = 64 // 2 ** (self.n1 + 1)
        self.ar = [None] * 5
        self._enc = jax.jit(encoder_forward)
        self._dec = jax.jit(partial(decoder_forward, n1=self.n1,
                                    wo=self.wo, ho=self.ho))

    def __call__(self, X, time_index, device, is_training, onoffdict):
        Hin = X[0]
        bs = Hin.shape[0]
        rs = self.reduced_size
        if time_index == 0:
            iarf = jnp.zeros((bs, 2, rs), jnp.float32)
        elif time_index == 1:
            iarf = jnp.concatenate(
                [self.ar[0].astype(jnp.float32),
                 jnp.zeros((bs, 1, rs), jnp.float32)], axis=1)
        else:
            iarf = jnp.concatenate(
                [self.ar[time_index - 1].astype(jnp.float32),
                 self.ar[time_index - 2].astype(jnp.float32)], axis=1)
        Hencoded, ar = self._enc(self.params, Hin, iarf)
        self.ar[time_index] = ar
        if not is_training:
            # TODO(synk): decimal_to_binary / binary_to_decimal undefined in source; skipped.
            pass
        # TODO(synk): gpsdata/radardata/*camera submodules undefined in source; only the
        # onoffdict "off" branch (zeros(bs, 16) per sensor) is implemented.
        sensor_feats = jnp.zeros((bs, 16 * 5), jnp.float32)
        return self._dec(self.params, Hencoded, iarf, sensor_feats)


# ------------------------------------ main -----------------------------------

if __name__ == "__main__":
    key = jax.random.PRNGKey(0)
    kp, kx, kg, kr, kl, kc, krr = jax.random.split(key, 7)
    bs = 2
    model = Task3ModelPallas(kp, reduction=16, expansion=20)
    Hin = jax.random.normal(kx, (bs, 2, 64, 64), jnp.float32)
    gps = jax.random.normal(kg, (bs, 8), jnp.float32)       # placeholders (sensors off)
    radar = jax.random.normal(kr, (bs, 8), jnp.float32)
    left = jax.random.normal(kl, (bs, 8), jnp.float32)
    center = jax.random.normal(kc, (bs, 8), jnp.float32)
    right = jax.random.normal(krr, (bs, 8), jnp.float32)
    X = [Hin, gps, radar, left, center, right]
    onoffdict = {"GPS": False, "RADAR": False, "CAMERAS": False}

    out = model(X, time_index=0, device=None, is_training=True, onoffdict=onoffdict)
    out = jax.block_until_ready(out)
    assert out.shape == (bs, 2, 64, 64), out.shape
    assert bool(jnp.all(jnp.isfinite(out)))
    print("KERNEL_OK")
</pallas_src>

<mosaic_0001>
module attributes {stable_mosaic.version = 11 : i64} {
  func.func @_mm_bias_prelu_kernel(%arg0: i32, %arg1: memref<2x50xbf16, #tpu.memory_space<vmem>>, %arg2: memref<50x512xbf16, #tpu.memory_space<vmem>>, %arg3: memref<2x1xf32, #tpu.memory_space<vmem>>, %arg4: memref<2x1xf32, #tpu.memory_space<vmem>>, %arg5: memref<2x512xbf16, #tpu.memory_space<vmem>>) attributes {dimension_semantics = [#tpu.dimension_semantics<parallel>], iteration_bounds = array<i64: 16>, scalar_prefetch = 0 : i64, scratch_operands = 0 : i64, tpu.core_type = #tpu.core_type<tc>, window_params = [{pipeline_mode = #tpu.pipeline_mode<synchronous>, transform_indices = @transform_0, window_bounds = array<i64: 2, 50>}, {transform_indices = @transform_1, window_bounds = array<i64: 50, 512>}, {pipeline_mode = #tpu.pipeline_mode<synchronous>, transform_indices = @transform_2, window_bounds = array<i64: 2, 1>}, {pipeline_mode = #tpu.pipeline_mode<synchronous>, transform_indices = @transform_3, window_bounds = array<i64: 2, 1>}, {transform_indices = @transform_4, window_bounds = array<i64: 2, 512>}]} {
    %c0 = arith.constant 0 : index
    %c0_0 = arith.constant 0 : index
    %0 = vector.load %arg1[%c0, %c0_0] : memref<2x50xbf16, #tpu.memory_space<vmem>>, vector<2x50xbf16>
    %c0_1 = arith.constant 0 : index
    %c0_2 = arith.constant 0 : index
    %1 = vector.load %arg2[%c0_1, %c0_2] : memref<50x512xbf16, #tpu.memory_space<vmem>>, vector<50x512xbf16>
    %cst = arith.constant dense<0.000000e+00> : vector<2x512xf32>
    %2 = tpu.matmul %0, %1, %cst {dimension_numbers = #tpu.dot_dimension_numbers<[1], [0], [0], [1], [0, 0, 1, 1], [], []>} : vector<2x50xbf16>, vector<50x512xbf16>, vector<2x512xf32> -> vector<2x512xf32>
    %c0_3 = arith.constant 0 : index
    %c0_4 = arith.constant 0 : index
    %3 = vector.load %arg3[%c0_3, %c0_4] : memref<2x1xf32, #tpu.memory_space<vmem>>, vector<2x1xf32>
    %4 = vector.broadcast %3 : vector<2x1xf32> to vector<2x512xf32>
    %5 = arith.addf %2, %4 : vector<2x512xf32>
    %cst_5 = arith.constant 0.000000e+00 : f32
    %6 = vector.broadcast %cst_5 : f32 to vector<2x512xf32>
    %7 = arith.cmpf oge, %5, %6 : vector<2x512xf32>
    %c0_6 = arith.constant 0 : index
    %c0_7 = arith.constant 0 : index
    %8 = vector.load %arg4[%c0_6, %c0_7] : memref<2x1xf32, #tpu.memory_space<vmem>>, vector<2x1xf32>
    %9 = vector.broadcast %8 : vector<2x1xf32> to vector<2x512xf32>
    %10 = arith.mulf %5, %9 : vector<2x512xf32>
    %11 = arith.select %7, %5, %10 : vector<2x512xi1>, vector<2x512xf32>
    %12 = arith.truncf %11 : vector<2x512xf32> to vector<2x512xbf16>
    %c0_8 = arith.constant 0 : index
    %c0_9 = arith.constant 0 : index
    %13 = vector.load %arg5[%c0_8, %c0_9] : memref<2x512xbf16, #tpu.memory_space<vmem>>, vector<2x512xbf16>
    tpu.vector_store %arg5[%c0_8, %c0_9], %12 {strides = array<i32>} : memref<2x512xbf16, #tpu.memory_space<vmem>>, vector<2x512xbf16>,
    return
  }
  func.func @transform_0(%arg0: i32) -> (i32, i32) {
    %c0_i32 = arith.constant 0 : i32
    %c0_i32_0 = arith.constant 0 : i32
    %c0_i32_1 = arith.constant 0 : i32
    return %c0_i32, %c0_i32_0 : i32, i32
  }
  func.func @transform_1(%arg0: i32) -> (i32, i32) {
    %c0_i32 = arith.constant 0 : i32
    %c0_i32_0 = arith.constant 0 : i32
    return %c0_i32, %arg0 : i32, i32
  }
  func.func @transform_2(%arg0: i32) -> (i32, i32) {
    %c0_i32 = arith.constant 0 : i32
    %c0_i32_0 = arith.constant 0 : i32
    %c0_i32_1 = arith.constant 0 : i32
    return %c0_i32, %c0_i32_0 : i32, i32
  }
  func.func @transform_3(%arg0: i32) -> (i32, i32) {
    %c0_i32 = arith.constant 0 : i32
    %c0_i32_0 = arith.constant 0 : i32
    %c0_i32_1 = arith.constant 0 : i32
    return %c0_i32, %c0_i32_0 : i32, i32
  }
  func.func @transform_4(%arg0: i32) -> (i32, i32) {
    %c0_i32 = arith.constant 0 : i32
    %c0_i32_0 = arith.constant 0 : i32
    return %c0_i32, %arg0 : i32, i32
  }
}

module attributes {stable_mosaic.version = 11 : i64} {
  func.func @_mm_bias_prelu_kernel(%arg0: i32, %arg1: memref<2x18xbf16, #tpu.memory_space<vmem>>, %arg2: memref<18x512xbf16, #tpu.memory_space<vmem>>, %arg3: memref<2x1xf32, #tpu.memory_space<vmem>>, %arg4: memref<2x1xf32, #tpu.memory_space<vmem>>, %arg5: memref<2x512xbf16, #tpu.memory_space<vmem>>) attributes {dimension_semantics = [#tpu.dimension_semantics<parallel>], iteration_bounds = array<i64: 16>, scalar_prefetch = 0 : i64, scratch_operands = 0 : i64, tpu.core_type = #tpu.core_type<tc>, window_params = [{pipeline_mode = #tpu.pipeline_mode<synchronous>, transform_indices = @transform_0, window_bounds = array<i64: 2, 18>}, {transform_indices = @transform_1, window_bounds = array<i64: 18, 512>}, {pipeline_mode = #tpu.pipeline_mode<synchronous>, transform_indices = @transform_2, window_bounds = array<i64: 2, 1>}, {pipeline_mode = #tpu.pipeline_mode<synchronous>, transform_indices = @transform_3, window_bounds = array<i64: 2, 1>}, {transform_indices = @transform_4, window_bounds = array<i64: 2, 512>}]} {
    %c0 = arith.constant 0 : index
    %c0_0 = arith.constant 0 : index
    %0 = vector.load %arg1[%c0, %c0_0] : memref<2x18xbf16, #tpu.memory_space<vmem>>, vector<2x18xbf16>
    %c0_1 = arith.constant 0 : index
    %c0_2 = arith.constant 0 : index
    %1 = vector.load %arg2[%c0_1, %c0_2] : memref<18x512xbf16, #tpu.memory_space<vmem>>, vector<18x512xbf16>
    %cst = arith.constant dense<0.000000e+00> : vector<2x512xf32>
    %2 = tpu.matmul %0, %1, %cst {dimension_numbers = #tpu.dot_dimension_numbers<[1], [0], [0], [1], [0, 0, 1, 1], [], []>} : vector<2x18xbf16>, vector<18x512xbf16>, vector<2x512xf32> -> vector<2x512xf32>
    %c0_3 = arith.constant 0 : index
    %c0_4 = arith.constant 0 : index
    %3 = vector.load %arg3[%c0_3, %c0_4] : memref<2x1xf32, #tpu.memory_space<vmem>>, vector<2x1xf32>
    %4 = vector.broadcast %3 : vector<2x1xf32> to vector<2x512xf32>
    %5 = arith.addf %2, %4 : vector<2x512xf32>
    %cst_5 = arith.constant 0.000000e+00 : f32
    %6 = vector.broadcast %cst_5 : f32 to vector<2x512xf32>
    %7 = arith.cmpf oge, %5, %6 : vector<2x512xf32>
    %c0_6 = arith.constant 0 : index
    %c0_7 = arith.constant 0 : index
    %8 = vector.load %arg4[%c0_6, %c0_7] : memref<2x1xf32, #tpu.memory_space<vmem>>, vector<2x1xf32>
    %9 = vector.broadcast %8 : vector<2x1xf32> to vector<2x512xf32>
    %10 = arith.mulf %5, %9 : vector<2x512xf32>
    %11 = arith.select %7, %5, %10 : vector<2x512xi1>, vector<2x512xf32>
    %12 = arith.truncf %11 : vector<2x512xf32> to vector<2x512xbf16>
    %c0_8 = arith.constant 0 : index
    %c0_9 = arith.constant 0 : index
    %13 = vector.load %arg5[%c0_8, %c0_9] : memref<2x512xbf16, #tpu.memory_space<vmem>>, vector<2x512xbf16>
    tpu.vector_store %arg5[%c0_8, %c0_9], %12 {strides = array<i32>} : memref<2x512xbf16, #tpu.memory_space<vmem>>, vector<2x512xbf16>,
    return
  }
  func.func @transform_0(%arg0: i32) -> (i32, i32) {
    %c0_i32 = arith.constant 0 : i32
    %c0_i32_0 = arith.constant 0 : i32
    %c0_i32_1 = arith.constant 0 : i32
    return %c0_i32, %c0_i32_0 : i32, i32
  }
  func.func @transform_1(%arg0: i32) -> (i32, i32) {
    %c0_i32 = arith.constant 0 : i32
    %c0_i32_0 = arith.constant 0 : i32
    return %c0_i32, %arg0 : i32, i32
  }
  func.func @transform_2(%arg0: i32) -> (i32, i32) {
    %c0_i32 = arith.constant 0 : i32
    %c0_i32_0 = arith.constant 0 : i32
    %c0_i32_1 = arith.constant 0 : i32
    return %c0_i32, %c0_i32_0 : i32, i32
  }
  func.func @transform_3(%arg0: i32) -> (i32, i32) {
    %c0_i32 = arith.constant 0 : i32
    %c0_i32_0 = arith.constant 0 : i32
    %c0_i32_1 = arith.constant 0 : i32
    return %c0_i32, %c0_i32_0 : i32, i32
  }
  func.func @transform_4(%arg0: i32) -> (i32, i32) {
    %c0_i32 = arith.constant 0 : i32
    %c0_i32_0 = arith.constant 0 : i32
    return %c0_i32, %arg0 : i32, i32
  }
}

module attributes {stable_mosaic.version = 11 : i64} {
  func.func @_mm_res_prelu_kernel(%arg0: i32, %arg1: memref<2x18xbf16, #tpu.memory_space<vmem>>, %arg2: memref<18x512xbf16, #tpu.memory_space<vmem>>, %arg3: memref<2x512xbf16, #tpu.memory_space<vmem>>, %arg4: memref<2x1xf32, #tpu.memory_space<vmem>>, %arg5: memref<2x512xbf16, #tpu.memory_space<vmem>>) attributes {dimension_semantics = [#tpu.dimension_semantics<parallel>], iteration_bounds = array<i64: 16>, scalar_prefetch = 0 : i64, scratch_operands = 0 : i64, tpu.core_type = #tpu.core_type<tc>, window_params = [{pipeline_mode = #tpu.pipeline_mode<synchronous>, transform_indices = @transform_0, window_bounds = array<i64: 2, 18>}, {transform_indices = @transform_1, window_bounds = array<i64: 18, 512>}, {transform_indices = @transform_2, window_bounds = array<i64: 2, 512>}, {pipeline_mode = #tpu.pipeline_mode<synchronous>, transform_indices = @transform_3, window_bounds = array<i64: 2, 1>}, {transform_indices = @transform_4, window_bounds = array<i64: 2, 512>}]} {
    %c0 = arith.constant 0 : index
    %c0_0 = arith.constant 0 : index
    %0 = vector.load %arg1[%c0, %c0_0] : memref<2x18xbf16, #tpu.memory_space<vmem>>, vector<2x18xbf16>
    %c0_1 = arith.constant 0 : index
    %c0_2 = arith.constant 0 : index
    %1 = vector.load %arg2[%c0_1, %c0_2] : memref<18x512xbf16, #tpu.memory_space<vmem>>, vector<18x512xbf16>
    %cst = arith.constant dense<0.000000e+00> : vector<2x512xf32>
    %2 = tpu.matmul %0, %1, %cst {dimension_numbers = #tpu.dot_dimension_numbers<[1], [0], [0], [1], [0, 0, 1, 1], [], []>} : vector<2x18xbf16>, vector<18x512xbf16>, vector<2x512xf32> -> vector<2x512xf32>
    %c0_3 = arith.constant 0 : index
    %c0_4 = arith.constant 0 : index
    %3 = vector.load %arg3[%c0_3, %c0_4] : memref<2x512xbf16, #tpu.memory_space<vmem>>, vector<2x512xbf16>
    %4 = arith.extf %3 : vector<2x512xbf16> to vector<2x512xf32>
    %5 = arith.addf %2, %4 : vector<2x512xf32>
    %cst_5 = arith.constant 0.000000e+00 : f32
    %6 = vector.broadcast %cst_5 : f32 to vector<2x512xf32>
    %7 = arith.cmpf oge, %5, %6 : vector<2x512xf32>
    %c0_6 = arith.constant 0 : index
    %c0_7 = arith.constant 0 : index
    %8 = vector.load %arg4[%c0_6, %c0_7] : memref<2x1xf32, #tpu.memory_space<vmem>>, vector<2x1xf32>
    %9 = vector.broadcast %8 : vector<2x1xf32> to vector<2x512xf32>
    %10 = arith.mulf %5, %9 : vector<2x512xf32>
    %11 = arith.select %7, %5, %10 : vector<2x512xi1>, vector<2x512xf32>
    %12 = arith.truncf %11 : vector<2x512xf32> to vector<2x512xbf16>
    %c0_8 = arith.constant 0 : index
    %c0_9 = arith.constant 0 : index
    %13 = vector.load %arg5[%c0_8, %c0_9] : memref<2x512xbf16, #tpu.memory_space<vmem>>, vector<2x512xbf16>
    tpu.vector_store %arg5[%c0_8, %c0_9], %12 {strides = array<i32>} : memref<2x512xbf16, #tpu.memory_space<vmem>>, vector<2x512xbf16>,
    return
  }
  func.func @transform_0(%arg0: i32) -> (i32, i32) {
    %c0_i32 = arith.constant 0 : i32
    %c0_i32_0 = arith.constant 0 : i32
    %c0_i32_1 = arith.constant 0 : i32
    return %c0_i32, %c0_i32_0 : i32, i32
  }
  func.func @transform_1(%arg0: i32) -> (i32, i32) {
    %c0_i32 = arith.constant 0 : i32
    %c0_i32_0 = arith.constant 0 : i32
    return %c0_i32, %arg0 : i32, i32
  }
  func.func @transform_2(%arg0: i32) -> (i32, i32) {
    %c0_i32 = arith.constant 0 : i32
    %c0_i32_0 = arith.constant 0 : i32
    return %c0_i32, %arg0 : i32, i32
  }
  func.func @transform_3(%arg0: i32) -> (i32, i32) {
    %c0_i32 = arith.constant 0 : i32
    %c0_i32_0 = arith.constant 0 : i32
    %c0_i32_1 = arith.constant 0 : i32
    return %c0_i32, %c0_i32_0 : i32, i32
  }
  func.func @transform_4(%arg0: i32) -> (i32, i32) {
    %c0_i32 = arith.constant 0 : i32
    %c0_i32_0 = arith.constant 0 : i32
    return %c0_i32, %arg0 : i32, i32
  }
}

module attributes {stable_mosaic.version = 11 : i64} {
  func.func @_mm_bias_prelu_kernel(%arg0: i32, %arg1: memref<4x18xbf16, #tpu.memory_space<vmem>>, %arg2: memref<18x512xbf16, #tpu.memory_space<vmem>>, %arg3: memref<4x1xf32, #tpu.memory_space<vmem>>, %arg4: memref<4x1xf32, #tpu.memory_space<vmem>>, %arg5: memref<4x512xbf16, #tpu.memory_space<vmem>>) attributes {dimension_semantics = [#tpu.dimension_semantics<parallel>], iteration_bounds = array<i64: 4>, scalar_prefetch = 0 : i64, scratch_operands = 0 : i64, tpu.core_type = #tpu.core_type<tc>, window_params = [{pipeline_mode = #tpu.pipeline_mode<synchronous>, transform_indices = @transform_0, window_bounds = array<i64: 4, 18>}, {transform_indices = @transform_1, window_bounds = array<i64: 18, 512>}, {pipeline_mode = #tpu.pipeline_mode<synchronous>, transform_indices = @transform_2, window_bounds = array<i64: 4, 1>}, {pipeline_mode = #tpu.pipeline_mode<synchronous>, transform_indices = @transform_3, window_bounds = array<i64: 4, 1>}, {transform_indices = @transform_4, window_bounds = array<i64: 4, 512>}]} {
    %c0 = arith.constant 0 : index
    %c0_0 = arith.constant 0 : index
    %0 = vector.load %arg1[%c0, %c0_0] : memref<4x18xbf16, #tpu.memory_space<vmem>>, vector<4x18xbf16>
    %c0_1 = arith.constant 0 : index
    %c0_2 = arith.constant 0 : index
    %1 = vector.load %arg2[%c0_1, %c0_2] : memref<18x512xbf16, #tpu.memory_space<vmem>>, vector<18x512xbf16>
    %cst = arith.constant dense<0.000000e+00> : vector<4x512xf32>
    %2 = tpu.matmul %0, %1, %cst {dimension_numbers = #tpu.dot_dimension_numbers<[1], [0], [0], [1], [0, 0, 1, 1], [], []>} : vector<4x18xbf16>, vector<18x512xbf16>, vector<4x512xf32> -> vector<4x512xf32>
    %c0_3 = arith.constant 0 : index
    %c0_4 = arith.constant 0 : index
    %3 = vector.load %arg3[%c0_3, %c0_4] : memref<4x1xf32, #tpu.memory_space<vmem>>, vector<4x1xf32>
    %4 = vector.broadcast %3 : vector<4x1xf32> to vector<4x512xf32>
    %5 = arith.addf %2, %4 : vector<4x512xf32>
    %cst_5 = arith.constant 0.000000e+00 : f32
    %6 = vector.broadcast %cst_5 : f32 to vector<4x512xf32>
    %7 = arith.cmpf oge, %5, %6 : vector<4x512xf32>
    %c0_6 = arith.constant 0 : index
    %c0_7 = arith.constant 0 : index
    %8 = vector.load %arg4[%c0_6, %c0_7] : memref<4x1xf32, #tpu.memory_space<vmem>>, vector<4x1xf32>
    %9 = vector.broadcast %8 : vector<4x1xf32> to vector<4x512xf32>
    %10 = arith.mulf %5, %9 : vector<4x512xf32>
    %11 = arith.select %7, %5, %10 : vector<4x512xi1>, vector<4x512xf32>
    %12 = arith.truncf %11 : vector<4x512xf32> to vector<4x512xbf16>
    %c0_8 = arith.constant 0 : index
    %c0_9 = arith.constant 0 : index
    %13 = vector.load %arg5[%c0_8, %c0_9] : memref<4x512xbf16, #tpu.memory_space<vmem>>, vector<4x512xbf16>
    tpu.vector_store %arg5[%c0_8, %c0_9], %12 {strides = array<i32>} : memref<4x512xbf16, #tpu.memory_space<vmem>>, vector<4x512xbf16>,
    return
  }
  func.func @transform_0(%arg0: i32) -> (i32, i32) {
    %c0_i32 = arith.constant 0 : i32
    %c0_i32_0 = arith.constant 0 : i32
    %c0_i32_1 = arith.constant 0 : i32
    return %c0_i32, %c0_i32_0 : i32, i32
  }
  func.func @transform_1(%arg0: i32) -> (i32, i32) {
    %c0_i32 = arith.constant 0 : i32
    %c0_i32_0 = arith.constant 0 : i32
    return %c0_i32, %arg0 : i32, i32
  }
  func.func @transform_2(%arg0: i32) -> (i32, i32) {
    %c0_i32 = arith.constant 0 : i32
    %c0_i32_0 = arith.constant 0 : i32
    %c0_i32_1 = arith.constant 0 : i32
    return %c0_i32, %c0_i32_0 : i32, i32
  }
  func.func @transform_3(%arg0: i32) -> (i32, i32) {
    %c0_i32 = arith.constant 0 : i32
    %c0_i32_0 = arith.constant 0 : i32
    %c0_i32_1 = arith.constant 0 : i32
    return %c0_i32, %c0_i32_0 : i32, i32
  }
  func.func @transform_4(%arg0: i32) -> (i32, i32) {
    %c0_i32 = arith.constant 0 : i32
    %c0_i32_0 = arith.constant 0 : i32
    return %c0_i32, %arg0 : i32, i32
  }
}

module attributes {stable_mosaic.version = 11 : i64} {
  func.func @_mm_bias_prelu_kernel(%arg0: i32, %arg1: memref<8x36xbf16, #tpu.memory_space<vmem>>, %arg2: memref<36x512xbf16, #tpu.memory_space<vmem>>, %arg3: memref<8x1xf32, #tpu.memory_space<vmem>>, %arg4: memref<8x1xf32, #tpu.memory_space<vmem>>, %arg5: memref<8x512xbf16, #tpu.memory_space<vmem>>) attributes {dimension_semantics = [#tpu.dimension_semantics<parallel>], iteration_bounds = array<i64: 1>, scalar_prefetch = 0 : i64, scratch_operands = 0 : i64, tpu.core_type = #tpu.core_type<tc>, window_params = [{pipeline_mode = #tpu.pipeline_mode<synchronous>, transform_indices = @transform_0, window_bounds = array<i64: 8, 36>}, {transform_indices = @transform_1, window_bounds = array<i64: 36, 512>}, {pipeline_mode = #tpu.pipeline_mode<synchronous>, transform_indices = @transform_2, window_bounds = array<i64: 8, 1>}, {pipeline_mode = #tpu.pipeline_mode<synchronous>, transform_indices = @transform_3, window_bounds = array<i64: 8, 1>}, {transform_indices = @transform_4, window_bounds = array<i64: 8, 512>}]} {
    %c0 = arith.constant 0 : index
    %c0_0 = arith.constant 0 : index
    %0 = vector.load %arg1[%c0, %c0_0] : memref<8x36xbf16, #tpu.memory_space<vmem>>, vector<8x36xbf16>
    %c0_1 = arith.constant 0 : index
    %c0_2 = arith.constant 0 : index
    %1 = vector.load %arg2[%c0_1, %c0_2] : memref<36x512xbf16, #tpu.memory_space<vmem>>, vector<36x512xbf16>
    %cst = arith.constant dense<0.000000e+00> : vector<8x512xf32>
    %2 = tpu.matmul %0, %1, %cst {dimension_numbers = #tpu.dot_dimension_numbers<[1], [0], [0], [1], [0, 0, 1, 1], [], []>} : vector<8x36xbf16>, vector<36x512xbf16>, vector<8x512xf32> -> vector<8x512xf32>
    %c0_3 = arith.constant 0 : index
    %c0_4 = arith.constant 0 : index
    %3 = vector.load %arg3[%c0_3, %c0_4] : memref<8x1xf32, #tpu.memory_space<vmem>>, vector<8x1xf32>
    %4 = vector.broadcast %3 : vector<8x1xf32> to vector<8x512xf32>
    %5 = arith.addf %2, %4 : vector<8x512xf32>
    %cst_5 = arith.constant 0.000000e+00 : f32
    %6 = vector.broadcast %cst_5 : f32 to vector<8x512xf32>
    %7 = arith.cmpf oge, %5, %6 : vector<8x512xf32>
    %c0_6 = arith.constant 0 : index
    %c0_7 = arith.constant 0 : index
    %8 = vector.load %arg4[%c0_6, %c0_7] : memref<8x1xf32, #tpu.memory_space<vmem>>, vector<8x1xf32>
    %9 = vector.broadcast %8 : vector<8x1xf32> to vector<8x512xf32>
    %10 = arith.mulf %5, %9 : vector<8x512xf32>
    %11 = arith.select %7, %5, %10 : vector<8x512xi1>, vector<8x512xf32>
    %12 = arith.truncf %11 : vector<8x512xf32> to vector<8x512xbf16>
    %c0_8 = arith.constant 0 : index
    %c0_9 = arith.constant 0 : index
    %13 = vector.load %arg5[%c0_8, %c0_9] : memref<8x512xbf16, #tpu.memory_space<vmem>>, vector<8x512xbf16>
    tpu.vector_store %arg5[%c0_8, %c0_9], %12 {strides = array<i32>} : memref<8x512xbf16, #tpu.memory_space<vmem>>, vector<8x512xbf16>,
    return
  }
  func.func @transform_0(%arg0: i32) -> (i32, i32) {
    %c0_i32 = arith.constant 0 : i32
    %c0_i32_0 = arith.constant 0 : i32
    %c0_i32_1 = arith.constant 0 : i32
    return %c0_i32, %c0_i32_0 : i32, i32
  }
  func.func @transform_1(%arg0: i32) -> (i32, i32) {
    %c0_i32 = arith.constant 0 : i32
    %c0_i32_0 = arith.constant 0 : i32
    return %c0_i32, %arg0 : i32, i32
  }
  func.func @transform_2(%arg0: i32) -> (i32, i32) {
    %c0_i32 = arith.constant 0 : i32
    %c0_i32_0 = arith.constant 0 : i32
    %c0_i32_1 = arith.constant 0 : i32
    return %c0_i32, %c0_i32_0 : i32, i32
  }
  func.func @transform_3(%arg0: i32) -> (i32, i32) {
    %c0_i32 = arith.constant 0 : i32
    %c0_i32_0 = arith.constant 0 : i32
    %c0_i32_1 = arith.constant 0 : i32
    return %c0_i32, %c0_i32_0 : i32, i32
  }
  func.func @transform_4(%arg0: i32) -> (i32, i32) {
    %c0_i32 = arith.constant 0 : i32
    %c0_i32_0 = arith.constant 0 : i32
    return %c0_i32, %arg0 : i32, i32
  }
}

module attributes {stable_mosaic.version = 11 : i64} {
  func.func @_mm_bias_prelu_kernel(%arg0: i32, %arg1: memref<16x72xbf16, #tpu.memory_space<vmem>>, %arg2: memref<72x128xbf16, #tpu.memory_space<vmem>>, %arg3: memref<16x1xf32, #tpu.memory_space<vmem>>, %arg4: memref<16x1xf32, #tpu.memory_space<vmem>>, %arg5: memref<16x128xbf16, #tpu.memory_space<vmem>>) attributes {dimension_semantics = [#tpu.dimension_semantics<parallel>], iteration_bounds = array<i64: 1>, scalar_prefetch = 0 : i64, scratch_operands = 0 : i64, tpu.core_type = #tpu.core_type<tc>, window_params = [{pipeline_mode = #tpu.pipeline_mode<synchronous>, transform_indices = @transform_0, window_bounds = array<i64: 16, 72>}, {transform_indices = @transform_1, window_bounds = array<i64: 72, 128>}, {pipeline_mode = #tpu.pipeline_mode<synchronous>, transform_indices = @transform_2, window_bounds = array<i64: 16, 1>}, {pipeline_mode = #tpu.pipeline_mode<synchronous>, transform_indices = @transform_3, window_bounds = array<i64: 16, 1>}, {transform_indices = @transform_4, window_bounds = array<i64: 16, 128>}]} {
    %c0 = arith.constant 0 : index
    %c0_0 = arith.constant 0 : index
    %0 = vector.load %arg1[%c0, %c0_0] : memref<16x72xbf16, #tpu.memory_space<vmem>>, vector<16x72xbf16>
    %c0_1 = arith.constant 0 : index
    %c0_2 = arith.constant 0 : index
    %1 = vector.load %arg2[%c0_1, %c0_2] : memref<72x128xbf16, #tpu.memory_space<vmem>>, vector<72x128xbf16>
    %cst = arith.constant dense<0.000000e+00> : vector<16x128xf32>
    %2 = tpu.matmul %0, %1, %cst {dimension_numbers = #tpu.dot_dimension_numbers<[1], [0], [0], [1], [0, 0, 1, 1], [], []>} : vector<16x72xbf16>, vector<72x128xbf16>, vector<16x128xf32> -> vector<16x128xf32>
    %c0_3 = arith.constant 0 : index
    %c0_4 = arith.constant 0 : index
    %3 = vector.load %arg3[%c0_3, %c0_4] : memref<16x1xf32, #tpu.memory_space<vmem>>, vector<16x1xf32>
    %4 = vector.broadcast %3 : vector<16x1xf32> to vector<16x128xf32>
    %5 = arith.addf %2, %4 : vector<16x128xf32>
    %cst_5 = arith.constant 0.000000e+00 : f32
    %6 = vector.broadcast %cst_5 : f32 to vector<16x128xf32>
    %7 = arith.cmpf oge, %5, %6 : vector<16x128xf32>
    %c0_6 = arith.constant 0 : index
    %c0_7 = arith.constant 0 : index
    %8 = vector.load %arg4[%c0_6, %c0_7] : memref<16x1xf32, #tpu.memory_space<vmem>>, vector<16x1xf32>
    %9 = vector.broadcast %8 : vector<16x1xf32> to vector<16x128xf32>
    %10 = arith.mulf %5, %9 : vector<16x128xf32>
    %11 = arith.select %7, %5, %10 : vector<16x128xi1>, vector<16x128xf32>
    %12 = arith.truncf %11 : vector<16x128xf32> to vector<16x128xbf16>
    %c0_8 = arith.constant 0 : index
    %c0_9 = arith.constant 0 : index
    %13 = vector.load %arg5[%c0_8, %c0_9] : memref<16x128xbf16, #tpu.memory_space<vmem>>, vector<16x128xbf16>
    tpu.vector_store %arg5[%c0_8, %c0_9], %12 {strides = array<i32>} : memref<16x128xbf16, #tpu.memory_space<vmem>>, vector<16x128xbf16>,
    return
  }
  func.func @transform_0(%arg0: i32) -> (i32, i32) {
    %c0_i32 = arith.constant 0 : i32
    %c0_i32_0 = arith.constant 0 : i32
    %c0_i32_1 = arith.constant 0 : i32
    return %c0_i32, %c0_i32_0 : i32, i32
  }
  func.func @transform_1(%arg0: i32) -> (i32, i32) {
    %c0_i32 = arith.constant 0 : i32
    %c0_i32_0 = arith.constant 0 : i32
    return %c0_i32, %arg0 : i32, i32
  }
  func.func @transform_2(%arg0: i32) -> (i32, i32) {
    %c0_i32 = arith.constant 0 : i32
    %c0_i32_0 = arith.constant 0 : i32
    %c0_i32_1 = arith.constant 0 : i32
    return %c0_i32, %c0_i32_0 : i32, i32
  }
  func.func @transform_3(%arg0: i32) -> (i32, i32) {
    %c0_i32 = arith.constant 0 : i32
    %c0_i32_0 = arith.constant 0 : i32
    %c0_i32_1 = arith.constant 0 : i32
    return %c0_i32, %c0_i32_0 : i32, i32
  }
  func.func @transform_4(%arg0: i32) -> (i32, i32) {
    %c0_i32 = arith.constant 0 : i32
    %c0_i32_0 = arith.constant 0 : i32
    return %c0_i32, %arg0 : i32, i32
  }
}

module attributes {stable_mosaic.version = 11 : i64} {
  func.func @_mm_bias_prelu_kernel(%arg0: i32, %arg1: memref<32x144xbf16, #tpu.memory_space<vmem>>, %arg2: memref<144x32xbf16, #tpu.memory_space<vmem>>, %arg3: memref<32x1xf32, #tpu.memory_space<vmem>>, %arg4: memref<32x1xf32, #tpu.memory_space<vmem>>, %arg5: memref<32x32xbf16, #tpu.memory_space<vmem>>) attributes {dimension_semantics = [#tpu.dimension_semantics<parallel>], iteration_bounds = array<i64: 1>, scalar_prefetch = 0 : i64, scratch_operands = 0 : i64, tpu.core_type = #tpu.core_type<tc>, window_params = [{pipeline_mode = #tpu.pipeline_mode<synchronous>, transform_indices = @transform_0, window_bounds = array<i64: 32, 144>}, {transform_indices = @transform_1, window_bounds = array<i64: 144, 32>}, {pipeline_mode = #tpu.pipeline_mode<synchronous>, transform_indices = @transform_2, window_bounds = array<i64: 32, 1>}, {pipeline_mode = #tpu.pipeline_mode<synchronous>, transform_indices = @transform_3, window_bounds = array<i64: 32, 1>}, {transform_indices = @transform_4, window_bounds = array<i64: 32, 32>}]} {
    %c0 = arith.constant 0 : index
    %c0_0 = arith.constant 0 : index
    %0 = vector.load %arg1[%c0, %c0_0] : memref<32x144xbf16, #tpu.memory_space<vmem>>, vector<32x144xbf16>
    %c0_1 = arith.constant 0 : index
    %c0_2 = arith.constant 0 : index
    %1 = vector.load %arg2[%c0_1, %c0_2] : memref<144x32xbf16, #tpu.memory_space<vmem>>, vector<144x32xbf16>
    %cst = arith.constant dense<0.000000e+00> : vector<32x32xf32>
    %2 = tpu.matmul %0, %1, %cst {dimension_numbers = #tpu.dot_dimension_numbers<[1], [0], [0], [1], [0, 0, 1, 1], [], []>} : vector<32x144xbf16>, vector<144x32xbf16>, vector<32x32xf32> -> vector<32x32xf32>
    %c0_3 = arith.constant 0 : index
    %c0_4 = arith.constant 0 : index
    %3 = vector.load %arg3[%c0_3, %c0_4] : memref<32x1xf32, #tpu.memory_space<vmem>>, vector<32x1xf32>
    %4 = vector.broadcast %3 : vector<32x1xf32> to vector<32x32xf32>
    %5 = arith.addf %2, %4 : vector<32x32xf32>
    %cst_5 = arith.constant 0.000000e+00 : f32
    %6 = vector.broadcast %cst_5 : f32 to vector<32x32xf32>
    %7 = arith.cmpf oge, %5, %6 : vector<32x32xf32>
    %c0_6 = arith.constant 0 : index
    %c0_7 = arith.constant 0 : index
    %8 = vector.load %arg4[%c0_6, %c0_7] : memref<32x1xf32, #tpu.memory_space<vmem>>, vector<32x1xf32>
    %9 = vector.broadcast %8 : vector<32x1xf32> to vector<32x32xf32>
    %10 = arith.mulf %5, %9 : vector<32x32xf32>
    %11 = arith.select %7, %5, %10 : vector<32x32xi1>, vector<32x32xf32>
    %12 = arith.truncf %11 : vector<32x32xf32> to vector<32x32xbf16>
    %c0_8 = arith.constant 0 : index
    %c0_9 = arith.constant 0 : index
    %13 = vector.load %arg5[%c0_8, %c0_9] : memref<32x32xbf16, #tpu.memory_space<vmem>>, vector<32x32xbf16>
    tpu.vector_store %arg5[%c0_8, %c0_9], %12 {strides = array<i32>} : memref<32x32xbf16, #tpu.memory_space<vmem>>, vector<32x32xbf16>,
    return
  }
  func.func @transform_0(%arg0: i32) -> (i32, i32) {
    %c0_i32 = arith.constant 0 : i32
    %c0_i32_0 = arith.constant 0 : i32
    %c0_i32_1 = arith.constant 0 : i32
    return %c0_i32, %c0_i32_0 : i32, i32
  }
  func.func @transform_1(%arg0: i32) -> (i32, i32) {
    %c0_i32 = arith.constant 0 : i32
    %c0_i32_0 = arith.constant 0 : i32
    return %c0_i32, %arg0 : i32, i32
  }
  func.func @transform_2(%arg0: i32) -> (i32, i32) {
    %c0_i32 = arith.constant 0 : i32
    %c0_i32_0 = arith.constant 0 : i32
    %c0_i32_1 = arith.constant 0 : i32
    return %c0_i32, %c0_i32_0 : i32, i32
  }
  func.func @transform_3(%arg0: i32) -> (i32, i32) {
    %c0_i32 = arith.constant 0 : i32
    %c0_i32_0 = arith.constant 0 : i32
    %c0_i32_1 = arith.constant 0 : i32
    return %c0_i32, %c0_i32_0 : i32, i32
  }
  func.func @transform_4(%arg0: i32) -> (i32, i32) {
    %c0_i32 = arith.constant 0 : i32
    %c0_i32_0 = arith.constant 0 : i32
    return %c0_i32, %arg0 : i32, i32
  }
}

module attributes {stable_mosaic.version = 11 : i64} {
  func.func @_enc_tail_kernel(%arg0: memref<2x512xf32, #tpu.memory_space<vmem>>, %arg1: memref<2x512xf32, #tpu.memory_space<vmem>>, %arg2: memref<2x512xf32, #tpu.memory_space<vmem>>, %arg3: memref<1x512xf32, #tpu.memory_space<vmem>>, %arg4: memref<1x512xf32, #tpu.memory_space<vmem>>, %arg5: memref<1x512xf32, #tpu.memory_space<vmem>>, %arg6: memref<1x512xf32, #tpu.memory_space<vmem>>, %arg7: memref<2x512xbf16, #tpu.memory_space<vmem>>) attributes {dimension_semantics = [], scalar_prefetch = 0 : i64, scratch_operands = 0 : i64, tpu.core_type = #tpu.core_type<tc>} {
    %c0 = arith.constant 0 : index
    %c0_0 = arith.constant 0 : index
    %0 = vector.load %arg0[%c0, %c0_0] : memref<2x512xf32, #tpu.memory_space<vmem>>, vector<2x512xf32>
    %1 = arith.negf %0 : vector<2x512xf32>
    %2 = math.exp %1 : vector<2x512xf32>
    %cst = arith.constant 1.000000e+00 : f32
    %3 = vector.broadcast %cst : f32 to vector<2x512xf32>
    %4 = arith.addf %3, %2 : vector<2x512xf32>
    %5 = arith.divf %3, %4 : vector<2x512xf32>
    %c0_1 = arith.constant 0 : index
    %c0_2 = arith.constant 0 : index
    %6 = vector.load %arg3[%c0_1, %c0_2] : memref<1x512xf32, #tpu.memory_space<vmem>>, vector<1x512xf32>
    %7 = vector.broadcast %6 : vector<1x512xf32> to vector<2x512xf32>
    %8 = arith.mulf %5, %7 : vector<2x512xf32>
    %c0_3 = arith.constant 0 : index
    %c0_4 = arith.constant 0 : index
    %9 = vector.load %arg1[%c0_3, %c0_4] : memref<2x512xf32, #tpu.memory_space<vmem>>, vector<2x512xf32>
    %c0_5 = arith.constant 0 : index
    %c0_6 = arith.constant 0 : index
    %10 = vector.load %arg4[%c0_5, %c0_6] : memref<1x512xf32, #tpu.memory_space<vmem>>, vector<1x512xf32>
    %11 = vector.broadcast %10 : vector<1x512xf32> to vector<2x512xf32>
    %12 = arith.mulf %9, %11 : vector<2x512xf32>
    %13 = arith.addf %8, %12 : vector<2x512xf32>
    %c0_7 = arith.constant 0 : index
    %c0_8 = arith.constant 0 : index
    %14 = vector.load %arg2[%c0_7, %c0_8] : memref<2x512xf32, #tpu.memory_space<vmem>>, vector<2x512xf32>
    %c0_9 = arith.constant 0 : index
    %c0_10 = arith.constant 0 : index
    %15 = vector.load %arg5[%c0_9, %c0_10] : memref<1x512xf32, #tpu.memory_space<vmem>>, vector<1x512xf32>
    %16 = vector.broadcast %15 : vector<1x512xf32> to vector<2x512xf32>
    %17 = arith.mulf %14, %16 : vector<2x512xf32>
    %18 = arith.addf %13, %17 : vector<2x512xf32>
    %c0_11 = arith.constant 0 : index
    %c0_12 = arith.constant 0 : index
    %19 = vector.load %arg6[%c0_11, %c0_12] : memref<1x512xf32, #tpu.memory_space<vmem>>, vector<1x512xf32>
    %20 = vector.broadcast %19 : vector<1x512xf32> to vector<2x512xf32>
    %21 = arith.addf %18, %20 : vector<2x512xf32>
    %22 = arith.negf %21 : vector<2x512xf32>
    %23 = math.exp %22 : vector<2x512xf32>
    %cst_13 = arith.constant 1.000000e+00 : f32
    %24 = vector.broadcast %cst_13 : f32 to vector<2x512xf32>
    %25 = arith.addf %24, %23 : vector<2x512xf32>
    %26 = arith.divf %24, %25 : vector<2x512xf32>
    %27 = arith.truncf %26 : vector<2x512xf32> to vector<2x512xbf16>
    %c0_14 = arith.constant 0 : index
    %c0_15 = arith.constant 0 : index
    %28 = vector.load %arg7[%c0_14, %c0_15] : memref<2x512xbf16, #tpu.memory_space<vmem>>, vector<2x512xbf16>
    tpu.vector_store %arg7[%c0_14, %c0_15], %27 {strides = array<i32>} : memref<2x512xbf16, #tpu.memory_space<vmem>>, vector<2x512xbf16>,
    return
  }
}

</mosaic_0001>

<llo_original>
// kernel: encoder_forward.10
$region0: #{encoder_forward.10}
  #allocation0 [shape = 'u32[]', space=smem, size = 0x4, offset = 0x4, fixed_abs, tag = 'smem constant byte address 0x4 - core index']
  #allocation1 [shape = 'u32[144,128]{1,0:T(1,128)}', space=vmem, size = 0x12000, scoped, tag = 'internal scratch']
  %s0 = inlined_call_operand.vmem [shape: bf16[2,50], index: 0, kind: input, shape index: {}]
  %s1 = inlined_call_operand.vmem [shape: bf16[50,8192], index: 1, kind: input, shape index: {}]
  %s2 = inlined_call_operand.vmem [shape: f32[2,1], index: 2, kind: input, shape index: {}]
  %s3 = inlined_call_operand.vmem [shape: f32[2,1], index: 3, kind: input, shape index: {}]
  %s4 = inlined_call_operand.vmem [shape: bf16[2,8192], index: 4, kind: output, shape index: {}]
  %s5 = sld [smem:[#allocation0]]
  $region72: #{encoder_forward.10} parent=0
    _
  %s7 = ssub.s32 1, %s5
  %s8 = scalar_select 0, %s7, %s5
  $region1: #{encoder_forward.10} parent=0
    #allocation2 [shape = 'u8[114688]{0}', space=vmem, size = 0x1c000, scoped, tag = 'input window, operand 1']
    loop: start=0, step=1, limit=18
    $region2: #{encoder_forward.10} parent=1 // loop_pre_header
      _
    $region3: #{encoder_forward.10} parent=1 // loop_header
      %s10 = sphi 0, %s14
      %p11 = scmp.ge.s32.totalorder %s10, 18
      %s18 = sphi 0, %s18
      %s20 = sphi 0, %s18
      %s21 = sphi 0, %s20
      %s35 = sphi 0, %s21
      %s41 = sphi 0, %s43
      %s44 = sphi 0, %s41
      %s45 = sphi 0, %s44
      %s61 = sphi 0, %s45
      %s65 = sphi 0, %s65
      %s67 = sphi 0, %s65
      %s68 = sphi 0, %s67
      %s82 = sphi 0, %s68
      %s86 = sphi 0, %s86
      %s88 = sphi 0, %s86
      %s89 = sphi 0, %s88
      %s103 = sphi 0, %s89
      %s109 = sphi 0, %s111
      %s112 = sphi 0, %s109
      %s113 = sphi 0, %s112
      %s129 = sphi 0, %s113
    $region4: #{encoder_forward.10} parent=1 // loop_header_branch
      %13 = sbr.rel (%p11) target = $region8
    $region5: #{encoder_forward.10} parent=1 // loop_body
      %s15 = ssub.s32 %s10, 1
      %s16 = ssub.s32 %s10, 2
      %s17 = sadd.s32 %s10, 1
      %s19 = sadd.s32 %s18, 1
      %p22 = scmp.eq.s32.totalorder %s10, 15
      %p23 = scmp.ne.s32.totalorder %s18, %s20
      %p24 = scmp.eq.s32.totalorder %s10, 0
      %p25 = por %p23, %p24
      %p26 = scmp.ne.s32.totalorder %s18, %s20
      %p27 = scmp.eq.s32.totalorder %s15, 15
      %p28 = por %p26, %p27
      %p29 = scmp.ne.s32.totalorder %s20, %s21
      %p30 = scmp.eq.s32.totalorder %s15, 0
      %p31 = por %p29, %p30
      %p32 = scmp.ne.s32.totalorder %s20, %s21
      %p33 = scmp.eq.s32.totalorder %s16, 15
      %p34 = por %p32, %p33
      %p36 = scmp.ne.s32.totalorder %s21, %s35
      %p37 = scmp.eq.s32.totalorder %s16, 0
      %p38 = por %p36, %p37
      %s39 = ssub.s32 %s10, %s17
      %p40 = scmp.eq.s32.totalorder %s39, 0
      %s42 = sadd.s32 %s41, 1
      %s43 = scalar_select %p40, %s41, %s42
      %p46 = pneg %p40
      %p47 = scmp.eq.s32.totalorder %s10, 15
      %p48 = por %p46, %p47
      %p49 = scmp.ne.s32.totalorder %s41, %s44
      %p50 = scmp.eq.s32.totalorder %s10, 0
      %p51 = por %p49, %p50
      %p52 = scmp.ne.s32.totalorder %s41, %s44
      %p53 = scmp.eq.s32.totalorder %s15, 15
      %p54 = por %p52, %p53
      %p55 = scmp.ne.s32.totalorder %s44, %s45
      %p56 = scmp.eq.s32.totalorder %s15, 0
      %p57 = por %p55, %p56
      %p58 = scmp.ne.s32.totalorder %s44, %s45
      %p59 = scmp.eq.s32.totalorder %s16, 15
      %p60 = por %p58, %p59
      %p62 = scmp.ne.s32.totalorder %s45, %s61
      %p63 = scmp.eq.s32.totalorder %s16, 0
      %p64 = por %p62, %p63
      %s66 = sadd.s32 %s65, 1
      %p69 = scmp.eq.s32.totalorder %s10, 15
      %p70 = scmp.ne.s32.totalorder %s65, %s67
      %p71 = scmp.eq.s32.totalorder %s10, 0
      %p72 = por %p70, %p71
      %p73 = scmp.ne.s32.totalorder %s65, %s67
      %p74 = scmp.eq.s32.totalorder %s15, 15
      %p75 = por %p73, %p74
      %p76 = scmp.ne.s32.totalorder %s67, %s68
      %p77 = scmp.eq.s32.totalorder %s15, 0
      %p78 = por %p76, %p77
      %p79 = scmp.ne.s32.totalorder %s67, %s68
      %p80 = scmp.eq.s32.totalorder %s16, 15
      %p81 = por %p79, %p80
      %p83 = scmp.ne.s32.totalorder %s68, %s82
      %p84 = scmp.eq.s32.totalorder %s16, 0
      %p85 = por %p83, %p84
      %s87 = sadd.s32 %s86, 1
      %p90 = scmp.eq.s32.totalorder %s10, 15
      %p91 = scmp.ne.s32.totalorder %s86, %s88
      %p92 = scmp.eq.s32.totalorder %s10, 0
      %p93 = por %p91, %p92
      %p94 = scmp.ne.s32.totalorder %s86, %s88
      %p95 = scmp.eq.s32.totalorder %s15, 15
      %p96 = por %p94, %p95
      %p97 = scmp.ne.s32.totalorder %s88, %s89
      %p98 = scmp.eq.s32.totalorder %s15, 0
      %p99 = por %p97, %p98
      %p100 = scmp.ne.s32.totalorder %s88, %s89
      %p101 = scmp.eq.s32.totalorder %s16, 15
      %p102 = por %p100, %p101
      %p104 = scmp.ne.s32.totalorder %s89, %s103
      %p105 = scmp.eq.s32.totalorder %s16, 0
      %p106 = por %p104, %p105
      %s107 = ssub.s32 %s10, %s17
      %p108 = scmp.eq.s32.totalorder %s107, 0
      %s110 = sadd.s32 %s109, 1
      %s111 = scalar_select %p108, %s109, %s110
      %p114 = pneg %p108
      %p115 = scmp.eq.s32.totalorder %s10, 15
      %p116 = por %p114, %p115
      %p117 = scmp.ne.s32.totalorder %s109, %s112
      %p118 = scmp.eq.s32.totalorder %s10, 0
      %p119 = por %p117, %p118
      %p120 = scmp.ne.s32.totalorder %s109, %s112
      %p121 = scmp.eq.s32.totalorder %s15, 15
      %p122 = por %p120, %p121
      %p123 = scmp.ne.s32.totalorder %s112, %s113
      %p124 = scmp.eq.s32.totalorder %s15, 0
      %p125 = por %p123, %p124
      %p126 = scmp.ne.s32.totalorder %s112, %s113
      %p127 = scmp.eq.s32.totalorder %s16, 15
      %p128 = por %p126, %p127
      %p130 = scmp.ne.s32.totalorder %s113, %s129
      %p131 = scmp.eq.s32.totalorder %s16, 0
      %p132 = por %p130, %p131
      %p133 = scmp.le.s32.totalorder 1, %s10
      %p134 = scmp.lt.s32.totalorder %s10, 17
      %p135 = pnand %p133, %p134
      %p136 = pneg %p135
      // Predicated region
      $region9: #{encoder_forward.10} parent=5 // pred_check
        _
      $region10: #{encoder_forward.10} parent=5 // pred_check_branch
        %138 = sbr.rel (%p135) target = $region12
      $region11: #{encoder_forward.10} parent=5 // pred_region
        %s139 = ssub.s32 %s10, 1
        // Predicated region
        $region13: #{encoder_forward.10} parent=11 // pred_check
          %p140 = pneg %p31
        $region14: #{encoder_forward.10} parent=11 // pred_check_branch
          %142 = sbr.rel (%p140) target = $region16
        $region15: #{encoder_forward.10} parent=11 // pred_region
          _
        $region16: #{encoder_forward.10} parent=11 // pred_fallthru
          _
        // Predicated region
        $region17: #{encoder_forward.10} parent=11 // pred_check
          %p143 = pneg %p78
        $region18: #{encoder_forward.10} parent=11 // pred_check_branch
          %145 = sbr.rel (%p143) target = $region20
        $region19: #{encoder_forward.10} parent=11 // pred_region
          _
        $region20: #{encoder_forward.10} parent=11 // pred_fallthru
          _
        // Predicated region
        $region21: #{encoder_forward.10} parent=11 // pred_check
          %p146 = pneg %p99
        $region22: #{encoder_forward.10} parent=11 // pred_check_branch
          %148 = sbr.rel (%p146) target = $region24
        $region23: #{encoder_forward.10} parent=11 // pred_region
          _
        $region24: #{encoder_forward.10} parent=11 // pred_fallthru
          _
      $region12: #{encoder_forward.10} parent=5 // pred_fallthru
        _
      %p149 = scmp.lt.s32.totalorder %s10, 16
      // Predicated region
      $region25: #{encoder_forward.10} parent=5 // pred_check
        %p150 = pneg %p149
      $region26: #{encoder_forward.10} parent=5 // pred_check_branch
        %152 = sbr.rel (%p150) target = $region28
      $region27: #{encoder_forward.10} parent=5 // pred_region
        // Predicated region
        $region29: #{encoder_forward.10} parent=27 // pred_check
          %p153 = pneg %p51
        $region30: #{encoder_forward.10} parent=27 // pred_check_branch
          %155 = sbr.rel (%p153) target = $region32
        $region31: #{encoder_forward.10} parent=27 // pred_region
          %s156 = sand.u32 %s41, 1
          %s157 = sand.u32 %s41, 1
          %s158 = smul.addr %s157, 112
          %s159 = scalar_lea.vmem [#allocation2], %s158
          %s160 = smul.u32 4, %s10
          %s161 = smul.addr %s160, 4
          %s162 = scalar_lea.vmem %s1, %s161
          // Predicated region
          $region33: #{encoder_forward.10} parent=31 // pred_check
            _
          $region34: #{encoder_forward.10} parent=31 // pred_check_branch
            %164 = sbr.rel (0) target = $region36
          $region35: #{encoder_forward.10} parent=31 // pred_region
            // Predicated region
            $region37: #{encoder_forward.10} parent=35 // pred_check
              _
            $region38: #{encoder_forward.10} parent=35 // pred_check_branch
              %166 = sbr.rel (0) target = $region40
            $region39: #{encoder_forward.10} parent=35 // pred_region
              loop: start=0, step=1, limit=1
              $region41: #{encoder_forward.10} parent=39 // loop_pre_header
                _
              $region42: #{encoder_forward.10} parent=39 // loop_header
                %s168 = sphi 0, %s172
                %p169 = scmp.ge.s32.totalorder %s168, 1
                %s173 = sphi %s162, %s162
                %s174 = sphi %s159, %s159
              $region43: #{encoder_forward.10} parent=39 // loop_header_branch
                %171 = sbr.rel (%p169) target = $region47
              $region44: #{encoder_forward.10} parent=39 // loop_body
                %v175 = vld [vmem:[%s173] sm:$0xff]
                %176 = vst [vmem:[%s174] sm:$0xff] %v175
                %v177 = vld [vmem:[%s173 + $0x8] sm:$0xff]
                %178 = vst [vmem:[%s174 + $0x8] sm:$0xff] %v177
                %v179 = vld [vmem:[%s173 + $0x100] sm:$0xff]
                %180 = vst [vmem:[%s174 + $0x10] sm:$0xff] %v179
                %v181 = vld [vmem:[%s173 + $0x108] sm:$0xff]
                %182 = vst [vmem:[%s174 + $0x18] sm:$0xff] %v181
                %v183 = vld [vmem:[%s173 + $0x200] sm:$0xff]
                %184 = vst [vmem:[%s174 + $0x20] sm:$0xff] %v183
                %v185 = vld [vmem:[%s173 + $0x208] sm:$0xff]
                %186 = vst [vmem:[%s174 + $0x28] sm:$0xff] %v185
                %v187 = vld [vmem:[%s173 + $0x300] sm:$0xff]
                %188 = vst [vmem:[%s174 + $0x30] sm:$0xff] %v187
                %v189 = vld [vmem:[%s173 + $0x308] sm:$0xff]
                %190 = vst [vmem:[%s174 + $0x38] sm:$0xff] %v189
                %v191 = vld [vmem:[%s173 + $0x400] sm:$0xff]
                %192 = vst [vmem:[%s174 + $0x40] sm:$0xff] %v191
                %v193 = vld [vmem:[%s173 + $0x408] sm:$0xff]
                %194 = vst [vmem:[%s174 + $0x48] sm:$0xff] %v193
                %v195 = vld [vmem:[%s173 + $0x500] sm:$0xff]
                %196 = vst [vmem:[%s174 + $0x50] sm:$0xff] %v195
                %v197 = vld [vmem:[%s173 + $0x508] sm:$0xff]
                %198 = vst [vmem:[%s174 + $0x58] sm:$0xff] %v197
                %v199 = vld [vmem:[%s173 + $0x600] sm:$0xff]
                %200 = vst [vmem:[%s174 + $0x60] sm:$0xff] %v199
                %v201 = vld [vmem:[%s173 + $0x608] sm:$0xff]
                %202 = vst [vmem:[%s174 + $0x68] sm:$0xff] %v201
              $region45: #{encoder_forward.10} parent=39 // loop_footer
                %s172 = sadd.s32 1, %s168
              $region46: #{encoder_forward.10} parent=39 // loop_footer_branch
                %167 = sbr.rel target = $region42
              $region47: #{encoder_forward.10} parent=39 // loop_exit
                _
            $region40: #{encoder_forward.10} parent=35 // pred_fallthru
              _
            // Predicated region
            $region48: #{encoder_forward.10} parent=35 // pred_check
              _
            $region49: #{encoder_forward.10} parent=35 // pred_check_branch
              %204 = sbr.rel target = $region51
            $region50: #{encoder_forward.10} parent=35 // pred_region
              _
            $region51: #{encoder_forward.10} parent=35 // pred_fallthru
              _
          $region36: #{encoder_forward.10} parent=31 // pred_fallthru
            _
          %205 = vnop
        $region32: #{encoder_forward.10} parent=27 // pred_fallthru
          _
      $region28: #{encoder_forward.10} parent=5 // pred_fallthru
        _
      %p206 = scmp.le.s32.totalorder 1, %s10
      %p207 = scmp.lt.s32.totalorder %s10, 17
      %p208 = pnand %p206, %p207
      %p209 = pneg %p208
      // Predicated region
      $region52: #{encoder_forward.10} parent=5 // pred_check
        _
      $region53: #{encoder_forward.10} parent=5 // pred_check_branch
        %211 = sbr.rel (%p208) target = $region55
      $region54: #{encoder_forward.10} parent=5 // pred_region
        %s212 = ssub.s32 %s10, 1
        %s213 = sand.u32 %s44, 1
        %s214 = sand.u32 %s44, 1
        %s215 = smul.addr %s214, 112
        %s216 = scalar_lea.vmem [#allocation2], %s215
        // Predicated region
        $region56: #{encoder_forward.10} parent=54 // pred_check
          %p217 = pneg %p57
        $region57: #{encoder_forward.10} parent=54 // pred_check_branch
          %219 = sbr.rel (%p217) target = $region59
        $region58: #{encoder_forward.10} parent=54 // pred_region
          _
        $region59: #{encoder_forward.10} parent=54 // pred_fallthru
          _
        %p220 = pneg %p31
        %p221 = pneg %p28
        %s222 = sand.u32 %s44, 1
        %s223 = sand.u32 %s44, 1
        %s224 = smul.addr %s223, 112
        %s225 = scalar_lea.vmem [#allocation2], %s224
        %p226 = pneg %p57
        %p227 = pneg %p54
        %p228 = pneg %p78
        %p229 = pneg %p75
        %p230 = pneg %p99
        %p231 = pneg %p96
        %p232 = pneg %p125
        %p233 = pneg %p122
        %s234 = smul.u32 4, %s15
        %p235 = scmp.lt.s32.totalorder %s234, 63
        %s236 = scalar_select %p235, %s234, 63
        %s237 = scalar_lea.vmem %s4, %s236
        %s238 = smul.u32 4, %s15
        %s239 = smul.u32 4, %s15
        %p240 = scmp.lt.s32.totalorder %s239, 63
        %s241 = scalar_select %p240, %s239, 63
        %s242 = scalar_lea.vmem %s4, %s241
        %s243 = smul.u32 4, %s15
        %v245 = vld [vmem:[%s0] sm:$0x1]
        %v246 = vld [vmem:[%s216] sm:$0xff]
        %v247 = vld [vmem:[%s216 + $0x8] sm:$0xff]
        %v248 = vld [vmem:[%s216 + $0x10] sm:$0xff]
        %v249 = vld [vmem:[%s216 + $0x18] sm:$0xff]
        %v250 = vld [vmem:[%s216 + $0x20] sm:$0xff]
        %v251 = vld [vmem:[%s216 + $0x28] sm:$0xff]
        %v252 = vld [vmem:[%s216 + $0x30] sm:$0xff]
        %v253 = vld [vmem:[%s216 + $0x38] sm:$0xff]
        %v254 = vld [vmem:[%s216 + $0x40] sm:$0xff]
        %v255 = vld [vmem:[%s216 + $0x48] sm:$0xff]
        %v256 = vld [vmem:[%s216 + $0x50] sm:$0xff]
        %v257 = vld [vmem:[%s216 + $0x58] sm:$0xff]
        %v258 = vld [vmem:[%s216 + $0x60] sm:$0x11]
        %v259 = vld [vmem:[%s216 + $0x68] sm:$0x11]
        %v260 = vld [vmem:[%s2] sm:$0x3]
        %262 = vset.pattern.permute.xlu0 0
        %263 = vperm.xlu0 %262, %v260
        %v264 = vpop.permute.xlu0 %263
        %v280 = vunpack.c.l.b16 %v246
        %v281 = vunpack.c.h.b16 %v246
        %v282 = vunpack.c.l.b16 %v247
        %v283 = vunpack.c.h.b16 %v247
        %v284 = vunpack.c.l.b16 %v248
        %v285 = vunpack.c.h.b16 %v248
        %v286 = vunpack.c.l.b16 %v249
        %v287 = vunpack.c.h.b16 %v249
        %v288 = vunpack.c.l.b16 %v250
        %v289 = vunpack.c.h.b16 %v250
        %v290 = vunpack.c.l.b16 %v251
        %v291 = vunpack.c.h.b16 %v251
        %v292 = vunpack.c.l.b16 %v252
        %v293 = vunpack.c.h.b16 %v252
        %v294 = vunpack.c.l.b16 %v253
        %v295 = vunpack.c.h.b16 %v253
        %v296 = vunpack.c.l.b16 %v254
        %v297 = vunpack.c.h.b16 %v254
        %v298 = vunpack.c.l.b16 %v255
        %v299 = vunpack.c.h.b16 %v255
        %v300 = vunpack.c.l.b16 %v256
        %v301 = vunpack.c.h.b16 %v256
        %v302 = vunpack.c.l.b16 %v257
        %v303 = vunpack.c.h.b16 %v257
        %v304 = vunpack.c.l.b16 %v258
        %v305 = vunpack.c.h.b16 %v258
        %v306 = vunpack.c.l.b16 %v259
        %v307 = vunpack.c.h.b16 %v259
        %v308 = vpack.c.b16 %v284, %v280
        %v309 = vpack.c.b16 %v285, %v281
        %v310 = vpack.c.b16 %v286, %v282
        %v311 = vpack.c.b16 %v287, %v283
        %v312 = vpack.c.b16 %v292, %v288
        %v313 = vpack.c.b16 %v293, %v289
        %v314 = vpack.c.b16 %v294, %v290
        %v315 = vpack.c.b16 %v295, %v291
        %v316 = vpack.c.b16 %v300, %v296
        %v317 = vpack.c.b16 %v301, %v297
        %v318 = vpack.c.b16 %v302, %v298
        %v319 = vpack.c.b16 %v303, %v299
        %v320 = vpack.c.b16 %v304, %v304
        %v321 = vpack.c.b16 %v305, %v305
        %v322 = vpack.c.b16 %v306, %v306
        %v323 = vpack.c.b16 %v307, %v307
        %vm336 = vcmask 408576
        %v338 = vsel %vm336, %v245, 0
        %vm340 = vcmask 1040384
        %v342 = vsel %vm340, %v320, 0
        %v345 = vsel %vm340, %v321, 0
        %v348 = vsel %vm340, %v322, 0
        %v351 = vsel %vm340, %v323, 0
        %353 = vmatprep.subr.bf16.mxu0 0
        %354 = vmatpush1.bf16.msra.mxu0 0
        %355 = vmatprep.subr.bf16.mxu0 0
        %356 = vmatpush1.bf16.msra.mxu0 0
        %357 = vmatprep.subr.bf16.mxu0 0
        %358 = vmatpush1.bf16.msra.mxu0 0
        %359 = vmatprep.subr.bf16.mxu0 0
        %360 = vmatpush1.bf16.msra.mxu0 0
        %361 = vmatprep.subr.bf16.mxu0 %v345
        %362 = vmatpush1.bf16.msra.mxu0 %v342
        %363 = vmatprep.subr.bf16.mxu0 %v317
        %364 = vmatpush1.bf16.msra.mxu0 %v316
        %365 = vmatprep.subr.bf16.mxu0 %v313
        %366 = vmatpush1.bf16.msra.mxu0 %v312
        %367 = vmatprep.subr.bf16.mxu0 %v309
        %368 = vmatpush1.bf16.msra.mxu0 %v308
        %369 = vmatprep.subr.bf16.mxu0 0
        %370 = vmatpush2.bf16.msra.mxu0 0
        %371 = vmatprep.subr.bf16.mxu0 0
        %372 = vmatpush2.bf16.msra.mxu0 0
        %373 = vmatprep.subr.bf16.mxu0 0
        %374 = vmatpush2.bf16.msra.mxu0 0
        %375 = vmatprep.subr.bf16.mxu0 0
        %376 = vmatpush2.bf16.msra.mxu0 0
        %377 = vmatprep.subr.bf16.mxu0 0
        %378 = vmatpush2.bf16.msra.mxu0 0
        %379 = vmatprep.subr.bf16.mxu0 0
        %380 = vmatpush2.bf16.msra.mxu0 0
        %381 = vmatprep.subr.bf16.mxu0 0
        %382 = vmatpush2.bf16.msra.mxu0 0
        %383 = vmatprep.subr.bf16.mxu0 0
        %384 = vmatpush2.bf16.msra.mxu0 0
        %385 = vmatprep.mubr.bf16.mxu0 0
        %386 = vmatmul.mubr.bf16.gmra.mxu0 %v338
        %v387 = vpop.f32.mrf.mxu0
        %v388 = vadd.f32 %v264, %v387
        %v389 = vpop.f32.mrf.mxu0
        %v390 = vadd.f32 %v264, %v389
        %v391 = vpop.f32.mrf.mxu0
        %v392 = vpop.f32.mrf.mxu0
        %393 = vdwg.mxu0
        %394 = vmatprep.subr.bf16.mxu0 0
        %395 = vmatpush1.bf16.msra.mxu0 0
        %396 = vmatprep.subr.bf16.mxu0 0
        %397 = vmatpush1.bf16.msra.mxu0 0
        %398 = vmatprep.subr.bf16.mxu0 0
        %399 = vmatpush1.bf16.msra.mxu0 0
        %400 = vmatprep.subr.bf16.mxu0 0
        %401 = vmatpush1.bf16.msra.mxu0 0
        %402 = vmatprep.subr.bf16.mxu0 %v351
        %403 = vmatpush1.bf16.msra.mxu0 %v348
        %404 = vmatprep.subr.bf16.mxu0 %v319
        %405 = vmatpush1.bf16.msra.mxu0 %v318
        %406 = vmatprep.subr.bf16.mxu0 %v315
        %407 = vmatpush1.bf16.msra.mxu0 %v314
        %408 = vmatprep.subr.bf16.mxu0 %v311
        %409 = vmatpush1.bf16.msra.mxu0 %v310
        %410 = vmatprep.subr.bf16.mxu0 0
        %411 = vmatpush2.bf16.msra.mxu0 0
        %412 = vmatprep.subr.bf16.mxu0 0
        %413 = vmatpush2.bf16.msra.mxu0 0
        %414 = vmatprep.subr.bf16.mxu0 0
        %415 = vmatpush2.bf16.msra.mxu0 0
        %416 = vmatprep.subr.bf16.mxu0 0
        %417 = vmatpush2.bf16.msra.mxu0 0
        %418 = vmatprep.subr.bf16.mxu0 0
        %419 = vmatpush2.bf16.msra.mxu0 0
        %420 = vmatprep.subr.bf16.mxu0 0
        %421 = vmatpush2.bf16.msra.mxu0 0
        %422 = vmatprep.subr.bf16.mxu0 0
        %423 = vmatpush2.bf16.msra.mxu0 0
        %424 = vmatprep.subr.bf16.mxu0 0
        %425 = vmatpush2.bf16.msra.mxu0 0
        %426 = vmatprep.mubr.bf16.mxu0 0
        %427 = vmatmul.mubr.bf16.gmra.mxu0 %v338
        %v428 = vpop.f32.mrf.mxu0
        %v429 = vadd.f32 %v264, %v428
        %v430 = vpop.f32.mrf.mxu0
        %v431 = vadd.f32 %v264, %v430
        %v432 = vpop.f32.mrf.mxu0
        %v433 = vpop.f32.mrf.mxu0
        %434 = vdwg.mxu0
        %vm435 = vcmp.ge.f32.partialorder %v388, 0.0
        %vm436 = vcmp.ge.f32.partialorder %v390, 0.0
        %vm437 = vcmp.ge.f32.partialorder %v429, 0.0
        %vm438 = vcmp.ge.f32.partialorder %v431, 0.0
        %v439 = vld [vmem:[%s3] sm:$0x3]
        %441 = vset.pattern.permute.xlu0 0
        %442 = vperm.xlu0 %441, %v439
        %v443 = vpop.permute.xlu0 %442
        %v445 = vmul.f32 %v388, %v443
        %v446 = vmul.f32 %v390, %v443
        %v447 = vmul.f32 %v429, %v443
        %v448 = vmul.f32 %v431, %v443
        %v449 = vsel %vm435, %v388, %v445
        %v450 = vsel %vm436, %v390, %v446
        %v451 = vsel %vm437, %v429, %v447
        %v452 = vsel %vm438, %v431, %v448
        %v453 = vpack.c.bf16 %v449, %v449
        %v454 = vpack.c.bf16 %v450, %v450
        %v455 = vpack.c.bf16 %v451, %v451
        %v456 = vpack.c.bf16 %v452, %v452
        %v461 = vcombine.low %v453, %v454
        %v462 = vcombine.low %v455, %v456
        %v464 = vunpack.c.l.s4 1966171168
        %v465 = vunpack.c.0.s8 %v464
        %v466 = vlaneseq
        %v467 = vshrl.u32 %v466, 7
        %v468 = vsub.s32 %v465, %v467
        %v469 = vrot.slane %v461, %v468
        %v471 = vunpack.c.l.s4 1966171168
        %v472 = vunpack.c.0.s8 %v471
        %v473 = vlaneseq
        %v474 = vshrl.u32 %v473, 7
        %v475 = vsub.s32 %v472, %v474
        %v476 = vrot.slane %v462, %v475
        %v477 = vcombine.low %v469, %v476
        %v479 = vunpack.c.l.s4 1966171168
        %v480 = vunpack.c.0.s8 %v479
        %v481 = vlaneseq
        %v482 = vshrl.u32 %v481, 7
        %v483 = vsub.s32 %v480, %v482
        %v484 = vrot.slane %v477, %v483
        %486 = vst [vmem:[%s242] sm:$0xf] %v484
        %s487 = smul.u32 4, %s15
        %p488 = scmp.lt.s32.totalorder %s487, 63
        %s489 = scalar_select %p488, %s487, 63
        %s490 = scalar_lea.vmem %s4, %s489
        // Predicated region
        $region60: #{encoder_forward.10} parent=54 // pred_check
          %p491 = pneg %p122
        $region61: #{encoder_forward.10} parent=54 // pred_check_branch
          %493 = sbr.rel (%p491) target = $region63
        $region62: #{encoder_forward.10} parent=54 // pred_region
          %s494 = smul.u32 4, %s15
        $region63: #{encoder_forward.10} parent=54 // pred_fallthru
          _
      $region55: #{encoder_forward.10} parent=5 // pred_fallthru
        _
      %p495 = scmp.le.s32.totalorder 2, %s10
      // Predicated region
      $region64: #{encoder_forward.10} parent=5 // pred_check
        %p496 = pneg %p495
      $region65: #{encoder_forward.10} parent=5 // pred_check_branch
        %498 = sbr.rel (%p496) target = $region67
      $region66: #{encoder_forward.10} parent=5 // pred_region
        %s499 = ssub.s32 %s10, 2
        // Predicated region
        $region68: #{encoder_forward.10} parent=66 // pred_check
          %p500 = pneg %p128
        $region69: #{encoder_forward.10} parent=66 // pred_check_branch
          %502 = sbr.rel (%p500) target = $region71
        $region70: #{encoder_forward.10} parent=66 // pred_region
          %s503 = smul.u32 4, %s16
          %p504 = scmp.lt.s32.totalorder %s503, 63
          %s505 = scalar_select %p504, %s503, 63
          %s506 = scalar_lea.vmem %s4, %s505
        $region71: #{encoder_forward.10} parent=66 // pred_fallthru
          _
      $region67: #{encoder_forward.10} parent=5 // pred_fallthru
        _
    $region6: #{encoder_forward.10} parent=1 // loop_footer
      %s14 = sadd.s32 1, %s10
    $region7: #{encoder_forward.10} parent=1 // loop_footer_branch
      %9 = sbr.rel target = $region3
    $region8: #{encoder_forward.10} parent=1 // loop_exit
      _

// kernel: encoder_forward.11
$region0: #{encoder_forward.11}
  #allocation0 [shape = 'u32[]', space=smem, size = 0x4, offset = 0x4, fixed_abs, tag = 'smem constant byte address 0x4 - core index']
  #allocation1 [shape = 'u32[144,128]{1,0:T(1,128)}', space=vmem, size = 0x12000, scoped, tag = 'internal scratch']
  %s0 = inlined_call_operand.vmem [shape: bf16[2,18], index: 0, kind: input, shape index: {}]
  %s1 = inlined_call_operand.vmem [shape: bf16[18,8192], index: 1, kind: input, shape index: {}]
  %s2 = inlined_call_operand.vmem [shape: f32[2,1], index: 2, kind: input, shape index: {}]
  %s3 = inlined_call_operand.vmem [shape: f32[2,1], index: 3, kind: input, shape index: {}]
  %s4 = inlined_call_operand.vmem [shape: bf16[2,8192], index: 4, kind: output, shape index: {}]
  %s5 = sld [smem:[#allocation0]]
  $region72: #{encoder_forward.11} parent=0
    _
  %s7 = ssub.s32 1, %s5
  %s8 = scalar_select 0, %s7, %s5
  $region1: #{encoder_forward.11} parent=0
    #allocation2 [shape = 'u8[49152]{0}', space=vmem, size = 0xc000, scoped, tag = 'input window, operand 1']
    loop: start=0, step=1, limit=18
    $region2: #{encoder_forward.11} parent=1 // loop_pre_header
      _
    $region3: #{encoder_forward.11} parent=1 // loop_header
      %s10 = sphi 0, %s14
      %p11 = scmp.ge.s32.totalorder %s10, 18
      %s18 = sphi 0, %s18
      %s20 = sphi 0, %s18
      %s21 = sphi 0, %s20
      %s35 = sphi 0, %s21
      %s41 = sphi 0, %s43
      %s44 = sphi 0, %s41
      %s45 = sphi 0, %s44
      %s61 = sphi 0, %s45
      %s65 = sphi 0, %s65
      %s67 = sphi 0, %s65
      %s68 = sphi 0, %s67
      %s82 = sphi 0, %s68
      %s86 = sphi 0, %s86
      %s88 = sphi 0, %s86
      %s89 = sphi 0, %s88
      %s103 = sphi 0, %s89
      %s109 = sphi 0, %s111
      %s112 = sphi 0, %s109
      %s113 = sphi 0, %s112
      %s129 = sphi 0, %s113
    $region4: #{encoder_forward.11} parent=1 // loop_header_branch
      %13 = sbr.rel (%p11) target = $region8
    $region5: #{encoder_forward.11} parent=1 // loop_body
      %s15 = ssub.s32 %s10, 1
      %s16 = ssub.s32 %s10, 2
      %s17 = sadd.s32 %s10, 1
      %s19 = sadd.s32 %s18, 1
      %p22 = scmp.eq.s32.totalorder %s10, 15
      %p23 = scmp.ne.s32.totalorder %s18, %s20
      %p24 = scmp.eq.s32.totalorder %s10, 0
      %p25 = por %p23, %p24
      %p26 = scmp.ne.s32.totalorder %s18, %s20
      %p27 = scmp.eq.s32.totalorder %s15, 15
      %p28 = por %p26, %p27
      %p29 = scmp.ne.s32.totalorder %s20, %s21
      %p30 = scmp.eq.s32.totalorder %s15, 0
      %p31 = por %p29, %p30
      %p32 = scmp.ne.s32.totalorder %s20, %s21
      %p33 = scmp.eq.s32.totalorder %s16, 15
      %p34 = por %p32, %p33
      %p36 = scmp.ne.s32.totalorder %s21, %s35
      %p37 = scmp.eq.s32.totalorder %s16, 0
      %p38 = por %p36, %p37
      %s39 = ssub.s32 %s10, %s17
      %p40 = scmp.eq.s32.totalorder %s39, 0
      %s42 = sadd.s32 %s41, 1
      %s43 = scalar_select %p40, %s41, %s42
      %p46 = pneg %p40
      %p47 = scmp.eq.s32.totalorder %s10, 15
      %p48 = por %p46, %p47
      %p49 = scmp.ne.s32.totalorder %s41, %s44
      %p50 = scmp.eq.s32.totalorder %s10, 0
      %p51 = por %p49, %p50
      %p52 = scmp.ne.s32.totalorder %s41, %s44
      %p53 = scmp.eq.s32.totalorder %s15, 15
      %p54 = por %p52, %p53
      %p55 = scmp.ne.s32.totalorder %s44, %s45
      %p56 = scmp.eq.s32.totalorder %s15, 0
      %p57 = por %p55, %p56
      %p58 = scmp.ne.s32.totalorder %s44, %s45
      %p59 = scmp.eq.s32.totalorder %s16, 15
      %p60 = por %p58, %p59
      %p62 = scmp.ne.s32.totalorder %s45, %s61
      %p63 = scmp.eq.s32.totalorder %s16, 0
      %p64 = por %p62, %p63
      %s66 = sadd.s32 %s65, 1
      %p69 = scmp.eq.s32.totalorder %s10, 15
      %p70 = scmp.ne.s32.totalorder %s65, %s67
      %p71 = scmp.eq.s32.totalorder %s10, 0
      %p72 = por %p70, %p71
      %p73 = scmp.ne.s32.totalorder %s65, %s67
      %p74 = scmp.eq.s32.totalorder %s15, 15
      %p75 = por %p73, %p74
      %p76 = scmp.ne.s32.totalorder %s67, %s68
      %p77 = scmp.eq.s32.totalorder %s15, 0
      %p78 = por %p76, %p77
      %p79 = scmp.ne.s32.totalorder %s67, %s68
      %p80 = scmp.eq.s32.totalorder %s16, 15
      %p81 = por %p79, %p80
      %p83 = scmp.ne.s32.totalorder %s68, %s82
      %p84 = scmp.eq.s32.totalorder %s16, 0
      %p85 = por %p83, %p84
      %s87 = sadd.s32 %s86, 1
      %p90 = scmp.eq.s32.totalorder %s10, 15
      %p91 = scmp.ne.s32.totalorder %s86, %s88
      %p92 = scmp.eq.s32.totalorder %s10, 0
      %p93 = por %p91, %p92
      %p94 = scmp.ne.s32.totalorder %s86, %s88
      %p95 = scmp.eq.s32.totalorder %s15, 15
      %p96 = por %p94, %p95
      %p97 = scmp.ne.s32.totalorder %s88, %s89
      %p98 = scmp.eq.s32.totalorder %s15, 0
      %p99 = por %p97, %p98
      %p100 = scmp.ne.s32.totalorder %s88, %s89
      %p101 = scmp.eq.s32.totalorder %s16, 15
      %p102 = por %p100, %p101
      %p104 = scmp.ne.s32.totalorder %s89, %s103
      %p105 = scmp.eq.s32.totalorder %s16, 0
      %p106 = por %p104, %p105
      %s107 = ssub.s32 %s10, %s17
      %p108 = scmp.eq.s32.totalorder %s107, 0
      %s110 = sadd.s32 %s109, 1
      %s111 = scalar_select %p108, %s109, %s110
      %p114 = pneg %p108
      %p115 = scmp.eq.s32.totalorder %s10, 15
      %p116 = por %p114, %p115
      %p117 = scmp.ne.s32.totalorder %s109, %s112
      %p118 = scmp.eq.s32.totalorder %s10, 0
      %p119 = por %p117, %p118
      %p120 = scmp.ne.s32.totalorder %s109, %s112
      %p121 = scmp.eq.s32.totalorder %s15, 15
      %p122 = por %p120, %p121
      %p123 = scmp.ne.s32.totalorder %s112, %s113
      %p124 = scmp.eq.s32.totalorder %s15, 0
      %p125 = por %p123, %p124
      %p126 = scmp.ne.s32.totalorder %s112, %s113
      %p127 = scmp.eq.s32.totalorder %s16, 15
      %p128 = por %p126, %p127
      %p130 = scmp.ne.s32.totalorder %s113, %s129
      %p131 = scmp.eq.s32.totalorder %s16, 0
      %p132 = por %p130, %p131
      %p133 = scmp.le.s32.totalorder 1, %s10
      %p134 = scmp.lt.s32.totalorder %s10, 17
      %p135 = pnand %p133, %p134
      %p136 = pneg %p135
      // Predicated region
      $region9: #{encoder_forward.11} parent=5 // pred_check
        _
      $region10: #{encoder_forward.11} parent=5 // pred_check_branch
        %138 = sbr.rel (%p135) target = $region12
      $region11: #{encoder_forward.11} parent=5 // pred_region
        %s139 = ssub.s32 %s10, 1
        // Predicated region
        $region13: #{encoder_forward.11} parent=11 // pred_check
          %p140 = pneg %p31
        $region14: #{encoder_forward.11} parent=11 // pred_check_branch
          %142 = sbr.rel (%p140) target = $region16
        $region15: #{encoder_forward.11} parent=11 // pred_region
          _
        $region16: #{encoder_forward.11} parent=11 // pred_fallthru
          _
        // Predicated region
        $region17: #{encoder_forward.11} parent=11 // pred_check
          %p143 = pneg %p78
        $region18: #{encoder_forward.11} parent=11 // pred_check_branch
          %145 = sbr.rel (%p143) target = $region20
        $region19: #{encoder_forward.11} parent=11 // pred_region
          _
        $region20: #{encoder_forward.11} parent=11 // pred_fallthru
          _
        // Predicated region
        $region21: #{encoder_forward.11} parent=11 // pred_check
          %p146 = pneg %p99
        $region22: #{encoder_forward.11} parent=11 // pred_check_branch
          %148 = sbr.rel (%p146) target = $region24
        $region23: #{encoder_forward.11} parent=11 // pred_region
          _
        $region24: #{encoder_forward.11} parent=11 // pred_fallthru
          _
      $region12: #{encoder_forward.11} parent=5 // pred_fallthru
        _
      %p149 = scmp.lt.s32.totalorder %s10, 16
      // Predicated region
      $region25: #{encoder_forward.11} parent=5 // pred_check
        %p150 = pneg %p149
      $region26: #{encoder_forward.11} parent=5 // pred_check_branch
        %152 = sbr.rel (%p150) target = $region28
      $region27: #{encoder_forward.11} parent=5 // pred_region
        // Predicated region
        $region29: #{encoder_forward.11} parent=27 // pred_check
          %p153 = pneg %p51
        $region30: #{encoder_forward.11} parent=27 // pred_check_branch
          %155 = sbr.rel (%p153) target = $region32
        $region31: #{encoder_forward.11} parent=27 // pred_region
          %s156 = sand.u32 %s41, 1
          %s157 = sand.u32 %s41, 1
          %s158 = smul.addr %s157, 48
          %s159 = scalar_lea.vmem [#allocation2], %s158
          %s160 = smul.u32 4, %s10
          %s161 = smul.addr %s160, 4
          %s162 = scalar_lea.vmem %s1, %s161
          // Predicated region
          $region33: #{encoder_forward.11} parent=31 // pred_check
            _
          $region34: #{encoder_forward.11} parent=31 // pred_check_branch
            %164 = sbr.rel (0) target = $region36
          $region35: #{encoder_forward.11} parent=31 // pred_region
            // Predicated region
            $region37: #{encoder_forward.11} parent=35 // pred_check
              _
            $region38: #{encoder_forward.11} parent=35 // pred_check_branch
              %166 = sbr.rel (0) target = $region40
            $region39: #{encoder_forward.11} parent=35 // pred_region
              loop: start=0, step=1, limit=1
              $region41: #{encoder_forward.11} parent=39 // loop_pre_header
                _
              $region42: #{encoder_forward.11} parent=39 // loop_header
                %s168 = sphi 0, %s172
                %p169 = scmp.ge.s32.totalorder %s168, 1
                %s173 = sphi %s162, %s162
                %s174 = sphi %s159, %s159
              $region43: #{encoder_forward.11} parent=39 // loop_header_branch
                %171 = sbr.rel (%p169) target = $region47
              $region44: #{encoder_forward.11} parent=39 // loop_body
                %v175 = vld [vmem:[%s173] sm:$0xff]
                %176 = vst [vmem:[%s174] sm:$0xff] %v175
                %v177 = vld [vmem:[%s173 + $0x8] sm:$0xff]
                %178 = vst [vmem:[%s174 + $0x8] sm:$0xff] %v177
                %v179 = vld [vmem:[%s173 + $0x100] sm:$0xff]
                %180 = vst [vmem:[%s174 + $0x10] sm:$0xff] %v179
                %v181 = vld [vmem:[%s173 + $0x108] sm:$0xff]
                %182 = vst [vmem:[%s174 + $0x18] sm:$0xff] %v181
                %v183 = vld [vmem:[%s173 + $0x200] sm:$0xff]
                %184 = vst [vmem:[%s174 + $0x20] sm:$0xff] %v183
                %v185 = vld [vmem:[%s173 + $0x208] sm:$0xff]
                %186 = vst [vmem:[%s174 + $0x28] sm:$0xff] %v185
              $region45: #{encoder_forward.11} parent=39 // loop_footer
                %s172 = sadd.s32 1, %s168
              $region46: #{encoder_forward.11} parent=39 // loop_footer_branch
                %167 = sbr.rel target = $region42
              $region47: #{encoder_forward.11} parent=39 // loop_exit
                _
            $region40: #{encoder_forward.11} parent=35 // pred_fallthru
              _
            // Predicated region
            $region48: #{encoder_forward.11} parent=35 // pred_check
              _
            $region49: #{encoder_forward.11} parent=35 // pred_check_branch
              %188 = sbr.rel target = $region51
            $region50: #{encoder_forward.11} parent=35 // pred_region
              _
            $region51: #{encoder_forward.11} parent=35 // pred_fallthru
              _
          $region36: #{encoder_forward.11} parent=31 // pred_fallthru
            _
          %189 = vnop
        $region32: #{encoder_forward.11} parent=27 // pred_fallthru
          _
      $region28: #{encoder_forward.11} parent=5 // pred_fallthru
        _
      %p190 = scmp.le.s32.totalorder 1, %s10
      %p191 = scmp.lt.s32.totalorder %s10, 17
      %p192 = pnand %p190, %p191
      %p193 = pneg %p192
      // Predicated region
      $region52: #{encoder_forward.11} parent=5 // pred_check
        _
      $region53: #{encoder_forward.11} parent=5 // pred_check_branch
        %195 = sbr.rel (%p192) target = $region55
      $region54: #{encoder_forward.11} parent=5 // pred_region
        %s196 = ssub.s32 %s10, 1
        %s197 = sand.u32 %s44, 1
        %s198 = sand.u32 %s44, 1
        %s199 = smul.addr %s198, 48
        %s200 = scalar_lea.vmem [#allocation2], %s199
        // Predicated region
        $region56: #{encoder_forward.11} parent=54 // pred_check
          %p201 = pneg %p57
        $region57: #{encoder_forward.11} parent=54 // pred_check_branch
          %203 = sbr.rel (%p201) target = $region59
        $region58: #{encoder_forward.11} parent=54 // pred_region
          _
        $region59: #{encoder_forward.11} parent=54 // pred_fallthru
          _
        %p204 = pneg %p31
        %p205 = pneg %p28
        %s206 = sand.u32 %s44, 1
        %s207 = sand.u32 %s44, 1
        %s208 = smul.addr %s207, 48
        %s209 = scalar_lea.vmem [#allocation2], %s208
        %p210 = pneg %p57
        %p211 = pneg %p54
        %p212 = pneg %p78
        %p213 = pneg %p75
        %p214 = pneg %p99
        %p215 = pneg %p96
        %p216 = pneg %p125
        %p217 = pneg %p122
        %s218 = smul.u32 4, %s15
        %p219 = scmp.lt.s32.totalorder %s218, 63
        %s220 = scalar_select %p219, %s218, 63
        %s221 = scalar_lea.vmem %s4, %s220
        %s222 = smul.u32 4, %s15
        %s223 = smul.u32 4, %s15
        %p224 = scmp.lt.s32.totalorder %s223, 63
        %s225 = scalar_select %p224, %s223, 63
        %s226 = scalar_lea.vmem %s4, %s225
        %s227 = smul.u32 4, %s15
        %v229 = vld [vmem:[%s0] sm:$0x1]
        %v230 = vld [vmem:[%s200] sm:$0xff]
        %v231 = vld [vmem:[%s200 + $0x8] sm:$0xff]
        %v232 = vld [vmem:[%s200 + $0x10] sm:$0xff]
        %v233 = vld [vmem:[%s200 + $0x18] sm:$0xff]
        %v234 = vld [vmem:[%s200 + $0x20] sm:$0x11]
        %v235 = vld [vmem:[%s200 + $0x28] sm:$0x11]
        %v236 = vld [vmem:[%s2] sm:$0x3]
        %238 = vset.pattern.permute.xlu0 0
        %239 = vperm.xlu0 %238, %v236
        %v240 = vpop.permute.xlu0 %239
        %v248 = vunpack.c.l.b16 %v230
        %v249 = vunpack.c.h.b16 %v230
        %v250 = vunpack.c.l.b16 %v231
        %v251 = vunpack.c.h.b16 %v231
        %v252 = vunpack.c.l.b16 %v232
        %v253 = vunpack.c.h.b16 %v232
        %v254 = vunpack.c.l.b16 %v233
        %v255 = vunpack.c.h.b16 %v233
        %v256 = vunpack.c.l.b16 %v234
        %v257 = vunpack.c.h.b16 %v234
        %v258 = vunpack.c.l.b16 %v235
        %v259 = vunpack.c.h.b16 %v235
        %v260 = vpack.c.b16 %v252, %v248
        %v261 = vpack.c.b16 %v253, %v249
        %v262 = vpack.c.b16 %v254, %v250
        %v263 = vpack.c.b16 %v255, %v251
        %v264 = vpack.c.b16 %v256, %v256
        %v265 = vpack.c.b16 %v257, %v257
        %v266 = vpack.c.b16 %v258, %v258
        %v267 = vpack.c.b16 %v259, %v259
        %vm272 = vcmask 146432
        %v274 = vsel %vm272, %v229, 0
        %vm276 = vcmask 1040384
        %v278 = vsel %vm276, %v264, 0
        %v281 = vsel %vm276, %v265, 0
        %v284 = vsel %vm276, %v266, 0
        %v287 = vsel %vm276, %v267, 0
        %289 = vmatprep.subr.bf16.mxu0 0
        %290 = vmatpush1.bf16.msra.mxu0 0
        %291 = vmatprep.subr.bf16.mxu0 0
        %292 = vmatpush1.bf16.msra.mxu0 0
        %293 = vmatprep.subr.bf16.mxu0 0
        %294 = vmatpush1.bf16.msra.mxu0 0
        %295 = vmatprep.subr.bf16.mxu0 0
        %296 = vmatpush1.bf16.msra.mxu0 0
        %297 = vmatprep.subr.bf16.mxu0 0
        %298 = vmatpush1.bf16.msra.mxu0 0
        %299 = vmatprep.subr.bf16.mxu0 0
        %300 = vmatpush1.bf16.msra.mxu0 0
        %301 = vmatprep.subr.bf16.mxu0 %v281
        %302 = vmatpush1.bf16.msra.mxu0 %v278
        %303 = vmatprep.subr.bf16.mxu0 %v261
        %304 = vmatpush1.bf16.msra.mxu0 %v260
        %305 = vmatprep.subr.bf16.mxu0 0
        %306 = vmatpush2.bf16.msra.mxu0 0
        %307 = vmatprep.subr.bf16.mxu0 0
        %308 = vmatpush2.bf16.msra.mxu0 0
        %309 = vmatprep.subr.bf16.mxu0 0
        %310 = vmatpush2.bf16.msra.mxu0 0
        %311 = vmatprep.subr.bf16.mxu0 0
        %312 = vmatpush2.bf16.msra.mxu0 0
        %313 = vmatprep.subr.bf16.mxu0 0
        %314 = vmatpush2.bf16.msra.mxu0 0
        %315 = vmatprep.subr.bf16.mxu0 0
        %316 = vmatpush2.bf16.msra.mxu0 0
        %317 = vmatprep.subr.bf16.mxu0 0
        %318 = vmatpush2.bf16.msra.mxu0 0
        %319 = vmatprep.subr.bf16.mxu0 0
        %320 = vmatpush2.bf16.msra.mxu0 0
        %321 = vmatprep.mubr.bf16.mxu0 0
        %322 = vmatmul.mubr.bf16.gmra.mxu0 %v274
        %v323 = vpop.f32.mrf.mxu0
        %v324 = vadd.f32 %v240, %v323
        %v325 = vpop.f32.mrf.mxu0
        %v326 = vadd.f32 %v240, %v325
        %v327 = vpop.f32.mrf.mxu0
        %v328 = vpop.f32.mrf.mxu0
        %329 = vdwg.mxu0
        %330 = vmatprep.subr.bf16.mxu0 0
        %331 = vmatpush1.bf16.msra.mxu0 0
        %332 = vmatprep.subr.bf16.mxu0 0
        %333 = vmatpush1.bf16.msra.mxu0 0
        %334 = vmatprep.subr.bf16.mxu0 0
        %335 = vmatpush1.bf16.msra.mxu0 0
        %336 = vmatprep.subr.bf16.mxu0 0
        %337 = vmatpush1.bf16.msra.mxu0 0
        %338 = vmatprep.subr.bf16.mxu0 0
        %339 = vmatpush1.bf16.msra.mxu0 0
        %340 = vmatprep.subr.bf16.mxu0 0
        %341 = vmatpush1.bf16.msra.mxu0 0
        %342 = vmatprep.subr.bf16.mxu0 %v287
        %343 = vmatpush1.bf16.msra.mxu0 %v284
        %344 = vmatprep.subr.bf16.mxu0 %v263
        %345 = vmatpush1.bf16.msra.mxu0 %v262
        %346 = vmatprep.subr.bf16.mxu0 0
        %347 = vmatpush2.bf16.msra.mxu0 0
        %348 = vmatprep.subr.bf16.mxu0 0
        %349 = vmatpush2.bf16.msra.mxu0 0
        %350 = vmatprep.subr.bf16.mxu0 0
        %351 = vmatpush2.bf16.msra.mxu0 0
        %352 = vmatprep.subr.bf16.mxu0 0
        %353 = vmatpush2.bf16.msra.mxu0 0
        %354 = vmatprep.subr.bf16.mxu0 0
        %355 = vmatpush2.bf16.msra.mxu0 0
        %356 = vmatprep.subr.bf16.mxu0 0
        %357 = vmatpush2.bf16.msra.mxu0 0
        %358 = vmatprep.subr.bf16.mxu0 0
        %359 = vmatpush2.bf16.msra.mxu0 0
        %360 = vmatprep.subr.bf16.mxu0 0
        %361 = vmatpush2.bf16.msra.mxu0 0
        %362 = vmatprep.mubr.bf16.mxu0 0
        %363 = vmatmul.mubr.bf16.gmra.mxu0 %v274
        %v364 = vpop.f32.mrf.mxu0
        %v365 = vadd.f32 %v240, %v364
        %v366 = vpop.f32.mrf.mxu0
        %v367 = vadd.f32 %v240, %v366
        %v368 = vpop.f32.mrf.mxu0
        %v369 = vpop.f32.mrf.mxu0
        %370 = vdwg.mxu0
        %vm371 = vcmp.ge.f32.partialorder %v324, 0.0
        %vm372 = vcmp.ge.f32.partialorder %v326, 0.0
        %vm373 = vcmp.ge.f32.partialorder %v365, 0.0
        %vm374 = vcmp.ge.f32.partialorder %v367, 0.0
        %v375 = vld [vmem:[%s3] sm:$0x3]
        %377 = vset.pattern.permute.xlu0 0
        %378 = vperm.xlu0 %377, %v375
        %v379 = vpop.permute.xlu0 %378
        %v381 = vmul.f32 %v324, %v379
        %v382 = vmul.f32 %v326, %v379
        %v383 = vmul.f32 %v365, %v379
        %v384 = vmul.f32 %v367, %v379
        %v385 = vsel %vm371, %v324, %v381
        %v386 = vsel %vm372, %v326, %v382
        %v387 = vsel %vm373, %v365, %v383
        %v388 = vsel %vm374, %v367, %v384
        %v389 = vpack.c.bf16 %v385, %v385
        %v390 = vpack.c.bf16 %v386, %v386
        %v391 = vpack.c.bf16 %v387, %v387
        %v392 = vpack.c.bf16 %v388, %v388
        %v397 = vcombine.low %v389, %v390
        %v398 = vcombine.low %v391, %v392
        %v400 = vunpack.c.l.s4 1966171168
        %v401 = vunpack.c.0.s8 %v400
        %v402 = vlaneseq
        %v403 = vshrl.u32 %v402, 7
        %v404 = vsub.s32 %v401, %v403
        %v405 = vrot.slane %v397, %v404
        %v407 = vunpack.c.l.s4 1966171168
        %v408 = vunpack.c.0.s8 %v407
        %v409 = vlaneseq
        %v410 = vshrl.u32 %v409, 7
        %v411 = vsub.s32 %v408, %v410
        %v412 = vrot.slane %v398, %v411
        %v413 = vcombine.low %v405, %v412
        %v415 = vunpack.c.l.s4 1966171168
        %v416 = vunpack.c.0.s8 %v415
        %v417 = vlaneseq
        %v418 = vshrl.u32 %v417, 7
        %v419 = vsub.s32 %v416, %v418
        %v420 = vrot.slane %v413, %v419
        %422 = vst [vmem:[%s226] sm:$0xf] %v420
        %s423 = smul.u32 4, %s15
        %p424 = scmp.lt.s32.totalorder %s423, 63
        %s425 = scalar_select %p424, %s423, 63
        %s426 = scalar_lea.vmem %s4, %s425
        // Predicated region
        $region60: #{encoder_forward.11} parent=54 // pred_check
          %p427 = pneg %p122
        $region61: #{encoder_forward.11} parent=54 // pred_check_branch
          %429 = sbr.rel (%p427) target = $region63
        $region62: #{encoder_forward.11} parent=54 // pred_region
          %s430 = smul.u32 4, %s15
        $region63: #{encoder_forward.11} parent=54 // pred_fallthru
          _
      $region55: #{encoder_forward.11} parent=5 // pred_fallthru
        _
      %p431 = scmp.le.s32.totalorder 2, %s10
      // Predicated region
      $region64: #{encoder_forward.11} parent=5 // pred_check
        %p432 = pneg %p431
      $region65: #{encoder_forward.11} parent=5 // pred_check_branch
        %434 = sbr.rel (%p432) target = $region67
      $region66: #{encoder_forward.11} parent=5 // pred_region
        %s435 = ssub.s32 %s10, 2
        // Predicated region
        $region68: #{encoder_forward.11} parent=66 // pred_check
          %p436 = pneg %p128
        $region69: #{encoder_forward.11} parent=66 // pred_check_branch
          %438 = sbr.rel (%p436) target = $region71
        $region70: #{encoder_forward.11} parent=66 // pred_region
          %s439 = smul.u32 4, %s16
          %p440 = scmp.lt.s32.totalorder %s439, 63
          %s441 = scalar_select %p440, %s439, 63
          %s442 = scalar_lea.vmem %s4, %s441
        $region71: #{encoder_forward.11} parent=66 // pred_fallthru
          _
      $region67: #{encoder_forward.11} parent=5 // pred_fallthru
        _
    $region6: #{encoder_forward.11} parent=1 // loop_footer
      %s14 = sadd.s32 1, %s10
    $region7: #{encoder_forward.11} parent=1 // loop_footer_branch
      %9 = sbr.rel target = $region3
    $region8: #{encoder_forward.11} parent=1 // loop_exit
      _

// kernel: encoder_forward.12
$region0: #{encoder_forward.12}
  #allocation0 [shape = 'u32[]', space=smem, size = 0x4, offset = 0x4, fixed_abs, tag = 'smem constant byte address 0x4 - core index']
  #allocation1 [shape = 'u32[144,128]{1,0:T(1,128)}', space=vmem, size = 0x12000, scoped, tag = 'internal scratch']
  %s0 = inlined_call_operand.vmem [shape: bf16[2,18], index: 0, kind: input, shape index: {}]
  %s1 = inlined_call_operand.vmem [shape: bf16[18,8192], index: 1, kind: input, shape index: {}]
  %s2 = inlined_call_operand.vmem [shape: bf16[2,8192], index: 2, kind: input, shape index: {}]
  %s3 = inlined_call_operand.vmem [shape: f32[2,1], index: 3, kind: input, shape index: {}]
  %s4 = inlined_call_operand.vmem [shape: bf16[2,8192], index: 4, kind: output, shape index: {}]
  %s5 = sld [smem:[#allocation0]]
  $region72: #{encoder_forward.12} parent=0
    _
  %s7 = ssub.s32 1, %s5
  %s8 = scalar_select 0, %s7, %s5
  $region1: #{encoder_forward.12} parent=0
    #allocation2 [shape = 'u8[49152]{0}', space=vmem, size = 0xc000, scoped, tag = 'input window, operand 1']
    loop: start=0, step=1, limit=18
    $region2: #{encoder_forward.12} parent=1 // loop_pre_header
      _
    $region3: #{encoder_forward.12} parent=1 // loop_header
      %s10 = sphi 0, %s14
      %p11 = scmp.ge.s32.totalorder %s10, 18
      %s18 = sphi 0, %s18
      %s20 = sphi 0, %s18
      %s21 = sphi 0, %s20
      %s35 = sphi 0, %s21
      %s41 = sphi 0, %s43
      %s44 = sphi 0, %s41
      %s45 = sphi 0, %s44
      %s61 = sphi 0, %s45
      %s67 = sphi 0, %s69
      %s70 = sphi 0, %s67
      %s71 = sphi 0, %s70
      %s87 = sphi 0, %s71
      %s91 = sphi 0, %s91
      %s93 = sphi 0, %s91
      %s94 = sphi 0, %s93
      %s108 = sphi 0, %s94
      %s114 = sphi 0, %s116
      %s117 = sphi 0, %s114
      %s118 = sphi 0, %s117
      %s134 = sphi 0, %s118
    $region4: #{encoder_forward.12} parent=1 // loop_header_branch
      %13 = sbr.rel (%p11) target = $region8
    $region5: #{encoder_forward.12} parent=1 // loop_body
      %s15 = ssub.s32 %s10, 1
      %s16 = ssub.s32 %s10, 2
      %s17 = sadd.s32 %s10, 1
      %s19 = sadd.s32 %s18, 1
      %p22 = scmp.eq.s32.totalorder %s10, 15
      %p23 = scmp.ne.s32.totalorder %s18, %s20
      %p24 = scmp.eq.s32.totalorder %s10, 0
      %p25 = por %p23, %p24
      %p26 = scmp.ne.s32.totalorder %s18, %s20
      %p27 = scmp.eq.s32.totalorder %s15, 15
      %p28 = por %p26, %p27
      %p29 = scmp.ne.s32.totalorder %s20, %s21
      %p30 = scmp.eq.s32.totalorder %s15, 0
      %p31 = por %p29, %p30
      %p32 = scmp.ne.s32.totalorder %s20, %s21
      %p33 = scmp.eq.s32.totalorder %s16, 15
      %p34 = por %p32, %p33
      %p36 = scmp.ne.s32.totalorder %s21, %s35
      %p37 = scmp.eq.s32.totalorder %s16, 0
      %p38 = por %p36, %p37
      %s39 = ssub.s32 %s10, %s17
      %p40 = scmp.eq.s32.totalorder %s39, 0
      %s42 = sadd.s32 %s41, 1
      %s43 = scalar_select %p40, %s41, %s42
      %p46 = pneg %p40
      %p47 = scmp.eq.s32.totalorder %s10, 15
      %p48 = por %p46, %p47
      %p49 = scmp.ne.s32.totalorder %s41, %s44
      %p50 = scmp.eq.s32.totalorder %s10, 0
      %p51 = por %p49, %p50
      %p52 = scmp.ne.s32.totalorder %s41, %s44
      %p53 = scmp.eq.s32.totalorder %s15, 15
      %p54 = por %p52, %p53
      %p55 = scmp.ne.s32.totalorder %s44, %s45
      %p56 = scmp.eq.s32.totalorder %s15, 0
      %p57 = por %p55, %p56
      %p58 = scmp.ne.s32.totalorder %s44, %s45
      %p59 = scmp.eq.s32.totalorder %s16, 15
      %p60 = por %p58, %p59
      %p62 = scmp.ne.s32.totalorder %s45, %s61
      %p63 = scmp.eq.s32.totalorder %s16, 0
      %p64 = por %p62, %p63
      %s65 = ssub.s32 %s10, %s17
      %p66 = scmp.eq.s32.totalorder %s65, 0
      %s68 = sadd.s32 %s67, 1
      %s69 = scalar_select %p66, %s67, %s68
      %p72 = pneg %p66
      %p73 = scmp.eq.s32.totalorder %s10, 15
      %p74 = por %p72, %p73
      %p75 = scmp.ne.s32.totalorder %s67, %s70
      %p76 = scmp.eq.s32.totalorder %s10, 0
      %p77 = por %p75, %p76
      %p78 = scmp.ne.s32.totalorder %s67, %s70
      %p79 = scmp.eq.s32.totalorder %s15, 15
      %p80 = por %p78, %p79
      %p81 = scmp.ne.s32.totalorder %s70, %s71
      %p82 = scmp.eq.s32.totalorder %s15, 0
      %p83 = por %p81, %p82
      %p84 = scmp.ne.s32.totalorder %s70, %s71
      %p85 = scmp.eq.s32.totalorder %s16, 15
      %p86 = por %p84, %p85
      %p88 = scmp.ne.s32.totalorder %s71, %s87
      %p89 = scmp.eq.s32.totalorder %s16, 0
      %p90 = por %p88, %p89
      %s92 = sadd.s32 %s91, 1
      %p95 = scmp.eq.s32.totalorder %s10, 15
      %p96 = scmp.ne.s32.totalorder %s91, %s93
      %p97 = scmp.eq.s32.totalorder %s10, 0
      %p98 = por %p96, %p97
      %p99 = scmp.ne.s32.totalorder %s91, %s93
      %p100 = scmp.eq.s32.totalorder %s15, 15
      %p101 = por %p99, %p100
      %p102 = scmp.ne.s32.totalorder %s93, %s94
      %p103 = scmp.eq.s32.totalorder %s15, 0
      %p104 = por %p102, %p103
      %p105 = scmp.ne.s32.totalorder %s93, %s94
      %p106 = scmp.eq.s32.totalorder %s16, 15
      %p107 = por %p105, %p106
      %p109 = scmp.ne.s32.totalorder %s94, %s108
      %p110 = scmp.eq.s32.totalorder %s16, 0
      %p111 = por %p109, %p110
      %s112 = ssub.s32 %s10, %s17
      %p113 = scmp.eq.s32.totalorder %s112, 0
      %s115 = sadd.s32 %s114, 1
      %s116 = scalar_select %p113, %s114, %s115
      %p119 = pneg %p113
      %p120 = scmp.eq.s32.totalorder %s10, 15
      %p121 = por %p119, %p120
      %p122 = scmp.ne.s32.totalorder %s114, %s117
      %p123 = scmp.eq.s32.totalorder %s10, 0
      %p124 = por %p122, %p123
      %p125 = scmp.ne.s32.totalorder %s114, %s117
      %p126 = scmp.eq.s32.totalorder %s15, 15
      %p127 = por %p125, %p126
      %p128 = scmp.ne.s32.totalorder %s117, %s118
      %p129 = scmp.eq.s32.totalorder %s15, 0
      %p130 = por %p128, %p129
      %p131 = scmp.ne.s32.totalorder %s117, %s118
      %p132 = scmp.eq.s32.totalorder %s16, 15
      %p133 = por %p131, %p132
      %p135 = scmp.ne.s32.totalorder %s118, %s134
      %p136 = scmp.eq.s32.totalorder %s16, 0
      %p137 = por %p135, %p136
      %p138 = scmp.le.s32.totalorder 1, %s10
      %p139 = scmp.lt.s32.totalorder %s10, 17
      %p140 = pnand %p138, %p139
      %p141 = pneg %p140
      // Predicated region
      $region9: #{encoder_forward.12} parent=5 // pred_check
        _
      $region10: #{encoder_forward.12} parent=5 // pred_check_branch
        %143 = sbr.rel (%p140) target = $region12
      $region11: #{encoder_forward.12} parent=5 // pred_region
        %s144 = ssub.s32 %s10, 1
        // Predicated region
        $region13: #{encoder_forward.12} parent=11 // pred_check
          %p145 = pneg %p31
        $region14: #{encoder_forward.12} parent=11 // pred_check_branch
          %147 = sbr.rel (%p145) target = $region16
        $region15: #{encoder_forward.12} parent=11 // pred_region
          _
        $region16: #{encoder_forward.12} parent=11 // pred_fallthru
          _
        // Predicated region
        $region17: #{encoder_forward.12} parent=11 // pred_check
          %p148 = pneg %p104
        $region18: #{encoder_forward.12} parent=11 // pred_check_branch
          %150 = sbr.rel (%p148) target = $region20
        $region19: #{encoder_forward.12} parent=11 // pred_region
          _
        $region20: #{encoder_forward.12} parent=11 // pred_fallthru
          _
      $region12: #{encoder_forward.12} parent=5 // pred_fallthru
        _
      %p151 = scmp.lt.s32.totalorder %s10, 16
      // Predicated region
      $region21: #{encoder_forward.12} parent=5 // pred_check
        %p152 = pneg %p151
      $region22: #{encoder_forward.12} parent=5 // pred_check_branch
        %154 = sbr.rel (%p152) target = $region24
      $region23: #{encoder_forward.12} parent=5 // pred_region
        // Predicated region
        $region25: #{encoder_forward.12} parent=23 // pred_check
          %p155 = pneg %p51
        $region26: #{encoder_forward.12} parent=23 // pred_check_branch
          %157 = sbr.rel (%p155) target = $region28
        $region27: #{encoder_forward.12} parent=23 // pred_region
          %s158 = sand.u32 %s41, 1
          %s159 = sand.u32 %s41, 1
          %s160 = smul.addr %s159, 48
          %s161 = scalar_lea.vmem [#allocation2], %s160
          %s162 = smul.u32 4, %s10
          %s163 = smul.addr %s162, 4
          %s164 = scalar_lea.vmem %s1, %s163
          // Predicated region
          $region29: #{encoder_forward.12} parent=27 // pred_check
            _
          $region30: #{encoder_forward.12} parent=27 // pred_check_branch
            %166 = sbr.rel (0) target = $region32
          $region31: #{encoder_forward.12} parent=27 // pred_region
            // Predicated region
            $region33: #{encoder_forward.12} parent=31 // pred_check
              _
            $region34: #{encoder_forward.12} parent=31 // pred_check_branch
              %168 = sbr.rel (0) target = $region36
            $region35: #{encoder_forward.12} parent=31 // pred_region
              loop: start=0, step=1, limit=1
              $region37: #{encoder_forward.12} parent=35 // loop_pre_header
                _
              $region38: #{encoder_forward.12} parent=35 // loop_header
                %s170 = sphi 0, %s174
                %p171 = scmp.ge.s32.totalorder %s170, 1
                %s175 = sphi %s164, %s164
                %s176 = sphi %s161, %s161
              $region39: #{encoder_forward.12} parent=35 // loop_header_branch
                %173 = sbr.rel (%p171) target = $region43
              $region40: #{encoder_forward.12} parent=35 // loop_body
                %v177 = vld [vmem:[%s175] sm:$0xff]
                %178 = vst [vmem:[%s176] sm:$0xff] %v177
                %v179 = vld [vmem:[%s175 + $0x8] sm:$0xff]
                %180 = vst [vmem:[%s176 + $0x8] sm:$0xff] %v179
                %v181 = vld [vmem:[%s175 + $0x100] sm:$0xff]
                %182 = vst [vmem:[%s176 + $0x10] sm:$0xff] %v181
                %v183 = vld [vmem:[%s175 + $0x108] sm:$0xff]
                %184 = vst [vmem:[%s176 + $0x18] sm:$0xff] %v183
                %v185 = vld [vmem:[%s175 + $0x200] sm:$0xff]
                %186 = vst [vmem:[%s176 + $0x20] sm:$0xff] %v185
                %v187 = vld [vmem:[%s175 + $0x208] sm:$0xff]
                %188 = vst [vmem:[%s176 + $0x28] sm:$0xff] %v187
              $region41: #{encoder_forward.12} parent=35 // loop_footer
                %s174 = sadd.s32 1, %s170
              $region42: #{encoder_forward.12} parent=35 // loop_footer_branch
                %169 = sbr.rel target = $region38
              $region43: #{encoder_forward.12} parent=35 // loop_exit
                _
            $region36: #{encoder_forward.12} parent=31 // pred_fallthru
              _
            // Predicated region
            $region44: #{encoder_forward.12} parent=31 // pred_check
              _
            $region45: #{encoder_forward.12} parent=31 // pred_check_branch
              %190 = sbr.rel target = $region47
            $region46: #{encoder_forward.12} parent=31 // pred_region
              _
            $region47: #{encoder_forward.12} parent=31 // pred_fallthru
              _
          $region32: #{encoder_forward.12} parent=27 // pred_fallthru
            _
          %191 = vnop
        $region28: #{encoder_forward.12} parent=23 // pred_fallthru
          _
        // Predicated region
        $region48: #{encoder_forward.12} parent=23 // pred_check
          %p192 = pneg %p77
        $region49: #{encoder_forward.12} parent=23 // pred_check_branch
          %194 = sbr.rel (%p192) target = $region51
        $region50: #{encoder_forward.12} parent=23 // pred_region
          %s195 = smul.u32 4, %s10
          %p196 = scmp.lt.s32.totalorder %s195, 63
          %s197 = scalar_select %p196, %s195, 63
          %s198 = scalar_lea.vmem %s2, %s197
          %s199 = smul.u32 4, %s10
        $region51: #{encoder_forward.12} parent=23 // pred_fallthru
          _
      $region24: #{encoder_forward.12} parent=5 // pred_fallthru
        _
      %p200 = scmp.le.s32.totalorder 1, %s10
      %p201 = scmp.lt.s32.totalorder %s10, 17
      %p202 = pnand %p200, %p201
      %p203 = pneg %p202
      // Predicated region
      $region52: #{encoder_forward.12} parent=5 // pred_check
        _
      $region53: #{encoder_forward.12} parent=5 // pred_check_branch
        %205 = sbr.rel (%p202) target = $region55
      $region54: #{encoder_forward.12} parent=5 // pred_region
        %s206 = ssub.s32 %s10, 1
        %s207 = sand.u32 %s44, 1
        %s208 = sand.u32 %s44, 1
        %s209 = smul.addr %s208, 48
        %s210 = scalar_lea.vmem [#allocation2], %s209
        // Predicated region
        $region56: #{encoder_forward.12} parent=54 // pred_check
          %p211 = pneg %p57
        $region57: #{encoder_forward.12} parent=54 // pred_check_branch
          %213 = sbr.rel (%p211) target = $region59
        $region58: #{encoder_forward.12} parent=54 // pred_region
          _
        $region59: #{encoder_forward.12} parent=54 // pred_fallthru
          _
        %p214 = pneg %p31
        %p215 = pneg %p28
        %s216 = sand.u32 %s44, 1
        %s217 = sand.u32 %s44, 1
        %s218 = smul.addr %s217, 48
        %s219 = scalar_lea.vmem [#allocation2], %s218
        %p220 = pneg %p57
        %p221 = pneg %p54
        %s222 = smul.u32 4, %s15
        %p223 = scmp.lt.s32.totalorder %s222, 63
        %s224 = scalar_select %p223, %s222, 63
        %s225 = scalar_lea.vmem %s2, %s224
        %p226 = pneg %p83
        %p227 = pneg %p80
        %p228 = pneg %p104
        %p229 = pneg %p101
        %p230 = pneg %p130
        %p231 = pneg %p127
        %s232 = smul.u32 4, %s15
        %p233 = scmp.lt.s32.totalorder %s232, 63
        %s234 = scalar_select %p233, %s232, 63
        %s235 = scalar_lea.vmem %s4, %s234
        %s236 = smul.u32 4, %s15
        %s237 = smul.u32 4, %s15
        %p238 = scmp.lt.s32.totalorder %s237, 63
        %s239 = scalar_select %p238, %s237, 63
        %s240 = scalar_lea.vmem %s2, %s239
        %s241 = smul.u32 4, %s15
        %s242 = smul.u32 4, %s15
        %p243 = scmp.lt.s32.totalorder %s242, 63
        %s244 = scalar_select %p243, %s242, 63
        %s245 = scalar_lea.vmem %s4, %s244
        %s246 = smul.u32 4, %s15
        %v248 = vld [vmem:[%s0] sm:$0x1]
        %v249 = vld [vmem:[%s210] sm:$0xff]
        %v250 = vld [vmem:[%s210 + $0x8] sm:$0xff]
        %v251 = vld [vmem:[%s210 + $0x10] sm:$0xff]
        %v252 = vld [vmem:[%s210 + $0x18] sm:$0xff]
        %v253 = vld [vmem:[%s210 + $0x20] sm:$0x11]
        %v254 = vld [vmem:[%s210 + $0x28] sm:$0x11]
        %v255 = vld [vmem:[%s240] sm:$0xf]
        %v256 = vunpack.c.l.bf16 %v255
        %v263 = vunpack.c.l.b16 %v249
        %v264 = vunpack.c.h.b16 %v249
        %v265 = vunpack.c.l.b16 %v250
        %v266 = vunpack.c.h.b16 %v250
        %v267 = vunpack.c.l.b16 %v251
        %v268 = vunpack.c.h.b16 %v251
        %v269 = vunpack.c.l.b16 %v252
        %v270 = vunpack.c.h.b16 %v252
        %v271 = vunpack.c.l.b16 %v253
        %v272 = vunpack.c.h.b16 %v253
        %v273 = vunpack.c.l.b16 %v254
        %v274 = vunpack.c.h.b16 %v254
        %v275 = vpack.c.b16 %v267, %v263
        %v276 = vpack.c.b16 %v268, %v264
        %v277 = vpack.c.b16 %v269, %v265
        %v278 = vpack.c.b16 %v270, %v266
        %v279 = vpack.c.b16 %v271, %v271
        %v280 = vpack.c.b16 %v272, %v272
        %v281 = vpack.c.b16 %v273, %v273
        %v282 = vpack.c.b16 %v274, %v274
        %v288 = vcombine.high %v256, %v256
        %v290 = vunpack.c.l.s4 1983009808
        %v291 = vunpack.c.0.s8 %v290
        %v292 = vlaneseq
        %v293 = vshrl.u32 %v292, 7
        %v294 = vsub.s32 %v291, %v293
        %v295 = vrot.slane %v256, %v294
        %v297 = vunpack.c.l.s4 1983009808
        %v298 = vunpack.c.0.s8 %v297
        %v299 = vlaneseq
        %v300 = vshrl.u32 %v299, 7
        %v301 = vsub.s32 %v298, %v300
        %v302 = vrot.slane %v288, %v301
        %v303 = vcombine.high %v295, %v295
        %v304 = vcombine.high %v302, %v302
        %vm309 = vcmask 146432
        %v311 = vsel %vm309, %v248, 0
        %vm313 = vcmask 1040384
        %v315 = vsel %vm313, %v279, 0
        %v318 = vsel %vm313, %v280, 0
        %v321 = vsel %vm313, %v281, 0
        %v324 = vsel %vm313, %v282, 0
        %326 = vmatprep.subr.bf16.mxu0 0
        %327 = vmatpush1.bf16.msra.mxu0 0
        %328 = vmatprep.subr.bf16.mxu0 0
        %329 = vmatpush1.bf16.msra.mxu0 0
        %330 = vmatprep.subr.bf16.mxu0 0
        %331 = vmatpush1.bf16.msra.mxu0 0
        %332 = vmatprep.subr.bf16.mxu0 0
        %333 = vmatpush1.bf16.msra.mxu0 0
        %334 = vmatprep.subr.bf16.mxu0 0
        %335 = vmatpush1.bf16.msra.mxu0 0
        %336 = vmatprep.subr.bf16.mxu0 0
        %337 = vmatpush1.bf16.msra.mxu0 0
        %338 = vmatprep.subr.bf16.mxu0 %v318
        %339 = vmatpush1.bf16.msra.mxu0 %v315
        %340 = vmatprep.subr.bf16.mxu0 %v276
        %341 = vmatpush1.bf16.msra.mxu0 %v275
        %342 = vmatprep.subr.bf16.mxu0 0
        %343 = vmatpush2.bf16.msra.mxu0 0
        %344 = vmatprep.subr.bf16.mxu0 0
        %345 = vmatpush2.bf16.msra.mxu0 0
        %346 = vmatprep.subr.bf16.mxu0 0
        %347 = vmatpush2.bf16.msra.mxu0 0
        %348 = vmatprep.subr.bf16.mxu0 0
        %349 = vmatpush2.bf16.msra.mxu0 0
        %350 = vmatprep.subr.bf16.mxu0 0
        %351 = vmatpush2.bf16.msra.mxu0 0
        %352 = vmatprep.subr.bf16.mxu0 0
        %353 = vmatpush2.bf16.msra.mxu0 0
        %354 = vmatprep.subr.bf16.mxu0 0
        %355 = vmatpush2.bf16.msra.mxu0 0
        %356 = vmatprep.subr.bf16.mxu0 0
        %357 = vmatpush2.bf16.msra.mxu0 0
        %358 = vmatprep.mubr.bf16.mxu0 0
        %359 = vmatmul.mubr.bf16.gmra.mxu0 %v311
        %v360 = vpop.f32.mrf.mxu0
        %v361 = vadd.f32 %v295, %v360
        %v362 = vpop.f32.mrf.mxu0
        %v363 = vadd.f32 %v303, %v362
        %v364 = vpop.f32.mrf.mxu0
        %v365 = vpop.f32.mrf.mxu0
        %366 = vdwg.mxu0
        %367 = vmatprep.subr.bf16.mxu0 0
        %368 = vmatpush1.bf16.msra.mxu0 0
        %369 = vmatprep.subr.bf16.mxu0 0
        %370 = vmatpush1.bf16.msra.mxu0 0
        %371 = vmatprep.subr.bf16.mxu0 0
        %372 = vmatpush1.bf16.msra.mxu0 0
        %373 = vmatprep.subr.bf16.mxu0 0
        %374 = vmatpush1.bf16.msra.mxu0 0
        %375 = vmatprep.subr.bf16.mxu0 0
        %376 = vmatpush1.bf16.msra.mxu0 0
        %377 = vmatprep.subr.bf16.mxu0 0
        %378 = vmatpush1.bf16.msra.mxu0 0
        %379 = vmatprep.subr.bf16.mxu0 %v324
        %380 = vmatpush1.bf16.msra.mxu0 %v321
        %381 = vmatprep.subr.bf16.mxu0 %v278
        %382 = vmatpush1.bf16.msra.mxu0 %v277
        %383 = vmatprep.subr.bf16.mxu0 0
        %384 = vmatpush2.bf16.msra.mxu0 0
        %385 = vmatprep.subr.bf16.mxu0 0
        %386 = vmatpush2.bf16.msra.mxu0 0
        %387 = vmatprep.subr.bf16.mxu0 0
        %388 = vmatpush2.bf16.msra.mxu0 0
        %389 = vmatprep.subr.bf16.mxu0 0
        %390 = vmatpush2.bf16.msra.mxu0 0
        %391 = vmatprep.subr.bf16.mxu0 0
        %392 = vmatpush2.bf16.msra.mxu0 0
        %393 = vmatprep.subr.bf16.mxu0 0
        %394 = vmatpush2.bf16.msra.mxu0 0
        %395 = vmatprep.subr.bf16.mxu0 0
        %396 = vmatpush2.bf16.msra.mxu0 0
        %397 = vmatprep.subr.bf16.mxu0 0
        %398 = vmatpush2.bf16.msra.mxu0 0
        %399 = vmatprep.mubr.bf16.mxu0 0
        %400 = vmatmul.mubr.bf16.gmra.mxu0 %v311
        %v401 = vpop.f32.mrf.mxu0
        %v402 = vadd.f32 %v302, %v401
        %v403 = vpop.f32.mrf.mxu0
        %v404 = vadd.f32 %v304, %v403
        %v405 = vpop.f32.mrf.mxu0
        %v406 = vpop.f32.mrf.mxu0
        %407 = vdwg.mxu0
        %vm408 = vcmp.ge.f32.partialorder %v361, 0.0
        %vm409 = vcmp.ge.f32.partialorder %v363, 0.0
        %vm410 = vcmp.ge.f32.partialorder %v402, 0.0
        %vm411 = vcmp.ge.f32.partialorder %v404, 0.0
        %v412 = vld [vmem:[%s3] sm:$0x3]
        %414 = vset.pattern.permute.xlu0 0
        %415 = vperm.xlu0 %414, %v412
        %v416 = vpop.permute.xlu0 %415
        %v418 = vmul.f32 %v361, %v416
        %v419 = vmul.f32 %v363, %v416
        %v420 = vmul.f32 %v402, %v416
        %v421 = vmul.f32 %v404, %v416
        %v422 = vsel %vm408, %v361, %v418
        %v423 = vsel %vm409, %v363, %v419
        %v424 = vsel %vm410, %v402, %v420
        %v425 = vsel %vm411, %v404, %v421
        %v426 = vpack.c.bf16 %v422, %v422
        %v427 = vpack.c.bf16 %v423, %v423
        %v428 = vpack.c.bf16 %v424, %v424
        %v429 = vpack.c.bf16 %v425, %v425
        %v434 = vcombine.low %v426, %v427
        %v435 = vcombine.low %v428, %v429
        %v437 = vunpack.c.l.s4 1966171168
        %v438 = vunpack.c.0.s8 %v437
        %v439 = vlaneseq
        %v440 = vshrl.u32 %v439, 7
        %v441 = vsub.s32 %v438, %v440
        %v442 = vrot.slane %v434, %v441
        %v444 = vunpack.c.l.s4 1966171168
        %v445 = vunpack.c.0.s8 %v444
        %v446 = vlaneseq
        %v447 = vshrl.u32 %v446, 7
        %v448 = vsub.s32 %v445, %v447
        %v449 = vrot.slane %v435, %v448
        %v450 = vcombine.low %v442, %v449
        %v452 = vunpack.c.l.s4 1966171168
        %v453 = vunpack.c.0.s8 %v452
        %v454 = vlaneseq
        %v455 = vshrl.u32 %v454, 7
        %v456 = vsub.s32 %v453, %v455
        %v457 = vrot.slane %v450, %v456
        %459 = vst [vmem:[%s245] sm:$0xf] %v457
        %s460 = smul.u32 4, %s15
        %p461 = scmp.lt.s32.totalorder %s460, 63
        %s462 = scalar_select %p461, %s460, 63
        %s463 = scalar_lea.vmem %s4, %s462
        // Predicated region
        $region60: #{encoder_forward.12} parent=54 // pred_check
          %p464 = pneg %p127
        $region61: #{encoder_forward.12} parent=54 // pred_check_branch
          %466 = sbr.rel (%p464) target = $region63
        $region62: #{encoder_forward.12} parent=54 // pred_region
          %s467 = smul.u32 4, %s15
        $region63: #{encoder_forward.12} parent=54 // pred_fallthru
          _
      $region55: #{encoder_forward.12} parent=5 // pred_fallthru
        _
      %p468 = scmp.le.s32.totalorder 2, %s10
      // Predicated region
      $region64: #{encoder_forward.12} parent=5 // pred_check
        %p469 = pneg %p468
      $region65: #{encoder_forward.12} parent=5 // pred_check_branch
        %471 = sbr.rel (%p469) target = $region67
      $region66: #{encoder_forward.12} parent=5 // pred_region
        %s472 = ssub.s32 %s10, 2
        // Predicated region
        $region68: #{encoder_forward.12} parent=66 // pred_check
          %p473 = pneg %p133
        $region69: #{encoder_forward.12} parent=66 // pred_check_branch
          %475 = sbr.rel (%p473) target = $region71
        $region70: #{encoder_forward.12} parent=66 // pred_region
          %s476 = smul.u32 4, %s16
          %p477 = scmp.lt.s32.totalorder %s476, 63
          %s478 = scalar_select %p477, %s476, 63
          %s479 = scalar_lea.vmem %s4, %s478
        $region71: #{encoder_forward.12} parent=66 // pred_fallthru
          _
      $region67: #{encoder_forward.12} parent=5 // pred_fallthru
        _
    $region6: #{encoder_forward.12} parent=1 // loop_footer
      %s14 = sadd.s32 1, %s10
    $region7: #{encoder_forward.12} parent=1 // loop_footer_branch
      %9 = sbr.rel target = $region3
    $region8: #{encoder_forward.12} parent=1 // loop_exit
      _

// kernel: encoder_forward.15
$region0: #{encoder_forward.15}
  #allocation0 [shape = 'u32[]', space=smem, size = 0x4, offset = 0x4, fixed_abs, tag = 'smem constant byte address 0x4 - core index']
  #allocation1 [shape = 'u32[144,128]{1,0:T(1,128)}', space=vmem, size = 0x12000, scoped, tag = 'internal scratch']
  %s0 = inlined_call_operand.vmem [shape: bf16[4,18], index: 0, kind: input, shape index: {}]
  %s1 = inlined_call_operand.vmem [shape: bf16[18,2048], index: 1, kind: input, shape index: {}]
  %s2 = inlined_call_operand.vmem [shape: f32[4,1], index: 2, kind: input, shape index: {}]
  %s3 = inlined_call_operand.vmem [shape: f32[4,1], index: 3, kind: input, shape index: {}]
  %s4 = inlined_call_operand.vmem [shape: bf16[4,2048], index: 4, kind: output, shape index: {}]
  %s5 = sld [smem:[#allocation0]]
  $region72: #{encoder_forward.15} parent=0
    _
  %s7 = ssub.s32 1, %s5
  %s8 = scalar_select 0, %s7, %s5
  $region1: #{encoder_forward.15} parent=0
    #allocation2 [shape = 'u8[49152]{0}', space=vmem, size = 0xc000, scoped, tag = 'input window, operand 1']
    loop: start=0, step=1, limit=6
    $region2: #{encoder_forward.15} parent=1 // loop_pre_header
      _
    $region3: #{encoder_forward.15} parent=1 // loop_header
      %s10 = sphi 0, %s14
      %p11 = scmp.ge.s32.totalorder %s10, 6
      %s18 = sphi 0, %s18
      %s20 = sphi 0, %s18
      %s21 = sphi 0, %s20
      %s35 = sphi 0, %s21
      %s41 = sphi 0, %s43
      %s44 = sphi 0, %s41
      %s45 = sphi 0, %s44
      %s61 = sphi 0, %s45
      %s65 = sphi 0, %s65
      %s67 = sphi 0, %s65
      %s68 = sphi 0, %s67
      %s82 = sphi 0, %s68
      %s86 = sphi 0, %s86
      %s88 = sphi 0, %s86
      %s89 = sphi 0, %s88
      %s103 = sphi 0, %s89
      %s109 = sphi 0, %s111
      %s112 = sphi 0, %s109
      %s113 = sphi 0, %s112
      %s129 = sphi 0, %s113
    $region4: #{encoder_forward.15} parent=1 // loop_header_branch
      %13 = sbr.rel (%p11) target = $region8
    $region5: #{encoder_forward.15} parent=1 // loop_body
      %s15 = ssub.s32 %s10, 1
      %s16 = ssub.s32 %s10, 2
      %s17 = sadd.s32 %s10, 1
      %s19 = sadd.s32 %s18, 1
      %p22 = scmp.eq.s32.totalorder %s10, 3
      %p23 = scmp.ne.s32.totalorder %s18, %s20
      %p24 = scmp.eq.s32.totalorder %s10, 0
      %p25 = por %p23, %p24
      %p26 = scmp.ne.s32.totalorder %s18, %s20
      %p27 = scmp.eq.s32.totalorder %s15, 3
      %p28 = por %p26, %p27
      %p29 = scmp.ne.s32.totalorder %s20, %s21
      %p30 = scmp.eq.s32.totalorder %s15, 0
      %p31 = por %p29, %p30
      %p32 = scmp.ne.s32.totalorder %s20, %s21
      %p33 = scmp.eq.s32.totalorder %s16, 3
      %p34 = por %p32, %p33
      %p36 = scmp.ne.s32.totalorder %s21, %s35
      %p37 = scmp.eq.s32.totalorder %s16, 0
      %p38 = por %p36, %p37
      %s39 = ssub.s32 %s10, %s17
      %p40 = scmp.eq.s32.totalorder %s39, 0
      %s42 = sadd.s32 %s41, 1
      %s43 = scalar_select %p40, %s41, %s42
      %p46 = pneg %p40
      %p47 = scmp.eq.s32.totalorder %s10, 3
      %p48 = por %p46, %p47
      %p49 = scmp.ne.s32.totalorder %s41, %s44
      %p50 = scmp.eq.s32.totalorder %s10, 0
      %p51 = por %p49, %p50
      %p52 = scmp.ne.s32.totalorder %s41, %s44
      %p53 = scmp.eq.s32.totalorder %s15, 3
      %p54 = por %p52, %p53
      %p55 = scmp.ne.s32.totalorder %s44, %s45
      %p56 = scmp.eq.s32.totalorder %s15, 0
      %p57 = por %p55, %p56
      %p58 = scmp.ne.s32.totalorder %s44, %s45
      %p59 = scmp.eq.s32.totalorder %s16, 3
      %p60 = por %p58, %p59
      %p62 = scmp.ne.s32.totalorder %s45, %s61
      %p63 = scmp.eq.s32.totalorder %s16, 0
      %p64 = por %p62, %p63
      %s66 = sadd.s32 %s65, 1
      %p69 = scmp.eq.s32.totalorder %s10, 3
      %p70 = scmp.ne.s32.totalorder %s65, %s67
      %p71 = scmp.eq.s32.totalorder %s10, 0
      %p72 = por %p70, %p71
      %p73 = scmp.ne.s32.totalorder %s65, %s67
      %p74 = scmp.eq.s32.totalorder %s15, 3
      %p75 = por %p73, %p74
      %p76 = scmp.ne.s32.totalorder %s67, %s68
      %p77 = scmp.eq.s32.totalorder %s15, 0
      %p78 = por %p76, %p77
      %p79 = scmp.ne.s32.totalorder %s67, %s68
      %p80 = scmp.eq.s32.totalorder %s16, 3
      %p81 = por %p79, %p80
      %p83 = scmp.ne.s32.totalorder %s68, %s82
      %p84 = scmp.eq.s32.totalorder %s16, 0
      %p85 = por %p83, %p84
      %s87 = sadd.s32 %s86, 1
      %p90 = scmp.eq.s32.totalorder %s10, 3
      %p91 = scmp.ne.s32.totalorder %s86, %s88
      %p92 = scmp.eq.s32.totalorder %s10, 0
      %p93 = por %p91, %p92
      %p94 = scmp.ne.s32.totalorder %s86, %s88
      %p95 = scmp.eq.s32.totalorder %s15, 3
      %p96 = por %p94, %p95
      %p97 = scmp.ne.s32.totalorder %s88, %s89
      %p98 = scmp.eq.s32.totalorder %s15, 0
      %p99 = por %p97, %p98
      %p100 = scmp.ne.s32.totalorder %s88, %s89
      %p101 = scmp.eq.s32.totalorder %s16, 3
      %p102 = por %p100, %p101
      %p104 = scmp.ne.s32.totalorder %s89, %s103
      %p105 = scmp.eq.s32.totalorder %s16, 0
      %p106 = por %p104, %p105
      %s107 = ssub.s32 %s10, %s17
      %p108 = scmp.eq.s32.totalorder %s107, 0
      %s110 = sadd.s32 %s109, 1
      %s111 = scalar_select %p108, %s109, %s110
      %p114 = pneg %p108
      %p115 = scmp.eq.s32.totalorder %s10, 3
      %p116 = por %p114, %p115
      %p117 = scmp.ne.s32.totalorder %s109, %s112
      %p118 = scmp.eq.s32.totalorder %s10, 0
      %p119 = por %p117, %p118
      %p120 = scmp.ne.s32.totalorder %s109, %s112
      %p121 = scmp.eq.s32.totalorder %s15, 3
      %p122 = por %p120, %p121
      %p123 = scmp.ne.s32.totalorder %s112, %s113
      %p124 = scmp.eq.s32.totalorder %s15, 0
      %p125 = por %p123, %p124
      %p126 = scmp.ne.s32.totalorder %s112, %s113
      %p127 = scmp.eq.s32.totalorder %s16, 3
      %p128 = por %p126, %p127
      %p130 = scmp.ne.s32.totalorder %s113, %s129
      %p131 = scmp.eq.s32.totalorder %s16, 0
      %p132 = por %p130, %p131
      %p133 = scmp.le.s32.totalorder 1, %s10
      %p134 = scmp.lt.s32.totalorder %s10, 5
      %p135 = pnand %p133, %p134
      %p136 = pneg %p135
      // Predicated region
      $region9: #{encoder_forward.15} parent=5 // pred_check
        _
      $region10: #{encoder_forward.15} parent=5 // pred_check_branch
        %138 = sbr.rel (%p135) target = $region12
      $region11: #{encoder_forward.15} parent=5 // pred_region
        %s139 = ssub.s32 %s10, 1
        // Predicated region
        $region13: #{encoder_forward.15} parent=11 // pred_check
          %p140 = pneg %p31
        $region14: #{encoder_forward.15} parent=11 // pred_check_branch
          %142 = sbr.rel (%p140) target = $region16
        $region15: #{encoder_forward.15} parent=11 // pred_region
          _
        $region16: #{encoder_forward.15} parent=11 // pred_fallthru
          _
        // Predicated region
        $region17: #{encoder_forward.15} parent=11 // pred_check
          %p143 = pneg %p78
        $region18: #{encoder_forward.15} parent=11 // pred_check_branch
          %145 = sbr.rel (%p143) target = $region20
        $region19: #{encoder_forward.15} parent=11 // pred_region
          _
        $region20: #{encoder_forward.15} parent=11 // pred_fallthru
          _
        // Predicated region
        $region21: #{encoder_forward.15} parent=11 // pred_check
          %p146 = pneg %p99
        $region22: #{encoder_forward.15} parent=11 // pred_check_branch
          %148 = sbr.rel (%p146) target = $region24
        $region23: #{encoder_forward.15} parent=11 // pred_region
          _
        $region24: #{encoder_forward.15} parent=11 // pred_fallthru
          _
      $region12: #{encoder_forward.15} parent=5 // pred_fallthru
        _
      %p149 = scmp.lt.s32.totalorder %s10, 4
      // Predicated region
      $region25: #{encoder_forward.15} parent=5 // pred_check
        %p150 = pneg %p149
      $region26: #{encoder_forward.15} parent=5 // pred_check_branch
        %152 = sbr.rel (%p150) target = $region28
      $region27: #{encoder_forward.15} parent=5 // pred_region
        // Predicated region
        $region29: #{encoder_forward.15} parent=27 // pred_check
          %p153 = pneg %p51
        $region30: #{encoder_forward.15} parent=27 // pred_check_branch
          %155 = sbr.rel (%p153) target = $region32
        $region31: #{encoder_forward.15} parent=27 // pred_region
          %s156 = sand.u32 %s41, 1
          %s157 = sand.u32 %s41, 1
          %s158 = smul.addr %s157, 48
          %s159 = scalar_lea.vmem [#allocation2], %s158
          %s160 = smul.u32 4, %s10
          %s161 = smul.addr %s160, 4
          %s162 = scalar_lea.vmem %s1, %s161
          // Predicated region
          $region33: #{encoder_forward.15} parent=31 // pred_check
            _
          $region34: #{encoder_forward.15} parent=31 // pred_check_branch
            %164 = sbr.rel (0) target = $region36
          $region35: #{encoder_forward.15} parent=31 // pred_region
            // Predicated region
            $region37: #{encoder_forward.15} parent=35 // pred_check
              _
            $region38: #{encoder_forward.15} parent=35 // pred_check_branch
              %166 = sbr.rel (0) target = $region40
            $region39: #{encoder_forward.15} parent=35 // pred_region
              loop: start=0, step=1, limit=1
              $region41: #{encoder_forward.15} parent=39 // loop_pre_header
                _
              $region42: #{encoder_forward.15} parent=39 // loop_header
                %s168 = sphi 0, %s172
                %p169 = scmp.ge.s32.totalorder %s168, 1
                %s173 = sphi %s162, %s162
                %s174 = sphi %s159, %s159
              $region43: #{encoder_forward.15} parent=39 // loop_header_branch
                %171 = sbr.rel (%p169) target = $region47
              $region44: #{encoder_forward.15} parent=39 // loop_body
                %v175 = vld [vmem:[%s173] sm:$0xff]
                %176 = vst [vmem:[%s174] sm:$0xff] %v175
                %v177 = vld [vmem:[%s173 + $0x8] sm:$0xff]
                %178 = vst [vmem:[%s174 + $0x8] sm:$0xff] %v177
                %v179 = vld [vmem:[%s173 + $0x40] sm:$0xff]
                %180 = vst [vmem:[%s174 + $0x10] sm:$0xff] %v179
                %v181 = vld [vmem:[%s173 + $0x48] sm:$0xff]
                %182 = vst [vmem:[%s174 + $0x18] sm:$0xff] %v181
                %v183 = vld [vmem:[%s173 + $0x80] sm:$0xff]
                %184 = vst [vmem:[%s174 + $0x20] sm:$0xff] %v183
                %v185 = vld [vmem:[%s173 + $0x88] sm:$0xff]
                %186 = vst [vmem:[%s174 + $0x28] sm:$0xff] %v185
              $region45: #{encoder_forward.15} parent=39 // loop_footer
                %s172 = sadd.s32 1, %s168
              $region46: #{encoder_forward.15} parent=39 // loop_footer_branch
                %167 = sbr.rel target = $region42
              $region47: #{encoder_forward.15} parent=39 // loop_exit
                _
            $region40: #{encoder_forward.15} parent=35 // pred_fallthru
              _
            // Predicated region
            $region48: #{encoder_forward.15} parent=35 // pred_check
              _
            $region49: #{encoder_forward.15} parent=35 // pred_check_branch
              %188 = sbr.rel target = $region51
            $region50: #{encoder_forward.15} parent=35 // pred_region
              _
            $region51: #{encoder_forward.15} parent=35 // pred_fallthru
              _
          $region36: #{encoder_forward.15} parent=31 // pred_fallthru
            _
          %189 = vnop
        $region32: #{encoder_forward.15} parent=27 // pred_fallthru
          _
      $region28: #{encoder_forward.15} parent=5 // pred_fallthru
        _
      %p190 = scmp.le.s32.totalorder 1, %s10
      %p191 = scmp.lt.s32.totalorder %s10, 5
      %p192 = pnand %p190, %p191
      %p193 = pneg %p192
      // Predicated region
      $region52: #{encoder_forward.15} parent=5 // pred_check
        _
      $region53: #{encoder_forward.15} parent=5 // pred_check_branch
        %195 = sbr.rel (%p192) target = $region55
      $region54: #{encoder_forward.15} parent=5 // pred_region
        %s196 = ssub.s32 %s10, 1
        %s197 = sand.u32 %s44, 1
        %s198 = sand.u32 %s44, 1
        %s199 = smul.addr %s198, 48
        %s200 = scalar_lea.vmem [#allocation2], %s199
        // Predicated region
        $region56: #{encoder_forward.15} parent=54 // pred_check
          %p201 = pneg %p57
        $region57: #{encoder_forward.15} parent=54 // pred_check_branch
          %203 = sbr.rel (%p201) target = $region59
        $region58: #{encoder_forward.15} parent=54 // pred_region
          _
        $region59: #{encoder_forward.15} parent=54 // pred_fallthru
          _
        %p204 = pneg %p31
        %p205 = pneg %p28
        %s206 = sand.u32 %s44, 1
        %s207 = sand.u32 %s44, 1
        %s208 = smul.addr %s207, 48
        %s209 = scalar_lea.vmem [#allocation2], %s208
        %p210 = pneg %p57
        %p211 = pneg %p54
        %p212 = pneg %p78
        %p213 = pneg %p75
        %p214 = pneg %p99
        %p215 = pneg %p96
        %p216 = pneg %p125
        %p217 = pneg %p122
        %s218 = smul.u32 4, %s15
        %p219 = scmp.lt.s32.totalorder %s218, 15
        %s220 = scalar_select %p219, %s218, 15
        %s221 = smul.addr %s220, 2
        %s222 = scalar_lea.vmem %s4, %s221
        %s223 = smul.u32 4, %s15
        %s224 = smul.u32 4, %s15
        %p225 = scmp.lt.s32.totalorder %s224, 15
        %s226 = scalar_select %p225, %s224, 15
        %s227 = smul.addr %s226, 2
        %s228 = scalar_lea.vmem %s4, %s227
        %s229 = smul.u32 4, %s15
        %v231 = vld [vmem:[%s0] sm:$0x3]
        %v232 = vld [vmem:[%s200] sm:$0xff]
        %v233 = vld [vmem:[%s200 + $0x8] sm:$0xff]
        %v234 = vld [vmem:[%s200 + $0x10] sm:$0xff]
        %v235 = vld [vmem:[%s200 + $0x18] sm:$0xff]
        %v236 = vld [vmem:[%s200 + $0x20] sm:$0x11]
        %v237 = vld [vmem:[%s200 + $0x28] sm:$0x11]
        %v238 = vld [vmem:[%s2] sm:$0xf]
        %240 = vset.pattern.permute.xlu0 0
        %241 = vperm.xlu0 %240, %v238
        %v242 = vpop.permute.xlu0 %241
        %v250 = vunpack.c.l.b16 %v232
        %v251 = vunpack.c.h.b16 %v232
        %v252 = vunpack.c.l.b16 %v233
        %v253 = vunpack.c.h.b16 %v233
        %v254 = vunpack.c.l.b16 %v234
        %v255 = vunpack.c.h.b16 %v234
        %v256 = vunpack.c.l.b16 %v235
        %v257 = vunpack.c.h.b16 %v235
        %v258 = vunpack.c.l.b16 %v236
        %v259 = vunpack.c.h.b16 %v236
        %v260 = vunpack.c.l.b16 %v237
        %v261 = vunpack.c.h.b16 %v237
        %v262 = vpack.c.b16 %v254, %v250
        %v263 = vpack.c.b16 %v255, %v251
        %v264 = vpack.c.b16 %v256, %v252
        %v265 = vpack.c.b16 %v257, %v253
        %v266 = vpack.c.b16 %v258, %v258
        %v267 = vpack.c.b16 %v259, %v259
        %v268 = vpack.c.b16 %v260, %v260
        %v269 = vpack.c.b16 %v261, %v261
        %vm274 = vcmask 146432
        %v276 = vsel %vm274, %v231, 0
        %vm278 = vcmask 1040384
        %v280 = vsel %vm278, %v266, 0
        %v283 = vsel %vm278, %v267, 0
        %v286 = vsel %vm278, %v268, 0
        %v289 = vsel %vm278, %v269, 0
        %291 = vmatprep.subr.bf16.mxu0 0
        %292 = vmatpush1.bf16.msra.mxu0 0
        %293 = vmatprep.subr.bf16.mxu0 0
        %294 = vmatpush1.bf16.msra.mxu0 0
        %295 = vmatprep.subr.bf16.mxu0 0
        %296 = vmatpush1.bf16.msra.mxu0 0
        %297 = vmatprep.subr.bf16.mxu0 0
        %298 = vmatpush1.bf16.msra.mxu0 0
        %299 = vmatprep.subr.bf16.mxu0 0
        %300 = vmatpush1.bf16.msra.mxu0 0
        %301 = vmatprep.subr.bf16.mxu0 0
        %302 = vmatpush1.bf16.msra.mxu0 0
        %303 = vmatprep.subr.bf16.mxu0 %v283
        %304 = vmatpush1.bf16.msra.mxu0 %v280
        %305 = vmatprep.subr.bf16.mxu0 %v263
        %306 = vmatpush1.bf16.msra.mxu0 %v262
        %307 = vmatprep.subr.bf16.mxu0 0
        %308 = vmatpush2.bf16.msra.mxu0 0
        %309 = vmatprep.subr.bf16.mxu0 0
        %310 = vmatpush2.bf16.msra.mxu0 0
        %311 = vmatprep.subr.bf16.mxu0 0
        %312 = vmatpush2.bf16.msra.mxu0 0
        %313 = vmatprep.subr.bf16.mxu0 0
        %314 = vmatpush2.bf16.msra.mxu0 0
        %315 = vmatprep.subr.bf16.mxu0 0
        %316 = vmatpush2.bf16.msra.mxu0 0
        %317 = vmatprep.subr.bf16.mxu0 0
        %318 = vmatpush2.bf16.msra.mxu0 0
        %319 = vmatprep.subr.bf16.mxu0 0
        %320 = vmatpush2.bf16.msra.mxu0 0
        %321 = vmatprep.subr.bf16.mxu0 0
        %322 = vmatpush2.bf16.msra.mxu0 0
        %323 = vmatprep.mubr.bf16.mxu0 0
        %324 = vmatmul.mubr.bf16.gmra.mxu0 %v276
        %v325 = vpop.f32.mrf.mxu0
        %v326 = vadd.f32 %v242, %v325
        %v327 = vpop.f32.mrf.mxu0
        %v328 = vadd.f32 %v242, %v327
        %v329 = vpop.f32.mrf.mxu0
        %v330 = vpop.f32.mrf.mxu0
        %331 = vdwg.mxu0
        %332 = vmatprep.subr.bf16.mxu0 0
        %333 = vmatpush1.bf16.msra.mxu0 0
        %334 = vmatprep.subr.bf16.mxu0 0
        %335 = vmatpush1.bf16.msra.mxu0 0
        %336 = vmatprep.subr.bf16.mxu0 0
        %337 = vmatpush1.bf16.msra.mxu0 0
        %338 = vmatprep.subr.bf16.mxu0 0
        %339 = vmatpush1.bf16.msra.mxu0 0
        %340 = vmatprep.subr.bf16.mxu0 0
        %341 = vmatpush1.bf16.msra.mxu0 0
        %342 = vmatprep.subr.bf16.mxu0 0
        %343 = vmatpush1.bf16.msra.mxu0 0
        %344 = vmatprep.subr.bf16.mxu0 %v289
        %345 = vmatpush1.bf16.msra.mxu0 %v286
        %346 = vmatprep.subr.bf16.mxu0 %v265
        %347 = vmatpush1.bf16.msra.mxu0 %v264
        %348 = vmatprep.subr.bf16.mxu0 0
        %349 = vmatpush2.bf16.msra.mxu0 0
        %350 = vmatprep.subr.bf16.mxu0 0
        %351 = vmatpush2.bf16.msra.mxu0 0
        %352 = vmatprep.subr.bf16.mxu0 0
        %353 = vmatpush2.bf16.msra.mxu0 0
        %354 = vmatprep.subr.bf16.mxu0 0
        %355 = vmatpush2.bf16.msra.mxu0 0
        %356 = vmatprep.subr.bf16.mxu0 0
        %357 = vmatpush2.bf16.msra.mxu0 0
        %358 = vmatprep.subr.bf16.mxu0 0
        %359 = vmatpush2.bf16.msra.mxu0 0
        %360 = vmatprep.subr.bf16.mxu0 0
        %361 = vmatpush2.bf16.msra.mxu0 0
        %362 = vmatprep.subr.bf16.mxu0 0
        %363 = vmatpush2.bf16.msra.mxu0 0
        %364 = vmatprep.mubr.bf16.mxu0 0
        %365 = vmatmul.mubr.bf16.gmra.mxu0 %v276
        %v366 = vpop.f32.mrf.mxu0
        %v367 = vadd.f32 %v242, %v366
        %v368 = vpop.f32.mrf.mxu0
        %v369 = vadd.f32 %v242, %v368
        %v370 = vpop.f32.mrf.mxu0
        %v371 = vpop.f32.mrf.mxu0
        %372 = vdwg.mxu0
        %vm373 = vcmp.ge.f32.partialorder %v326, 0.0
        %vm374 = vcmp.ge.f32.partialorder %v328, 0.0
        %vm375 = vcmp.ge.f32.partialorder %v367, 0.0
        %vm376 = vcmp.ge.f32.partialorder %v369, 0.0
        %v377 = vld [vmem:[%s3] sm:$0xf]
        %379 = vset.pattern.permute.xlu0 0
        %380 = vperm.xlu0 %379, %v377
        %v381 = vpop.permute.xlu0 %380
        %v383 = vmul.f32 %v326, %v381
        %v384 = vmul.f32 %v328, %v381
        %v385 = vmul.f32 %v367, %v381
        %v386 = vmul.f32 %v369, %v381
        %v387 = vsel %vm373, %v326, %v383
        %v388 = vsel %vm374, %v328, %v384
        %v389 = vsel %vm375, %v367, %v385
        %v390 = vsel %vm376, %v369, %v386
        %v391 = vpack.c.bf16 %v387, %v387
        %v392 = vpack.c.bf16 %v388, %v388
        %v393 = vpack.c.bf16 %v389, %v389
        %v394 = vpack.c.bf16 %v390, %v390
        %v399 = vcombine.low %v391, %v392
        %v400 = vcombine.low %v393, %v394
        %v402 = vunpack.c.l.s4 1983009808
        %v403 = vunpack.c.0.s8 %v402
        %v404 = vlaneseq
        %v405 = vshrl.u32 %v404, 7
        %v406 = vsub.s32 %v403, %v405
        %v407 = vrot.slane %v399, %v406
        %v409 = vunpack.c.l.s4 1983009808
        %v410 = vunpack.c.0.s8 %v409
        %v411 = vlaneseq
        %v412 = vshrl.u32 %v411, 7
        %v413 = vsub.s32 %v410, %v412
        %v414 = vrot.slane %v400, %v413
        %v415 = vcombine.low %v407, %v414
        %417 = vst [vmem:[%s228] sm:$0xff] %v415
        %s418 = smul.u32 4, %s15
        %p419 = scmp.lt.s32.totalorder %s418, 15
        %s420 = scalar_select %p419, %s418, 15
        %s421 = smul.addr %s420, 2
        %s422 = scalar_lea.vmem %s4, %s421
        // Predicated region
        $region60: #{encoder_forward.15} parent=54 // pred_check
          %p423 = pneg %p122
        $region61: #{encoder_forward.15} parent=54 // pred_check_branch
          %425 = sbr.rel (%p423) target = $region63
        $region62: #{encoder_forward.15} parent=54 // pred_region
          %s426 = smul.u32 4, %s15
        $region63: #{encoder_forward.15} parent=54 // pred_fallthru
          _
      $region55: #{encoder_forward.15} parent=5 // pred_fallthru
        _
      %p427 = scmp.le.s32.totalorder 2, %s10
      // Predicated region
      $region64: #{encoder_forward.15} parent=5 // pred_check
        %p428 = pneg %p427
      $region65: #{encoder_forward.15} parent=5 // pred_check_branch
        %430 = sbr.rel (%p428) target = $region67
      $region66: #{encoder_forward.15} parent=5 // pred_region
        %s431 = ssub.s32 %s10, 2
        // Predicated region
        $region68: #{encoder_forward.15} parent=66 // pred_check
          %p432 = pneg %p128
        $region69: #{encoder_forward.15} parent=66 // pred_check_branch
          %434 = sbr.rel (%p432) target = $region71
        $region70: #{encoder_forward.15} parent=66 // pred_region
          %s435 = smul.u32 4, %s16
          %p436 = scmp.lt.s32.totalorder %s435, 15
          %s437 = scalar_select %p436, %s435, 15
          %s438 = smul.addr %s437, 2
          %s439 = scalar_lea.vmem %s4, %s438
        $region71: #{encoder_forward.15} parent=66 // pred_fallthru
          _
      $region67: #{encoder_forward.15} parent=5 // pred_fallthru
        _
    $region6: #{encoder_forward.15} parent=1 // loop_footer
      %s14 = sadd.s32 1, %s10
    $region7: #{encoder_forward.15} parent=1 // loop_footer_branch
      %9 = sbr.rel target = $region3
    $region8: #{encoder_forward.15} parent=1 // loop_exit
      _

// kernel: encoder_forward.16
$region0: #{encoder_forward.16}
  #allocation0 [shape = 'u32[]', space=smem, size = 0x4, offset = 0x4, fixed_abs, tag = 'smem constant byte address 0x4 - core index']
  #allocation1 [shape = 'u32[144,128]{1,0:T(1,128)}', space=vmem, size = 0x12000, scoped, tag = 'internal scratch']
  %s0 = inlined_call_operand.vmem [shape: bf16[8,36], index: 0, kind: input, shape index: {}]
  %s1 = inlined_call_operand.vmem [shape: bf16[36,512], index: 1, kind: input, shape index: {}]
  %s2 = inlined_call_operand.vmem [shape: f32[8,1], index: 2, kind: input, shape index: {}]
  %s3 = inlined_call_operand.vmem [shape: f32[8,1], index: 3, kind: input, shape index: {}]
  %s4 = inlined_call_operand.vmem [shape: bf16[8,512], index: 4, kind: output, shape index: {}]
  %s5 = sld [smem:[#allocation0]]
  $region26: #{encoder_forward.16} parent=0
    _
  %s7 = ssub.s32 1, %s5
  %s8 = scalar_select 0, %s7, %s5
  // Predicated region
  $region2: #{encoder_forward.16} parent=0 // pred_check
    _
  $region3: #{encoder_forward.16} parent=0 // pred_check_branch
    %10 = sbr.rel (0) target = $region5
  $region4: #{encoder_forward.16} parent=0 // pred_region
    _
  $region5: #{encoder_forward.16} parent=0 // pred_fallthru
    _
  // Predicated region
  $region6: #{encoder_forward.16} parent=0 // pred_check
    _
  $region7: #{encoder_forward.16} parent=0 // pred_check_branch
    %12 = sbr.rel (0) target = $region9
  $region8: #{encoder_forward.16} parent=0 // pred_region
    _
  $region9: #{encoder_forward.16} parent=0 // pred_fallthru
    _
  // Predicated region
  $region10: #{encoder_forward.16} parent=0 // pred_check
    _
  $region11: #{encoder_forward.16} parent=0 // pred_check_branch
    %14 = sbr.rel (0) target = $region13
  $region12: #{encoder_forward.16} parent=0 // pred_region
    _
  $region13: #{encoder_forward.16} parent=0 // pred_fallthru
    _
  // Predicated region
  $region14: #{encoder_forward.16} parent=0 // pred_check
    _
  $region15: #{encoder_forward.16} parent=0 // pred_check_branch
    %16 = sbr.rel (0) target = $region17
  $region16: #{encoder_forward.16} parent=0 // pred_region
    _
  $region17: #{encoder_forward.16} parent=0 // pred_fallthru
    _
  %v18 = vld [vmem:[%s0] sm:$0xf]
  %v19 = vld [vmem:[%s1] sm:$0xff]
  %v20 = vld [vmem:[%s1 + $0x8] sm:$0xff]
  %v21 = vld [vmem:[%s1 + $0x10] sm:$0xff]
  %v22 = vld [vmem:[%s1 + $0x18] sm:$0xff]
  %v23 = vld [vmem:[%s1 + $0x20] sm:$0xff]
  %v24 = vld [vmem:[%s1 + $0x28] sm:$0xff]
  %v25 = vld [vmem:[%s1 + $0x30] sm:$0xff]
  %v26 = vld [vmem:[%s1 + $0x38] sm:$0xff]
  %v27 = vld [vmem:[%s1 + $0x40] sm:$0x33]
  %v28 = vld [vmem:[%s1 + $0x48] sm:$0x33]
  %v29 = vld [vmem:[%s2] sm:$0xff]
  %31 = vset.pattern.permute.xlu0 0
  %32 = vperm.xlu0 %31, %v29
  %v33 = vpop.permute.xlu0 %32
  %v45 = vunpack.c.l.b16 %v19
  %v46 = vunpack.c.h.b16 %v19
  %v47 = vunpack.c.l.b16 %v20
  %v48 = vunpack.c.h.b16 %v20
  %v49 = vunpack.c.l.b16 %v21
  %v50 = vunpack.c.h.b16 %v21
  %v51 = vunpack.c.l.b16 %v22
  %v52 = vunpack.c.h.b16 %v22
  %v53 = vunpack.c.l.b16 %v23
  %v54 = vunpack.c.h.b16 %v23
  %v55 = vunpack.c.l.b16 %v24
  %v56 = vunpack.c.h.b16 %v24
  %v57 = vunpack.c.l.b16 %v25
  %v58 = vunpack.c.h.b16 %v25
  %v59 = vunpack.c.l.b16 %v26
  %v60 = vunpack.c.h.b16 %v26
  %v61 = vunpack.c.l.b16 %v27
  %v62 = vunpack.c.h.b16 %v27
  %v63 = vunpack.c.l.b16 %v28
  %v64 = vunpack.c.h.b16 %v28
  %v65 = vpack.c.b16 %v49, %v45
  %v66 = vpack.c.b16 %v50, %v46
  %v67 = vpack.c.b16 %v51, %v47
  %v68 = vpack.c.b16 %v52, %v48
  %v69 = vpack.c.b16 %v57, %v53
  %v70 = vpack.c.b16 %v58, %v54
  %v71 = vpack.c.b16 %v59, %v55
  %v72 = vpack.c.b16 %v60, %v56
  %v73 = vpack.c.b16 %v61, %v61
  %v74 = vpack.c.b16 %v62, %v62
  %v75 = vpack.c.b16 %v63, %v63
  %v76 = vpack.c.b16 %v64, %v64
  %vm85 = vcmask 293888
  %v87 = vsel %vm85, %v18, 0
  %vm89 = vcmask 1041408
  %v91 = vsel %vm89, %v73, 0
  %v94 = vsel %vm89, %v74, 0
  %v97 = vsel %vm89, %v75, 0
  %v100 = vsel %vm89, %v76, 0
  %102 = vmatprep.subr.bf16.mxu0 0
  %103 = vmatpush1.bf16.msra.mxu0 0
  %104 = vmatprep.subr.bf16.mxu0 0
  %105 = vmatpush1.bf16.msra.mxu0 0
  %106 = vmatprep.subr.bf16.mxu0 0
  %107 = vmatpush1.bf16.msra.mxu0 0
  %108 = vmatprep.subr.bf16.mxu0 0
  %109 = vmatpush1.bf16.msra.mxu0 0
  %110 = vmatprep.subr.bf16.mxu0 0
  %111 = vmatpush1.bf16.msra.mxu0 0
  %112 = vmatprep.subr.bf16.mxu0 %v94
  %113 = vmatpush1.bf16.msra.mxu0 %v91
  %114 = vmatprep.subr.bf16.mxu0 %v70
  %115 = vmatpush1.bf16.msra.mxu0 %v69
  %116 = vmatprep.subr.bf16.mxu0 %v66
  %117 = vmatpush1.bf16.msra.mxu0 %v65
  %118 = vmatprep.subr.bf16.mxu0 0
  %119 = vmatpush2.bf16.msra.mxu0 0
  %120 = vmatprep.subr.bf16.mxu0 0
  %121 = vmatpush2.bf16.msra.mxu0 0
  %122 = vmatprep.subr.bf16.mxu0 0
  %123 = vmatpush2.bf16.msra.mxu0 0
  %124 = vmatprep.subr.bf16.mxu0 0
  %125 = vmatpush2.bf16.msra.mxu0 0
  %126 = vmatprep.subr.bf16.mxu0 0
  %127 = vmatpush2.bf16.msra.mxu0 0
  %128 = vmatprep.subr.bf16.mxu0 0
  %129 = vmatpush2.bf16.msra.mxu0 0
  %130 = vmatprep.subr.bf16.mxu0 0
  %131 = vmatpush2.bf16.msra.mxu0 0
  %132 = vmatprep.subr.bf16.mxu0 0
  %133 = vmatpush2.bf16.msra.mxu0 0
  %134 = vmatprep.mubr.bf16.mxu0 0
  %135 = vmatmul.mubr.bf16.gmra.mxu0 %v87
  %v136 = vpop.f32.mrf.mxu0
  %v137 = vadd.f32 %v33, %v136
  %v138 = vpop.f32.mrf.mxu0
  %v139 = vadd.f32 %v33, %v138
  %v140 = vpop.f32.mrf.mxu0
  %v141 = vpop.f32.mrf.mxu0
  %142 = vdwg.mxu0
  %143 = vmatprep.subr.bf16.mxu0 0
  %144 = vmatpush1.bf16.msra.mxu0 0
  %145 = vmatprep.subr.bf16.mxu0 0
  %146 = vmatpush1.bf16.msra.mxu0 0
  %147 = vmatprep.subr.bf16.mxu0 0
  %148 = vmatpush1.bf16.msra.mxu0 0
  %149 = vmatprep.subr.bf16.mxu0 0
  %150 = vmatpush1.bf16.msra.mxu0 0
  %151 = vmatprep.subr.bf16.mxu0 0
  %152 = vmatpush1.bf16.msra.mxu0 0
  %153 = vmatprep.subr.bf16.mxu0 %v100
  %154 = vmatpush1.bf16.msra.mxu0 %v97
  %155 = vmatprep.subr.bf16.mxu0 %v72
  %156 = vmatpush1.bf16.msra.mxu0 %v71
  %157 = vmatprep.subr.bf16.mxu0 %v68
  %158 = vmatpush1.bf16.msra.mxu0 %v67
  %159 = vmatprep.subr.bf16.mxu0 0
  %160 = vmatpush2.bf16.msra.mxu0 0
  %161 = vmatprep.subr.bf16.mxu0 0
  %162 = vmatpush2.bf16.msra.mxu0 0
  %163 = vmatprep.subr.bf16.mxu0 0
  %164 = vmatpush2.bf16.msra.mxu0 0
  %165 = vmatprep.subr.bf16.mxu0 0
  %166 = vmatpush2.bf16.msra.mxu0 0
  %167 = vmatprep.subr.bf16.mxu0 0
  %168 = vmatpush2.bf16.msra.mxu0 0
  %169 = vmatprep.subr.bf16.mxu0 0
  %170 = vmatpush2.bf16.msra.mxu0 0
  %171 = vmatprep.subr.bf16.mxu0 0
  %172 = vmatpush2.bf16.msra.mxu0 0
  %173 = vmatprep.subr.bf16.mxu0 0
  %174 = vmatpush2.bf16.msra.mxu0 0
  %175 = vmatprep.mubr.bf16.mxu0 0
  %176 = vmatmul.mubr.bf16.gmra.mxu0 %v87
  %v177 = vpop.f32.mrf.mxu0
  %v178 = vadd.f32 %v33, %v177
  %v179 = vpop.f32.mrf.mxu0
  %v180 = vadd.f32 %v33, %v179
  %v181 = vpop.f32.mrf.mxu0
  %v182 = vpop.f32.mrf.mxu0
  %183 = vdwg.mxu0
  %vm184 = vcmp.ge.f32.partialorder %v137, 0.0
  %vm185 = vcmp.ge.f32.partialorder %v139, 0.0
  %vm186 = vcmp.ge.f32.partialorder %v178, 0.0
  %vm187 = vcmp.ge.f32.partialorder %v180, 0.0
  %v188 = vld [vmem:[%s3] sm:$0xff]
  %190 = vset.pattern.permute.xlu0 0
  %191 = vperm.xlu0 %190, %v188
  %v192 = vpop.permute.xlu0 %191
  %v194 = vmul.f32 %v137, %v192
  %v195 = vmul.f32 %v139, %v192
  %v196 = vmul.f32 %v178, %v192
  %v197 = vmul.f32 %v180, %v192
  %v198 = vsel %vm184, %v137, %v194
  %v199 = vsel %vm185, %v139, %v195
  %v200 = vsel %vm186, %v178, %v196
  %v201 = vsel %vm187, %v180, %v197
  %v202 = vpack.c.bf16 %v198, %v198
  %v203 = vpack.c.bf16 %v199, %v199
  %v204 = vpack.c.bf16 %v200, %v200
  %v205 = vpack.c.bf16 %v201, %v201
  %v210 = vunpack.c.l.b16 %v202
  %v211 = vunpack.c.l.b16 %v203
  %v212 = vunpack.c.l.b16 %v204
  %v213 = vunpack.c.l.b16 %v205
  %v214 = vpack.c.b16 %v211, %v210
  %v215 = vpack.c.b16 %v213, %v212
  %218 = vst [vmem:[%s4] sm:$0xff] %v214
  %219 = vst [vmem:[%s4 + $0x8] sm:$0xff] %v215
  // Predicated region
  $region18: #{encoder_forward.16} parent=0 // pred_check
    _
  $region19: #{encoder_forward.16} parent=0 // pred_check_branch
    %221 = sbr.rel (0) target = $region21
  $region20: #{encoder_forward.16} parent=0 // pred_region
    _
  $region21: #{encoder_forward.16} parent=0 // pred_fallthru
    _
  // Predicated region
  $region22: #{encoder_forward.16} parent=0 // pred_check
    _
  $region23: #{encoder_forward.16} parent=0 // pred_check_branch
    %223 = sbr.rel (0) target = $region25
  $region24: #{encoder_forward.16} parent=0 // pred_region
    _
  $region25: #{encoder_forward.16} parent=0 // pred_fallthru
    _

// kernel: encoder_forward.17
$region0: #{encoder_forward.17}
  #allocation0 [shape = 'u32[]', space=smem, size = 0x4, offset = 0x4, fixed_abs, tag = 'smem constant byte address 0x4 - core index']
  #allocation1 [shape = 'u32[144,128]{1,0:T(1,128)}', space=vmem, size = 0x12000, scoped, tag = 'internal scratch']
  %s0 = inlined_call_operand.vmem [shape: bf16[16,72], index: 0, kind: input, shape index: {}]
  %s1 = inlined_call_operand.vmem [shape: bf16[72,128], index: 1, kind: input, shape index: {}]
  %s2 = inlined_call_operand.vmem [shape: f32[16,1], index: 2, kind: input, shape index: {}]
  %s3 = inlined_call_operand.vmem [shape: f32[16,1], index: 3, kind: input, shape index: {}]
  %s4 = inlined_call_operand.vmem [shape: bf16[16,128], index: 4, kind: output, shape index: {}]
  %s5 = sld [smem:[#allocation0]]
  $region26: #{encoder_forward.17} parent=0
    _
  %s7 = ssub.s32 1, %s5
  %s8 = scalar_select 0, %s7, %s5
  // Predicated region
  $region2: #{encoder_forward.17} parent=0 // pred_check
    _
  $region3: #{encoder_forward.17} parent=0 // pred_check_branch
    %10 = sbr.rel (0) target = $region5
  $region4: #{encoder_forward.17} parent=0 // pred_region
    _
  $region5: #{encoder_forward.17} parent=0 // pred_fallthru
    _
  // Predicated region
  $region6: #{encoder_forward.17} parent=0 // pred_check
    _
  $region7: #{encoder_forward.17} parent=0 // pred_check_branch
    %12 = sbr.rel (0) target = $region9
  $region8: #{encoder_forward.17} parent=0 // pred_region
    _
  $region9: #{encoder_forward.17} parent=0 // pred_fallthru
    _
  // Predicated region
  $region10: #{encoder_forward.17} parent=0 // pred_check
    _
  $region11: #{encoder_forward.17} parent=0 // pred_check_branch
    %14 = sbr.rel (0) target = $region13
  $region12: #{encoder_forward.17} parent=0 // pred_region
    _
  $region13: #{encoder_forward.17} parent=0 // pred_fallthru
    _
  // Predicated region
  $region14: #{encoder_forward.17} parent=0 // pred_check
    _
  $region15: #{encoder_forward.17} parent=0 // pred_check_branch
    %16 = sbr.rel (0) target = $region17
  $region16: #{encoder_forward.17} parent=0 // pred_region
    _
  $region17: #{encoder_forward.17} parent=0 // pred_fallthru
    _
  %v18 = vld [vmem:[%s0] sm:$0xf]
  %v19 = vld [vmem:[%s0 + $0x4] sm:$0xf]
  %v20 = vld [vmem:[%s1] sm:$0xf]
  %v21 = vld [vmem:[%s1 + $0x4] sm:$0xf]
  %v22 = vld [vmem:[%s1 + $0x8] sm:$0xf]
  %v23 = vld [vmem:[%s1 + $0xc] sm:$0xf]
  %v24 = vld [vmem:[%s1 + $0x10] sm:$0xf]
  %v25 = vld [vmem:[%s1 + $0x14] sm:$0xf]
  %v26 = vld [vmem:[%s1 + $0x18] sm:$0xf]
  %v27 = vld [vmem:[%s1 + $0x1c] sm:$0xf]
  %v28 = vld [vmem:[%s1 + $0x20] sm:$0xf]
  %v29 = vld [vmem:[%s2] sm:$0xff]
  %v30 = vld [vmem:[%s2 + $0x8] sm:$0xff]
  %32 = vset.pattern.permute.xlu0 0
  %33 = vperm.xlu0 %32, %v29
  %v34 = vpop.permute.xlu0 %33
  %37 = vset.pattern.permute.xlu0 0
  %38 = vperm.xlu0 %37, %v30
  %v39 = vpop.permute.xlu0 %38
  %v43 = vunpack.c.l.b16 %v18
  %v44 = vunpack.c.l.b16 %v19
  %v45 = vpack.c.b16 %v44, %v43
  %v55 = vunpack.c.l.b16 %v20
  %v56 = vunpack.c.l.b16 %v21
  %v57 = vunpack.c.l.b16 %v22
  %v58 = vunpack.c.l.b16 %v23
  %v59 = vunpack.c.l.b16 %v24
  %v60 = vunpack.c.l.b16 %v25
  %v61 = vunpack.c.l.b16 %v26
  %v62 = vunpack.c.l.b16 %v27
  %v63 = vunpack.c.l.b16 %v28
  %v64 = vpack.c.b16 %v56, %v55
  %v65 = vpack.c.b16 %v58, %v57
  %v66 = vpack.c.b16 %v60, %v59
  %v67 = vpack.c.b16 %v62, %v61
  %v68 = vpack.c.b16 %v63, %v63
  %vm73 = vcmask 588800
  %v75 = vsel %vm73, %v45, 0
  %vm77 = vcmask 1043456
  %v79 = vsel %vm77, %v68, 0
  %81 = vmatprep.subr.bf16.mxu0 0
  %82 = vmatpush1.bf16.msra.mxu0 0
  %83 = vmatprep.subr.bf16.mxu0 0
  %84 = vmatpush1.bf16.msra.mxu0 0
  %85 = vmatprep.subr.bf16.mxu0 0
  %86 = vmatpush1.bf16.msra.mxu0 0
  %87 = vmatprep.subr.bf16.mxu0 0
  %88 = vmatpush1.bf16.msra.mxu0 %v79
  %89 = vmatprep.subr.bf16.mxu0 0
  %90 = vmatpush1.bf16.msra.mxu0 %v67
  %91 = vmatprep.subr.bf16.mxu0 0
  %92 = vmatpush1.bf16.msra.mxu0 %v66
  %93 = vmatprep.subr.bf16.mxu0 0
  %94 = vmatpush1.bf16.msra.mxu0 %v65
  %95 = vmatprep.subr.bf16.mxu0 0
  %96 = vmatpush1.bf16.msra.mxu0 %v64
  %97 = vmatprep.subr.bf16.mxu0 0
  %98 = vmatpush2.bf16.msra.mxu0 0
  %99 = vmatprep.subr.bf16.mxu0 0
  %100 = vmatpush2.bf16.msra.mxu0 0
  %101 = vmatprep.subr.bf16.mxu0 0
  %102 = vmatpush2.bf16.msra.mxu0 0
  %103 = vmatprep.subr.bf16.mxu0 0
  %104 = vmatpush2.bf16.msra.mxu0 0
  %105 = vmatprep.subr.bf16.mxu0 0
  %106 = vmatpush2.bf16.msra.mxu0 0
  %107 = vmatprep.subr.bf16.mxu0 0
  %108 = vmatpush2.bf16.msra.mxu0 0
  %109 = vmatprep.subr.bf16.mxu0 0
  %110 = vmatpush2.bf16.msra.mxu0 0
  %111 = vmatprep.subr.bf16.mxu0 0
  %112 = vmatpush2.bf16.msra.mxu0 0
  %113 = vmatprep.mubr.bf16.mxu0 0
  %114 = vmatmul.mubr.bf16.gmra.mxu0 %v75
  %v115 = vpop.f32.mrf.mxu0
  %v116 = vadd.f32 %v34, %v115
  %v117 = vpop.f32.mrf.mxu0
  %v118 = vpop.f32.mrf.mxu0
  %v119 = vadd.f32 %v39, %v118
  %v120 = vpop.f32.mrf.mxu0
  %121 = vdwg.mxu0
  %vm122 = vcmp.ge.f32.partialorder %v116, 0.0
  %vm123 = vcmp.ge.f32.partialorder %v119, 0.0
  %v124 = vld [vmem:[%s3] sm:$0xff]
  %v125 = vld [vmem:[%s3 + $0x8] sm:$0xff]
  %127 = vset.pattern.permute.xlu0 0
  %128 = vperm.xlu0 %127, %v124
  %v129 = vpop.permute.xlu0 %128
  %132 = vset.pattern.permute.xlu0 0
  %133 = vperm.xlu0 %132, %v125
  %v134 = vpop.permute.xlu0 %133
  %v136 = vmul.f32 %v116, %v129
  %v137 = vmul.f32 %v119, %v134
  %v138 = vsel %vm122, %v116, %v136
  %v139 = vsel %vm123, %v119, %v137
  %v140 = vpack.c.bf16 %v139, %v138
  %v142 = vunpack.c.l.b16 %v140
  %v143 = vunpack.c.h.b16 %v140
  %v144 = vpack.c.b16 %v142, %v142
  %v145 = vpack.c.b16 %v143, %v143
  %148 = vst [vmem:[%s4] sm:$0xf] %v144
  %149 = vst [vmem:[%s4 + $0x4] sm:$0xf] %v145
  // Predicated region
  $region18: #{encoder_forward.17} parent=0 // pred_check
    _
  $region19: #{encoder_forward.17} parent=0 // pred_check_branch
    %151 = sbr.rel (0) target = $region21
  $region20: #{encoder_forward.17} parent=0 // pred_region
    _
  $region21: #{encoder_forward.17} parent=0 // pred_fallthru
    _
  // Predicated region
  $region22: #{encoder_forward.17} parent=0 // pred_check
    _
  $region23: #{encoder_forward.17} parent=0 // pred_check_branch
    %153 = sbr.rel (0) target = $region25
  $region24: #{encoder_forward.17} parent=0 // pred_region
    _
  $region25: #{encoder_forward.17} parent=0 // pred_fallthru
    _

// kernel: encoder_forward.18
$region0: #{encoder_forward.18}
  #allocation0 [shape = 'u32[]', space=smem, size = 0x4, offset = 0x4, fixed_abs, tag = 'smem constant byte address 0x4 - core index']
  #allocation1 [shape = 'u32[144,128]{1,0:T(1,128)}', space=vmem, size = 0x12000, scoped, tag = 'internal scratch']
  %s0 = inlined_call_operand.vmem [shape: bf16[32,144], index: 0, kind: input, shape index: {}]
  %s1 = inlined_call_operand.vmem [shape: bf16[144,32], index: 1, kind: input, shape index: {}]
  %s2 = inlined_call_operand.vmem [shape: f32[32,1], index: 2, kind: input, shape index: {}]
  %s3 = inlined_call_operand.vmem [shape: f32[32,1], index: 3, kind: input, shape index: {}]
  %s4 = inlined_call_operand.vmem [shape: bf16[32,32], index: 4, kind: output, shape index: {}]
  %s5 = sld [smem:[#allocation0]]
  $region26: #{encoder_forward.18} parent=0
    _
  %s7 = ssub.s32 1, %s5
  %s8 = scalar_select 0, %s7, %s5
  // Predicated region
  $region2: #{encoder_forward.18} parent=0 // pred_check
    _
  $region3: #{encoder_forward.18} parent=0 // pred_check_branch
    %10 = sbr.rel (0) target = $region5
  $region4: #{encoder_forward.18} parent=0 // pred_region
    _
  $region5: #{encoder_forward.18} parent=0 // pred_fallthru
    _
  // Predicated region
  $region6: #{encoder_forward.18} parent=0 // pred_check
    _
  $region7: #{encoder_forward.18} parent=0 // pred_check_branch
    %12 = sbr.rel (0) target = $region9
  $region8: #{encoder_forward.18} parent=0 // pred_region
    _
  $region9: #{encoder_forward.18} parent=0 // pred_fallthru
    _
  // Predicated region
  $region10: #{encoder_forward.18} parent=0 // pred_check
    _
  $region11: #{encoder_forward.18} parent=0 // pred_check_branch
    %14 = sbr.rel (0) target = $region13
  $region12: #{encoder_forward.18} parent=0 // pred_region
    _
  $region13: #{encoder_forward.18} parent=0 // pred_fallthru
    _
  // Predicated region
  $region14: #{encoder_forward.18} parent=0 // pred_check
    _
  $region15: #{encoder_forward.18} parent=0 // pred_check_branch
    %16 = sbr.rel (0) target = $region17
  $region16: #{encoder_forward.18} parent=0 // pred_region
    _
  $region17: #{encoder_forward.18} parent=0 // pred_fallthru
    _
  %v18 = vld [vmem:[%s0] sm:$0xff]
  %v19 = vld [vmem:[%s0 + $0x8] sm:$0xff]
  %v20 = vld [vmem:[%s0 + $0x10] sm:$0xff]
  %v21 = vld [vmem:[%s0 + $0x18] sm:$0xff]
  %v22 = vld [vmem:[%s1] sm:$0xf]
  %v23 = vld [vmem:[%s1 + $0x4] sm:$0xf]
  %v24 = vld [vmem:[%s1 + $0x8] sm:$0xf]
  %v25 = vld [vmem:[%s1 + $0xc] sm:$0xf]
  %v26 = vld [vmem:[%s1 + $0x10] sm:$0xf]
  %v27 = vld [vmem:[%s1 + $0x14] sm:$0xf]
  %v28 = vld [vmem:[%s1 + $0x18] sm:$0xf]
  %v29 = vld [vmem:[%s1 + $0x1c] sm:$0xf]
  %v30 = vld [vmem:[%s1 + $0x20] sm:$0xf]
  %v31 = vld [vmem:[%s1 + $0x24] sm:$0xf]
  %v32 = vld [vmem:[%s1 + $0x28] sm:$0xf]
  %v33 = vld [vmem:[%s1 + $0x2c] sm:$0xf]
  %v34 = vld [vmem:[%s1 + $0x30] sm:$0xf]
  %v35 = vld [vmem:[%s1 + $0x34] sm:$0xf]
  %v36 = vld [vmem:[%s1 + $0x38] sm:$0xf]
  %v37 = vld [vmem:[%s1 + $0x3c] sm:$0xf]
  %v38 = vld [vmem:[%s1 + $0x40] sm:$0xf]
  %v39 = vld [vmem:[%s1 + $0x44] sm:$0xf]
  %v40 = vld [vmem:[%s2] sm:$0xff]
  %v41 = vld [vmem:[%s2 + $0x8] sm:$0xff]
  %v42 = vld [vmem:[%s2 + $0x10] sm:$0xff]
  %v43 = vld [vmem:[%s2 + $0x18] sm:$0xff]
  %45 = vset.pattern.permute.xlu0 0
  %46 = vperm.xlu0 %45, %v40
  %v47 = vpop.permute.xlu0 %46
  %50 = vset.pattern.permute.xlu0 0
  %51 = vperm.xlu0 %50, %v41
  %v52 = vpop.permute.xlu0 %51
  %55 = vset.pattern.permute.xlu0 0
  %56 = vperm.xlu0 %55, %v42
  %v57 = vpop.permute.xlu0 %56
  %60 = vset.pattern.permute.xlu0 0
  %61 = vperm.xlu0 %60, %v43
  %v62 = vpop.permute.xlu0 %61
  %v68 = vunpack.c.l.b16 %v18
  %v69 = vunpack.c.h.b16 %v18
  %v70 = vunpack.c.l.b16 %v19
  %v71 = vunpack.c.h.b16 %v19
  %v72 = vunpack.c.l.b16 %v20
  %v73 = vunpack.c.h.b16 %v20
  %v74 = vunpack.c.l.b16 %v21
  %v75 = vunpack.c.h.b16 %v21
  %v76 = vpack.c.b16 %v70, %v68
  %v77 = vpack.c.b16 %v71, %v69
  %v78 = vpack.c.b16 %v74, %v72
  %v79 = vpack.c.b16 %v75, %v73
  %v100 = vunpack.c.l.b16 %v22
  %v101 = vunpack.c.l.b16 %v23
  %v102 = vunpack.c.l.b16 %v24
  %v103 = vunpack.c.l.b16 %v25
  %v104 = vunpack.c.l.b16 %v26
  %v105 = vunpack.c.l.b16 %v27
  %v106 = vunpack.c.l.b16 %v28
  %v107 = vunpack.c.l.b16 %v29
  %v108 = vunpack.c.l.b16 %v30
  %v109 = vunpack.c.l.b16 %v31
  %v110 = vunpack.c.l.b16 %v32
  %v111 = vunpack.c.l.b16 %v33
  %v112 = vunpack.c.l.b16 %v34
  %v113 = vunpack.c.l.b16 %v35
  %v114 = vunpack.c.l.b16 %v36
  %v115 = vunpack.c.l.b16 %v37
  %v116 = vunpack.c.l.b16 %v38
  %v117 = vunpack.c.l.b16 %v39
  %v118 = vpack.c.b16 %v101, %v100
  %v119 = vpack.c.b16 %v103, %v102
  %v120 = vpack.c.b16 %v105, %v104
  %v121 = vpack.c.b16 %v107, %v106
  %v122 = vpack.c.b16 %v109, %v108
  %v123 = vpack.c.b16 %v111, %v110
  %v124 = vpack.c.b16 %v113, %v112
  %v125 = vpack.c.b16 %v115, %v114
  %v126 = vpack.c.b16 %v117, %v116
  %vm136 = vcmask 130048
  %v138 = vsel %vm136, %v77, 0
  %v141 = vsel %vm136, %v79, 0
  %143 = vmatprep.subr.bf16.mxu0 0
  %144 = vmatpush1.bf16.msra.mxu0 %v125
  %145 = vmatprep.subr.bf16.mxu0 0
  %146 = vmatpush1.bf16.msra.mxu0 %v124
  %147 = vmatprep.subr.bf16.mxu0 0
  %148 = vmatpush1.bf16.msra.mxu0 %v123
  %149 = vmatprep.subr.bf16.mxu0 0
  %150 = vmatpush1.bf16.msra.mxu0 %v122
  %151 = vmatprep.subr.bf16.mxu0 0
  %152 = vmatpush1.bf16.msra.mxu0 %v121
  %153 = vmatprep.subr.bf16.mxu0 0
  %154 = vmatpush1.bf16.msra.mxu0 %v120
  %155 = vmatprep.subr.bf16.mxu0 0
  %156 = vmatpush1.bf16.msra.mxu0 %v119
  %157 = vmatprep.subr.bf16.mxu0 0
  %158 = vmatpush1.bf16.msra.mxu0 %v118
  %159 = vmatprep.subr.bf16.mxu0 0
  %160 = vmatpush2.bf16.msra.mxu0 0
  %161 = vmatprep.subr.bf16.mxu0 0
  %162 = vmatpush2.bf16.msra.mxu0 0
  %163 = vmatprep.subr.bf16.mxu0 0
  %164 = vmatpush2.bf16.msra.mxu0 0
  %165 = vmatprep.subr.bf16.mxu0 0
  %166 = vmatpush2.bf16.msra.mxu0 0
  %167 = vmatprep.subr.bf16.mxu0 0
  %168 = vmatpush2.bf16.msra.mxu0 0
  %169 = vmatprep.subr.bf16.mxu0 0
  %170 = vmatpush2.bf16.msra.mxu0 0
  %171 = vmatprep.subr.bf16.mxu0 0
  %172 = vmatpush2.bf16.msra.mxu0 0
  %173 = vmatprep.subr.bf16.mxu0 0
  %174 = vmatpush2.bf16.msra.mxu0 %v126
  %175 = vmatprep.mubr.bf16.mxu0 %v138
  %176 = vmatmul.mubr.bf16.gmra.mxu0 %v76
  %v177 = vpop.f32.mrf.mxu0
  %v178 = vadd.f32 %v47, %v177
  %v179 = vpop.f32.mrf.mxu0
  %v180 = vpop.f32.mrf.mxu0
  %v181 = vadd.f32 %v52, %v180
  %v182 = vpop.f32.mrf.mxu0
  %183 = vmatprep.mubr.bf16.mxu0 %v141
  %184 = vmatmul.mubr.bf16.gmra.mxu0 %v78
  %v185 = vpop.f32.mrf.mxu0
  %v186 = vadd.f32 %v57, %v185
  %v187 = vpop.f32.mrf.mxu0
  %v188 = vpop.f32.mrf.mxu0
  %v189 = vadd.f32 %v62, %v188
  %v190 = vpop.f32.mrf.mxu0
  %191 = vdwg.mxu0
  %vm192 = vcmp.ge.f32.partialorder %v178, 0.0
  %vm193 = vcmp.ge.f32.partialorder %v181, 0.0
  %vm194 = vcmp.ge.f32.partialorder %v186, 0.0
  %vm195 = vcmp.ge.f32.partialorder %v189, 0.0
  %v196 = vld [vmem:[%s3] sm:$0xff]
  %v197 = vld [vmem:[%s3 + $0x8] sm:$0xff]
  %v198 = vld [vmem:[%s3 + $0x10] sm:$0xff]
  %v199 = vld [vmem:[%s3 + $0x18] sm:$0xff]
  %201 = vset.pattern.permute.xlu0 0
  %202 = vperm.xlu0 %201, %v196
  %v203 = vpop.permute.xlu0 %202
  %206 = vset.pattern.permute.xlu0 0
  %207 = vperm.xlu0 %206, %v197
  %v208 = vpop.permute.xlu0 %207
  %211 = vset.pattern.permute.xlu0 0
  %212 = vperm.xlu0 %211, %v198
  %v213 = vpop.permute.xlu0 %212
  %216 = vset.pattern.permute.xlu0 0
  %217 = vperm.xlu0 %216, %v199
  %v218 = vpop.permute.xlu0 %217
  %v220 = vmul.f32 %v178, %v203
  %v221 = vmul.f32 %v181, %v208
  %v222 = vmul.f32 %v186, %v213
  %v223 = vmul.f32 %v189, %v218
  %v224 = vsel %vm192, %v178, %v220
  %v225 = vsel %vm193, %v181, %v221
  %v226 = vsel %vm194, %v186, %v222
  %v227 = vsel %vm195, %v189, %v223
  %v228 = vpack.c.bf16 %v225, %v224
  %v229 = vpack.c.bf16 %v227, %v226
  %v232 = vunpack.c.l.b16 %v228
  %v233 = vunpack.c.h.b16 %v228
  %v234 = vunpack.c.l.b16 %v229
  %v235 = vunpack.c.h.b16 %v229
  %v236 = vpack.c.b16 %v232, %v232
  %v237 = vpack.c.b16 %v233, %v233
  %v238 = vpack.c.b16 %v234, %v234
  %v239 = vpack.c.b16 %v235, %v235
  %vm244 = vcmask 257024
  %245 = vst.msk [vmem:[%s4] sm:$0xf] %vm244, %v236
  %246 = vst.msk [vmem:[%s4 + $0x4] sm:$0xf] %vm244, %v237
  %247 = vst.msk [vmem:[%s4 + $0x8] sm:$0xf] %vm244, %v238
  %248 = vst.msk [vmem:[%s4 + $0xc] sm:$0xf] %vm244, %v239
  // Predicated region
  $region18: #{encoder_forward.18} parent=0 // pred_check
    _
  $region19: #{encoder_forward.18} parent=0 // pred_check_branch
    %250 = sbr.rel (0) target = $region21
  $region20: #{encoder_forward.18} parent=0 // pred_region
    _
  $region21: #{encoder_forward.18} parent=0 // pred_fallthru
    _
  // Predicated region
  $region22: #{encoder_forward.18} parent=0 // pred_check
    _
  $region23: #{encoder_forward.18} parent=0 // pred_check_branch
    %252 = sbr.rel (0) target = $region25
  $region24: #{encoder_forward.18} parent=0 // pred_region
    _
  $region25: #{encoder_forward.18} parent=0 // pred_fallthru
    _

// kernel: encoder_forward.19
$region0: #{encoder_forward.19}
  #allocation0 [shape = 'u32[]', space=smem, size = 0x4, offset = 0x4, fixed_abs, tag = 'smem constant byte address 0x4 - core index']
  #allocation1 [shape = 'u32[144,128]{1,0:T(1,128)}', space=vmem, size = 0x12000, scoped, tag = 'internal scratch']
  %s0 = inlined_call_operand.vmem [shape: f32[2,512], index: 0, kind: input, shape index: {}]
  %s1 = inlined_call_operand.vmem [shape: f32[2,512], index: 1, kind: input, shape index: {}]
  %s2 = inlined_call_operand.vmem [shape: f32[2,512], index: 2, kind: input, shape index: {}]
  %s3 = inlined_call_operand.vmem [shape: f32[1,512], index: 3, kind: input, shape index: {}]
  %s4 = inlined_call_operand.vmem [shape: f32[1,512], index: 4, kind: input, shape index: {}]
  %s5 = inlined_call_operand.vmem [shape: f32[1,512], index: 5, kind: input, shape index: {}]
  %s6 = inlined_call_operand.vmem [shape: f32[1,512], index: 6, kind: input, shape index: {}]
  %s7 = inlined_call_operand.vmem [shape: bf16[2,512], index: 7, kind: output, shape index: {}]
  %s8 = sld [smem:[#allocation0]]
  $region38: #{encoder_forward.19} parent=0
    _
  %s10 = ssub.s32 1, %s8
  %s11 = scalar_select 0, %s10, %s8
  // Predicated region
  $region2: #{encoder_forward.19} parent=0 // pred_check
    _
  $region3: #{encoder_forward.19} parent=0 // pred_check_branch
    %13 = sbr.rel (0) target = $region5
  $region4: #{encoder_forward.19} parent=0 // pred_region
    _
  $region5: #{encoder_forward.19} parent=0 // pred_fallthru
    _
  // Predicated region
  $region6: #{encoder_forward.19} parent=0 // pred_check
    _
  $region7: #{encoder_forward.19} parent=0 // pred_check_branch
    %15 = sbr.rel (0) target = $region9
  $region8: #{encoder_forward.19} parent=0 // pred_region
    _
  $region9: #{encoder_forward.19} parent=0 // pred_fallthru
    _
  // Predicated region
  $region10: #{encoder_forward.19} parent=0 // pred_check
    _
  $region11: #{encoder_forward.19} parent=0 // pred_check_branch
    %17 = sbr.rel (0) target = $region13
  $region12: #{encoder_forward.19} parent=0 // pred_region
    _
  $region13: #{encoder_forward.19} parent=0 // pred_fallthru
    _
  // Predicated region
  $region14: #{encoder_forward.19} parent=0 // pred_check
    _
  $region15: #{encoder_forward.19} parent=0 // pred_check_branch
    %19 = sbr.rel (0) target = $region17
  $region16: #{encoder_forward.19} parent=0 // pred_region
    _
  $region17: #{encoder_forward.19} parent=0 // pred_fallthru
    _
  // Predicated region
  $region18: #{encoder_forward.19} parent=0 // pred_check
    _
  $region19: #{encoder_forward.19} parent=0 // pred_check_branch
    %21 = sbr.rel (0) target = $region21
  $region20: #{encoder_forward.19} parent=0 // pred_region
    _
  $region21: #{encoder_forward.19} parent=0 // pred_fallthru
    _
  // Predicated region
  $region22: #{encoder_forward.19} parent=0 // pred_check
    _
  $region23: #{encoder_forward.19} parent=0 // pred_check_branch
    %23 = sbr.rel (0) target = $region25
  $region24: #{encoder_forward.19} parent=0 // pred_region
    _
  $region25: #{encoder_forward.19} parent=0 // pred_fallthru
    _
  // Predicated region
  $region26: #{encoder_forward.19} parent=0 // pred_check
    _
  $region27: #{encoder_forward.19} parent=0 // pred_check_branch
    %25 = sbr.rel (0) target = $region29
  $region28: #{encoder_forward.19} parent=0 // pred_region
    _
  $region29: #{encoder_forward.19} parent=0 // pred_fallthru
    _
  %v26 = vld [vmem:[%s0] sm:$0xff]
  %v27 = vxor.u32 %v26, 2147483648
  %v28 = vmul.f32 %v27, 1.442695
  %v29 = vpow.pop %v28
  %v30 = vadd.f32 %v29, 1.0
  %v31 = vrcp.pop %v30
  %v32 = vmul.f32 1.0, %v31
  %v33 = vld [vmem:[%s3] sm:$0xf]
  %v35 = vlaneseq
  %v36 = vshrl.u32 %v35, 7
  %v37 = vsub.s32 0, %v36
  %v38 = vrot.slane %v33, %v37
  %v39 = vlaneseq
  %v40 = vshrl.u32 %v39, 7
  %v41 = vsub.s32 1, %v40
  %v42 = vrot.slane %v33, %v41
  %v43 = vlaneseq
  %v44 = vshrl.u32 %v43, 7
  %v45 = vsub.s32 2, %v44
  %v46 = vrot.slane %v33, %v45
  %v47 = vlaneseq
  %v48 = vshrl.u32 %v47, 7
  %v49 = vsub.s32 3, %v48
  %v50 = vrot.slane %v33, %v49
  %v51 = vcombine.low %v38, %v42
  %v52 = vcombine.low %v46, %v50
  %v54 = vunpack.c.l.s4 1983009808
  %v55 = vunpack.c.0.s8 %v54
  %v56 = vlaneseq
  %v57 = vshrl.u32 %v56, 7
  %v58 = vsub.s32 %v55, %v57
  %v59 = vrot.slane %v51, %v58
  %v61 = vunpack.c.l.s4 1983009808
  %v62 = vunpack.c.0.s8 %v61
  %v63 = vlaneseq
  %v64 = vshrl.u32 %v63, 7
  %v65 = vsub.s32 %v62, %v64
  %v66 = vrot.slane %v52, %v65
  %v67 = vcombine.low %v59, %v66
  %v69 = vmul.f32 %v32, %v67
  %v70 = vld [vmem:[%s1] sm:$0xff]
  %v71 = vld [vmem:[%s4] sm:$0xf]
  %v73 = vlaneseq
  %v74 = vshrl.u32 %v73, 7
  %v75 = vsub.s32 0, %v74
  %v76 = vrot.slane %v71, %v75
  %v77 = vlaneseq
  %v78 = vshrl.u32 %v77, 7
  %v79 = vsub.s32 1, %v78
  %v80 = vrot.slane %v71, %v79
  %v81 = vlaneseq
  %v82 = vshrl.u32 %v81, 7
  %v83 = vsub.s32 2, %v82
  %v84 = vrot.slane %v71, %v83
  %v85 = vlaneseq
  %v86 = vshrl.u32 %v85, 7
  %v87 = vsub.s32 3, %v86
  %v88 = vrot.slane %v71, %v87
  %v89 = vcombine.low %v76, %v80
  %v90 = vcombine.low %v84, %v88
  %v92 = vunpack.c.l.s4 1983009808
  %v93 = vunpack.c.0.s8 %v92
  %v94 = vlaneseq
  %v95 = vshrl.u32 %v94, 7
  %v96 = vsub.s32 %v93, %v95
  %v97 = vrot.slane %v89, %v96
  %v99 = vunpack.c.l.s4 1983009808
  %v100 = vunpack.c.0.s8 %v99
  %v101 = vlaneseq
  %v102 = vshrl.u32 %v101, 7
  %v103 = vsub.s32 %v100, %v102
  %v104 = vrot.slane %v90, %v103
  %v105 = vcombine.low %v97, %v104
  %v107 = vmul.f32 %v70, %v105
  %v108 = vadd.f32 %v69, %v107
  %v109 = vld [vmem:[%s2] sm:$0xff]
  %v110 = vld [vmem:[%s5] sm:$0xf]
  %v112 = vlaneseq
  %v113 = vshrl.u32 %v112, 7
  %v114 = vsub.s32 0, %v113
  %v115 = vrot.slane %v110, %v114
  %v116 = vlaneseq
  %v117 = vshrl.u32 %v116, 7
  %v118 = vsub.s32 1, %v117
  %v119 = vrot.slane %v110, %v118
  %v120 = vlaneseq
  %v121 = vshrl.u32 %v120, 7
  %v122 = vsub.s32 2, %v121
  %v123 = vrot.slane %v110, %v122
  %v124 = vlaneseq
  %v125 = vshrl.u32 %v124, 7
  %v126 = vsub.s32 3, %v125
  %v127 = vrot.slane %v110, %v126
  %v128 = vcombine.low %v115, %v119
  %v129 = vcombine.low %v123, %v127
  %v131 = vunpack.c.l.s4 1983009808
  %v132 = vunpack.c.0.s8 %v131
  %v133 = vlaneseq
  %v134 = vshrl.u32 %v133, 7
  %v135 = vsub.s32 %v132, %v134
  %v136 = vrot.slane %v128, %v135
  %v138 = vunpack.c.l.s4 1983009808
  %v139 = vunpack.c.0.s8 %v138
  %v140 = vlaneseq
  %v141 = vshrl.u32 %v140, 7
  %v142 = vsub.s32 %v139, %v141
  %v143 = vrot.slane %v129, %v142
  %v144 = vcombine.low %v136, %v143
  %v146 = vmul.f32 %v109, %v144
  %v147 = vadd.f32 %v108, %v146
  %v148 = vld [vmem:[%s6] sm:$0xf]
  %v150 = vlaneseq
  %v151 = vshrl.u32 %v150, 7
  %v152 = vsub.s32 0, %v151
  %v153 = vrot.slane %v148, %v152
  %v154 = vlaneseq
  %v155 = vshrl.u32 %v154, 7
  %v156 = vsub.s32 1, %v155
  %v157 = vrot.slane %v148, %v156
  %v158 = vlaneseq
  %v159 = vshrl.u32 %v158, 7
  %v160 = vsub.s32 2, %v159
  %v161 = vrot.slane %v148, %v160
  %v162 = vlaneseq
  %v163 = vshrl.u32 %v162, 7
  %v164 = vsub.s32 3, %v163
  %v165 = vrot.slane %v148, %v164
  %v166 = vcombine.low %v153, %v157
  %v167 = vcombine.low %v161, %v165
  %v169 = vunpack.c.l.s4 1983009808
  %v170 = vunpack.c.0.s8 %v169
  %v171 = vlaneseq
  %v172 = vshrl.u32 %v171, 7
  %v173 = vsub.s32 %v170, %v172
  %v174 = vrot.slane %v166, %v173
  %v176 = vunpack.c.l.s4 1983009808
  %v177 = vunpack.c.0.s8 %v176
  %v178 = vlaneseq
  %v179 = vshrl.u32 %v178, 7
  %v180 = vsub.s32 %v177, %v179
  %v181 = vrot.slane %v167, %v180
  %v182 = vcombine.low %v174, %v181
  %v184 = vadd.f32 %v147, %v182
  %v185 = vxor.u32 %v184, 2147483648
  %v186 = vmul.f32 %v185, 1.442695
  %v187 = vpow.pop %v186
  %v188 = vadd.f32 %v187, 1.0
  %v189 = vrcp.pop %v188
  %v190 = vmul.f32 1.0, %v189
  %v192 = vcombine.high %v190, %v190
  %v194 = vunpack.c.l.s4 1983009808
  %v195 = vunpack.c.0.s8 %v194
  %v196 = vlaneseq
  %v197 = vshrl.u32 %v196, 7
  %v198 = vsub.s32 %v195, %v197
  %v199 = vrot.slane %v190, %v198
  %v201 = vunpack.c.l.s4 1983009808
  %v202 = vunpack.c.0.s8 %v201
  %v203 = vlaneseq
  %v204 = vshrl.u32 %v203, 7
  %v205 = vsub.s32 %v202, %v204
  %v206 = vrot.slane %v192, %v205
  %v207 = vcombine.high %v199, %v199
  %v208 = vcombine.high %v206, %v206
  %v213 = vpack.c.bf16 %v199, %v199
  %v214 = vpack.c.bf16 %v207, %v207
  %v215 = vpack.c.bf16 %v206, %v206
  %v216 = vpack.c.bf16 %v208, %v208
  %v221 = vcombine.low %v213, %v214
  %v222 = vcombine.low %v215, %v216
  %v224 = vunpack.c.l.s4 1966171168
  %v225 = vunpack.c.0.s8 %v224
  %v226 = vlaneseq
  %v227 = vshrl.u32 %v226, 7
  %v228 = vsub.s32 %v225, %v227
  %v229 = vrot.slane %v221, %v228
  %v231 = vunpack.c.l.s4 1966171168
  %v232 = vunpack.c.0.s8 %v231
  %v233 = vlaneseq
  %v234 = vshrl.u32 %v233, 7
  %v235 = vsub.s32 %v232, %v234
  %v236 = vrot.slane %v222, %v235
  %v237 = vcombine.low %v229, %v236
  %v239 = vunpack.c.l.s4 1966171168
  %v240 = vunpack.c.0.s8 %v239
  %v241 = vlaneseq
  %v242 = vshrl.u32 %v241, 7
  %v243 = vsub.s32 %v240, %v242
  %v244 = vrot.slane %v237, %v243
  %246 = vst [vmem:[%s7] sm:$0xf] %v244
  // Predicated region
  $region30: #{encoder_forward.19} parent=0 // pred_check
    _
  $region31: #{encoder_forward.19} parent=0 // pred_check_branch
    %248 = sbr.rel (0) target = $region33
  $region32: #{encoder_forward.19} parent=0 // pred_region
    _
  $region33: #{encoder_forward.19} parent=0 // pred_fallthru
    _
  // Predicated region
  $region34: #{encoder_forward.19} parent=0 // pred_check
    _
  $region35: #{encoder_forward.19} parent=0 // pred_check_branch
    %250 = sbr.rel (0) target = $region37
  $region36: #{encoder_forward.19} parent=0 // pred_region
    _
  $region37: #{encoder_forward.19} parent=0 // pred_fallthru
    _

</llo_original>
